<compile_context>
chip_gen: v5e
topology: v5e:2x2
jax: 0.10.0
libtpu: 0.0.40
codegen_flags: <defaults>
</compile_context>

<pallas_src>
import numpy as np
import jax
import jax.numpy as jnp
from jax.experimental import pallas as pl
from jax.experimental.pallas import tpu as pltpu


# ----------------------------------------------------------------------------
# Fused LeNet-5 quantized-forward kernel
# ----------------------------------------------------------------------------
def _make_lenet_kernel(batch, input_scale, mults):
    m1, m3, m5, m6, m7 = mults  # static python floats: round(M*2^16)/2^16

    def kernel(x_ref, t1_ref, b1_ref, sh1_ref, sw1_ref,
               t3_ref, b3_ref, sh2_ref, sw2_ref,
               w5_ref, b5_ref, w6_ref, b6_ref, w7_ref, b7_ref,
               o_ref, lhs1_ref, lhs3_ref):
        f32 = jnp.float32
        bf16 = jnp.bfloat16

        def requant(acc, bias, mult, relu):
            y = acc + bias
            if relu:
                y = jnp.maximum(y, 0.0)
            # single fused multiply by the static fixed-point constant
            return jnp.clip(jnp.floor(y * mult), -128.0, 127.0)

        # ---- fused input quantization: clamp(floor(s_I * x)) -> integers ----
        xq = jnp.clip(jnp.floor(x_ref[:, 0, :, :] * input_scale), -128.0, 127.0)  # (B,32,32)

        # ---- conv1 im2col rows (width-Toeplitz form), assembled in VMEM ----
        # lhs1[b][i, di*32 + jj] = xq[b, i+di, jj]
        for di in range(5):
            lhs1_ref[:, :, di * 32:(di + 1) * 32] = xq[:, di:di + 28, :]

        # hoisted constant loads (VMEM, bf16 for MXU operands)
        t1 = t1_ref[...]      # (160, 168)
        b1 = b1_ref[...]      # (1, 168)
        sh1 = sh1_ref[...]    # (14, 27)   even-row select
        sw1 = sw1_ref[...]    # (167, 84)  even-col (per channel block) select
        t3 = t3_ref[...]      # (420, 160)
        b3 = b3_ref[...]      # (1, 160)
        sh2 = sh2_ref[...]    # (5, 9)
        sw2 = sw2_ref[...]    # (159, 80)
        w5 = [w5_ref[i] for i in range(5)]   # 5 x (80, 128)
        b5 = b5_ref[...]      # (1, 128)
        w6 = w6_ref[...]      # (128, 128)
        b6 = b6_ref[...]      # (1, 128)
        w7 = w7_ref[...]      # (128, 128)
        b7 = b7_ref[...]      # (1, 128)

        for bi in range(batch):
            # ---------- conv1 + ReLU + rescale + clamp ----------
            a1 = lhs1_ref[bi].astype(bf16)                             # (28,160)
            acc1 = jnp.dot(a1, t1, preferred_element_type=f32)          # (28,168) = (i, co*28+j)
            y1 = requant(acc1, b1, m1, relu=True)

            # ---------- maxpool2 (2x2/2): 4-way max + even row/col selection ----------
            pm1 = jnp.maximum(jnp.maximum(y1[0:27, 0:167], y1[0:27, 1:168]),
                              jnp.maximum(y1[1:28, 0:167], y1[1:28, 1:168]))
            p1 = jnp.dot(
                jnp.dot(sh1, pm1.astype(bf16), preferred_element_type=f32).astype(bf16),
                sw1, preferred_element_type=f32)                        # (14, 6*14)

            # ---------- conv3 im2col rows ----------
            # lhs3[bi][i, (ci*5+di)*14 + jj] = pooled1[ci, i+di, jj]
            for ci in range(6):
                for di in range(5):
                    k0 = (ci * 5 + di) * 14
                    lhs3_ref[bi, :, k0:k0 + 14] = p1[di:di + 10, ci * 14:(ci + 1) * 14]
            a3 = lhs3_ref[bi].astype(bf16)                              # (10,420)
            acc3 = jnp.dot(a3, t3, preferred_element_type=f32)           # (10,160) = (i, co*10+j)
            y3 = requant(acc3, b3, m3, relu=True)

            # ---------- maxpool4 ----------
            pm2 = jnp.maximum(jnp.maximum(y3[0:9, 0:159], y3[0:9, 1:160]),
                              jnp.maximum(y3[1:10, 0:159], y3[1:10, 1:160]))
            p2 = jnp.dot(
                jnp.dot(sh2, pm2.astype(bf16), preferred_element_type=f32).astype(bf16),
                sw2, preferred_element_type=f32)                        # (5, 16*5)

            # ---------- conv5 (5x5 kernel on 5x5 map == dense): 5 row-matmuls ----------
            acc5 = jnp.zeros((1, 128), f32)
            for i in range(5):
                acc5 = acc5 + jnp.dot(p2[i:i + 1, :].astype(bf16), w5[i],
                                      preferred_element_type=f32)       # (1,128)
            y5 = requant(acc5, b5, m5, relu=True)    # lanes >= 120 stay 0

            # ---------- fc6 ----------
            acc6 = jnp.dot(y5.astype(bf16), w6, preferred_element_type=f32)
            y6 = requant(acc6, b6, m6, relu=True)    # lanes >= 84 stay 0

            # ---------- output (no ReLU) ----------
            acc7 = jnp.dot(y6.astype(bf16), w7, preferred_element_type=f32)
            y7 = requant(acc7, b7, m7, relu=False)   # lanes >= 10 stay 0

            o_ref[bi:bi + 1, :] = y7

    return kernel


# ----------------------------------------------------------------------------
# Wrapper: constant (weight) re-layout + single pallas_call
# ----------------------------------------------------------------------------
def net_quantized_forward(x, params, input_scale, output_scales):
    batch = x.shape[0]
    # static fixed-point multipliers: round(M * 2^16) / 2^16 (single constant each)
    mults = tuple(float(np.round(float(s) * 65536.0)) / 65536.0 for s in output_scales)

    w1 = np.asarray(params["conv1_w"], np.float32); bc1 = np.asarray(params["conv1_b"], np.float32)
    w3 = np.asarray(params["conv3_w"], np.float32); bc3 = np.asarray(params["conv3_b"], np.float32)
    w5 = np.asarray(params["conv5_w"], np.float32); bc5 = np.asarray(params["conv5_b"], np.float32)
    w6 = np.asarray(params["fc6_w"], np.float32);   bc6 = np.asarray(params["fc6_b"], np.float32)
    w7 = np.asarray(params["out_w"], np.float32);   bc7 = np.asarray(params["out_b"], np.float32)

    # conv1 as (28,160)@(160,168): T1[di*32 + j + dj, co*28 + j] = w1[co,0,di,dj]
    T1 = np.zeros((160, 168), np.float32)
    jj = np.arange(28)
    for co in range(6):
        for di in range(5):
            for dj in range(5):
                T1[di * 32 + jj + dj, co * 28 + jj] = w1[co, 0, di, dj]
    b1pat = np.repeat(bc1, 28)[None, :].astype(np.float32)              # (1,168)

    # conv3 as (10,420)@(420,160): T3[(ci*5+di)*14 + j + dj, co*10 + j] = w3[co,ci,di,dj]
    T3 = np.zeros((420, 160), np.float32)
    jj = np.arange(10)
    for co in range(16):
        for ci in range(6):
            for di in range(5):
                for dj in range(5):
                    T3[(ci * 5 + di) * 14 + jj + dj, co * 10 + jj] = w3[co, ci, di, dj]
    b3pat = np.repeat(bc3, 10)[None, :].astype(np.float32)              # (1,160)

    # conv5 (dense on the 16x5x5 map): W5[i, ci*5+j, co] = w5[co,ci,i,j], co padded to 128 lanes
    W5 = np.zeros((5, 80, 128), np.float32)
    W5[:, :, :120] = np.transpose(w5, (2, 1, 3, 0)).reshape(5, 80, 120)
    b5pad = np.zeros((1, 128), np.float32); b5pad[0, :120] = bc5

    W6 = np.zeros((128, 128), np.float32); W6[:120, :84] = w6.T
    b6pad = np.zeros((1, 128), np.float32); b6pad[0, :84] = bc6
    W7 = np.zeros((128, 128), np.float32); W7[:84, :10] = w7.T
    b7pad = np.zeros((1, 128), np.float32); b7pad[0, :10] = bc7

    # 0/1 even-row / even-column selection matrices for the fused 2x2 maxpools
    Sh1 = np.zeros((14, 27), np.float32); Sh1[np.arange(14), 2 * np.arange(14)] = 1.0
    Sw1 = np.zeros((167, 84), np.float32)
    c = np.arange(14)
    for co in range(6):
        Sw1[co * 28 + 2 * c, co * 14 + c] = 1.0
    Sh2 = np.zeros((5, 9), np.float32); Sh2[np.arange(5), 2 * np.arange(5)] = 1.0
    Sw2 = np.zeros((159, 80), np.float32)
    c = np.arange(5)
    for co in range(16):
        Sw2[co * 10 + 2 * c, co * 5 + c] = 1.0

    bf = jnp.bfloat16
    operands = (
        x.astype(jnp.float32),                      # (B,1,32,32)
        jnp.asarray(T1, bf), jnp.asarray(b1pat), jnp.asarray(Sh1, bf), jnp.asarray(Sw1, bf),
        jnp.asarray(T3, bf), jnp.asarray(b3pat), jnp.asarray(Sh2, bf), jnp.asarray(Sw2, bf),
        jnp.asarray(W5, bf), jnp.asarray(b5pad),
        jnp.asarray(W6, bf), jnp.asarray(b6pad),
        jnp.asarray(W7, bf), jnp.asarray(b7pad),
    )

    def full_spec(a):
        n = a.ndim
        return pl.BlockSpec(a.shape, lambda i, n=n: (0,) * n)

    grid_spec = pltpu.PrefetchScalarGridSpec(
        num_scalar_prefetch=0,
        grid=(1,),
        in_specs=[full_spec(op) for op in operands],
        out_specs=pl.BlockSpec((batch, 128), lambda i: (0, 0)),   # lane-dense output block
        scratch_shapes=[pltpu.VMEM((batch, 28, 160), jnp.float32),   # conv1 im2col rows
                        pltpu.VMEM((batch, 10, 420), jnp.float32)],  # conv3 im2col rows
    )

    kern = _make_lenet_kernel(batch, float(input_scale), mults)
    out = pl.pallas_call(
        kern,
        out_shape=jax.ShapeDtypeStruct((batch, 128), jnp.float32),
        grid_spec=grid_spec,
        compiler_params=pltpu.CompilerParams(dimension_semantics=("arbitrary",)),
    )(*operands)
    return out[:, :10]

# TODO(synk): the PyTorch forward_pre_hooks raise data-dependent exceptions on
# non-integer / out-of-range layer inputs; there is no Pallas equivalent (the
# fused pipeline guarantees clamped integer activations by construction).


# ----------------------------------------------------------------------------
# Scale calibration (mirrors NetQuantized.__init__ with synthetic statistics)
# ----------------------------------------------------------------------------
def quantize_initial_input_from_max(max_pixel):
    return (127.0 - (-128.0)) / (2.0 * max_pixel)


def quantize_activations_from_max(max_activation, s_w, s_initial_input, s_o_prev):
    s_o = 2.0 * max_activation / (2.0 ** 8 - 1)
    if len(s_o_prev) != 0:
        m = s_w * s_o_prev[-1] / s_o
    else:
        m = s_w / (s_initial_input * s_o)
    return m, s_o


def make_scales():
    input_scale = quantize_initial_input_from_max(1.0)          # = 127.5
    synthetic_stats = [(6.0, 16.0), (12.0, 32.0), (24.0, 64.0), (10.0, 32.0), (8.0, 16.0)]
    output_scales, preceding = [], []
    for max_act, s_w in synthetic_stats:
        m, s_o = quantize_activations_from_max(max_act, s_w, input_scale, preceding)
        output_scales.append(m)
        preceding.append(s_o)
    return input_scale, output_scales


def make_params(key):
    ks = jax.random.split(key, 10)
    def w(k, shape, lo=-8, hi=9):
        return jax.random.randint(k, shape, lo, hi).astype(jnp.float32)
    return {
        "conv1_w": w(ks[0], (6, 1, 5, 5)),    "conv1_b": w(ks[1], (6,), -32, 33),
        "conv3_w": w(ks[2], (16, 6, 5, 5)),   "conv3_b": w(ks[3], (16,), -32, 33),
        "conv5_w": w(ks[4], (120, 16, 5, 5)), "conv5_b": w(ks[5], (120,), -32, 33),
        "fc6_w":  w(ks[6], (84, 120)),        "fc6_b":  w(ks[7], (84,), -32, 33),
        "out_w":  w(ks[8], (10, 84)),         "out_b":  w(ks[9], (10,), -32, 33),
    }


# ----------------------------------------------------------------------------
# Pure-JAX reference (exact in f32: all operands are small integers)
# ----------------------------------------------------------------------------
def _reference_forward(x, params, input_scale, output_scales):
    hp = jax.lax.Precision.HIGHEST
    mults = [float(np.round(float(s) * 65536.0)) / 65536.0 for s in output_scales]

    def requant(y, m, relu):
        if relu:
            y = jnp.maximum(y, 0.0)
        return jnp.clip(jnp.floor(y * m), -128.0, 127.0)

    def conv(v, w, b):
        y = jax.lax.conv_general_dilated(v, w, (1, 1), "VALID",
                                         dimension_numbers=("NCHW", "OIHW", "NCHW"),
                                         precision=hp)
        return y + b[None, :, None, None]

    def pool(v):
        return jax.lax.reduce_window(v, -jnp.inf, jax.lax.max,
                                     (1, 1, 2, 2), (1, 1, 2, 2), "VALID")

    v = jnp.clip(jnp.floor(x * input_scale), -128.0, 127.0)
    v = pool(requant(conv(v, params["conv1_w"], params["conv1_b"]), mults[0], True))
    v = pool(requant(conv(v, params["conv3_w"], params["conv3_b"]), mults[1], True))
    v = requant(conv(v, params["conv5_w"], params["conv5_b"]), mults[2], True)
    v = v.reshape(v.shape[0], -1)
    v = requant(jnp.dot(v, params["fc6_w"].T, precision=hp) + params["fc6_b"], mults[3], True)
    v = requant(jnp.dot(v, params["out_w"].T, precision=hp) + params["out_b"], mults[4], False)
    return v


if __name__ == "__main__":
    key = jax.random.PRNGKey(0)
    kp, kx = jax.random.split(key)
    params = make_params(kp)
    input_scale, output_scales = make_scales()

    # LeNet-5 sized input: batch=2, 1 channel, 32x32, normalized pixels in [0, 1).
    x = jax.random.uniform(kx, (2, 1, 32, 32), dtype=jnp.float32)

    out = jax.block_until_ready(net_quantized_forward(x, params, input_scale, output_scales))
    ref = jax.block_until_ready(_reference_forward(x, params, input_scale, output_scales))

    assert out.shape == (2, 10)
    np.testing.assert_array_equal(np.asarray(out), np.asarray(ref))
    assert bool(jnp.all(out >= -128) and jnp.all(out <= 127))
    assert bool(jnp.all(out == jnp.round(out)))  # integer-valued logits
    print("KERNEL_OK")
</pallas_src>

<mosaic_0001>
module attributes {stable_mosaic.version = 11 : i64} {
  func.func @kernel(%arg0: i32, %arg1: memref<2x1x32x32xf32, #tpu.memory_space<vmem>>, %arg2: memref<160x168xbf16, #tpu.memory_space<vmem>>, %arg3: memref<1x168xf32, #tpu.memory_space<vmem>>, %arg4: memref<14x27xbf16, #tpu.memory_space<vmem>>, %arg5: memref<167x84xbf16, #tpu.memory_space<vmem>>, %arg6: memref<420x160xbf16, #tpu.memory_space<vmem>>, %arg7: memref<1x160xf32, #tpu.memory_space<vmem>>, %arg8: memref<5x9xbf16, #tpu.memory_space<vmem>>, %arg9: memref<159x80xbf16, #tpu.memory_space<vmem>>, %arg10: memref<5x80x128xbf16, #tpu.memory_space<vmem>>, %arg11: memref<1x128xf32, #tpu.memory_space<vmem>>, %arg12: memref<128x128xbf16, #tpu.memory_space<vmem>>, %arg13: memref<1x128xf32, #tpu.memory_space<vmem>>, %arg14: memref<128x128xbf16, #tpu.memory_space<vmem>>, %arg15: memref<1x128xf32, #tpu.memory_space<vmem>>, %arg16: memref<2x128xf32, #tpu.memory_space<vmem>>, %arg17: memref<2x28x160xf32, #tpu.memory_space<vmem>>, %arg18: memref<2x10x420xf32, #tpu.memory_space<vmem>>) attributes {dimension_semantics = [#tpu.dimension_semantics<arbitrary>], iteration_bounds = array<i64: 1>, scalar_prefetch = 0 : i64, scratch_operands = 2 : i64, tpu.core_type = #tpu.core_type<tc>, window_params = [{pipeline_mode = #tpu.pipeline_mode<synchronous>, transform_indices = @transform_0, window_bounds = array<i64: 2, 1, 32, 32>}, {pipeline_mode = #tpu.pipeline_mode<synchronous>, transform_indices = @transform_1, window_bounds = array<i64: 160, 168>}, {pipeline_mode = #tpu.pipeline_mode<synchronous>, transform_indices = @transform_2, window_bounds = array<i64: 1, 168>}, {pipeline_mode = #tpu.pipeline_mode<synchronous>, transform_indices = @transform_3, window_bounds = array<i64: 14, 27>}, {pipeline_mode = #tpu.pipeline_mode<synchronous>, transform_indices = @transform_4, window_bounds = array<i64: 167, 84>}, {pipeline_mode = #tpu.pipeline_mode<synchronous>, transform_indices = @transform_5, window_bounds = array<i64: 420, 160>}, {pipeline_mode = #tpu.pipeline_mode<synchronous>, transform_indices = @transform_6, window_bounds = array<i64: 1, 160>}, {pipeline_mode = #tpu.pipeline_mode<synchronous>, transform_indices = @transform_7, window_bounds = array<i64: 5, 9>}, {pipeline_mode = #tpu.pipeline_mode<synchronous>, transform_indices = @transform_8, window_bounds = array<i64: 159, 80>}, {pipeline_mode = #tpu.pipeline_mode<synchronous>, transform_indices = @transform_9, window_bounds = array<i64: 5, 80, 128>}, {pipeline_mode = #tpu.pipeline_mode<synchronous>, transform_indices = @transform_10, window_bounds = array<i64: 1, 128>}, {pipeline_mode = #tpu.pipeline_mode<synchronous>, transform_indices = @transform_11, window_bounds = array<i64: 128, 128>}, {pipeline_mode = #tpu.pipeline_mode<synchronous>, transform_indices = @transform_12, window_bounds = array<i64: 1, 128>}, {pipeline_mode = #tpu.pipeline_mode<synchronous>, transform_indices = @transform_13, window_bounds = array<i64: 128, 128>}, {pipeline_mode = #tpu.pipeline_mode<synchronous>, transform_indices = @transform_14, window_bounds = array<i64: 1, 128>}, {pipeline_mode = #tpu.pipeline_mode<synchronous>, transform_indices = @transform_15, window_bounds = array<i64: 2, 128>}]} {
    %c0 = arith.constant 0 : index
    %c0_0 = arith.constant 0 : index
    %c0_1 = arith.constant 0 : index
    %c0_2 = arith.constant 0 : index
    %0 = vector.load %arg1[%c0, %c0_0, %c0_1, %c0_2] : memref<2x1x32x32xf32, #tpu.memory_space<vmem>>, vector<2x1x32x32xf32>
    %1 = vector.shape_cast %0 : vector<2x1x32x32xf32> to vector<2x32x32xf32>
    %cst = arith.constant 1.275000e+02 : f32
    %2 = vector.broadcast %cst : f32 to vector<2x32x32xf32>
    %3 = arith.mulf %1, %2 : vector<2x32x32xf32>
    %4 = math.floor %3 : vector<2x32x32xf32>
    %cst_3 = arith.constant -1.280000e+02 : f32
    %cst_4 = arith.constant 1.270000e+02 : f32
    %5 = vector.broadcast %cst_3 : f32 to vector<2x32x32xf32>
    %6 = arith.maximumf %5, %4 : vector<2x32x32xf32>
    %7 = vector.broadcast %cst_4 : f32 to vector<2x32x32xf32>
    %8 = arith.minimumf %7, %6 : vector<2x32x32xf32>
    %9 = vector.extract_strided_slice %8 {offsets = [0, 0, 0], sizes = [2, 28, 32], strides = [1, 1, 1]} : vector<2x32x32xf32> to vector<2x28x32xf32>
    %c0_5 = arith.constant 0 : index
    %c0_6 = arith.constant 0 : index
    %c0_7 = arith.constant 0 : index
    %10 = vector.load %arg17[%c0_5, %c0_6, %c0_7] : memref<2x28x160xf32, #tpu.memory_space<vmem>>, vector<2x28x32xf32>
    tpu.vector_store %arg17[%c0_5, %c0_6, %c0_7], %9 {strides = array<i32>} : memref<2x28x160xf32, #tpu.memory_space<vmem>>, vector<2x28x32xf32>,
    %11 = vector.extract_strided_slice %8 {offsets = [0, 1, 0], sizes = [2, 28, 32], strides = [1, 1, 1]} : vector<2x32x32xf32> to vector<2x28x32xf32>
    %c0_8 = arith.constant 0 : index
    %c0_9 = arith.constant 0 : index
    %c32 = arith.constant 32 : index
    %12 = vector.load %arg17[%c0_8, %c0_9, %c32] : memref<2x28x160xf32, #tpu.memory_space<vmem>>, vector<2x28x32xf32>
    tpu.vector_store %arg17[%c0_8, %c0_9, %c32], %11 {strides = array<i32>} : memref<2x28x160xf32, #tpu.memory_space<vmem>>, vector<2x28x32xf32>,
    %13 = vector.extract_strided_slice %8 {offsets = [0, 2, 0], sizes = [2, 28, 32], strides = [1, 1, 1]} : vector<2x32x32xf32> to vector<2x28x32xf32>
    %c0_10 = arith.constant 0 : index
    %c0_11 = arith.constant 0 : index
    %c64 = arith.constant 64 : index
    %14 = vector.load %arg17[%c0_10, %c0_11, %c64] : memref<2x28x160xf32, #tpu.memory_space<vmem>>, vector<2x28x32xf32>
    tpu.vector_store %arg17[%c0_10, %c0_11, %c64], %13 {strides = array<i32>} : memref<2x28x160xf32, #tpu.memory_space<vmem>>, vector<2x28x32xf32>,
    %15 = vector.extract_strided_slice %8 {offsets = [0, 3, 0], sizes = [2, 28, 32], strides = [1, 1, 1]} : vector<2x32x32xf32> to vector<2x28x32xf32>
    %c0_12 = arith.constant 0 : index
    %c0_13 = arith.constant 0 : index
    %c96 = arith.constant 96 : index
    %16 = vector.load %arg17[%c0_12, %c0_13, %c96] : memref<2x28x160xf32, #tpu.memory_space<vmem>>, vector<2x28x32xf32>
    tpu.vector_store %arg17[%c0_12, %c0_13, %c96], %15 {strides = array<i32>} : memref<2x28x160xf32, #tpu.memory_space<vmem>>, vector<2x28x32xf32>,
    %17 = vector.extract_strided_slice %8 {offsets = [0, 4, 0], sizes = [2, 28, 32], strides = [1, 1, 1]} : vector<2x32x32xf32> to vector<2x28x32xf32>
    %c0_14 = arith.constant 0 : index
    %c0_15 = arith.constant 0 : index
    %c128 = arith.constant 128 : index
    %18 = vector.load %arg17[%c0_14, %c0_15, %c128] : memref<2x28x160xf32, #tpu.memory_space<vmem>>, vector<2x28x32xf32>
    tpu.vector_store %arg17[%c0_14, %c0_15, %c128], %17 {strides = array<i32>} : memref<2x28x160xf32, #tpu.memory_space<vmem>>, vector<2x28x32xf32>,
    %c0_16 = arith.constant 0 : index
    %c0_17 = arith.constant 0 : index
    %19 = vector.load %arg2[%c0_16, %c0_17] : memref<160x168xbf16, #tpu.memory_space<vmem>>, vector<160x168xbf16>
    %c0_18 = arith.constant 0 : index
    %c0_19 = arith.constant 0 : index
    %20 = vector.load %arg3[%c0_18, %c0_19] : memref<1x168xf32, #tpu.memory_space<vmem>>, vector<1x168xf32>
    %c0_20 = arith.constant 0 : index
    %c0_21 = arith.constant 0 : index
    %21 = vector.load %arg4[%c0_20, %c0_21] : memref<14x27xbf16, #tpu.memory_space<vmem>>, vector<14x27xbf16>
    %c0_22 = arith.constant 0 : index
    %c0_23 = arith.constant 0 : index
    %22 = vector.load %arg5[%c0_22, %c0_23] : memref<167x84xbf16, #tpu.memory_space<vmem>>, vector<167x84xbf16>
    %c0_24 = arith.constant 0 : index
    %c0_25 = arith.constant 0 : index
    %23 = vector.load %arg6[%c0_24, %c0_25] : memref<420x160xbf16, #tpu.memory_space<vmem>>, vector<420x160xbf16>
    %c0_26 = arith.constant 0 : index
    %c0_27 = arith.constant 0 : index
    %24 = vector.load %arg7[%c0_26, %c0_27] : memref<1x160xf32, #tpu.memory_space<vmem>>, vector<1x160xf32>
    %c0_28 = arith.constant 0 : index
    %c0_29 = arith.constant 0 : index
    %25 = vector.load %arg8[%c0_28, %c0_29] : memref<5x9xbf16, #tpu.memory_space<vmem>>, vector<5x9xbf16>
    %c0_30 = arith.constant 0 : index
    %c0_31 = arith.constant 0 : index
    %26 = vector.load %arg9[%c0_30, %c0_31] : memref<159x80xbf16, #tpu.memory_space<vmem>>, vector<159x80xbf16>
    %c0_32 = arith.constant 0 : index
    %c0_33 = arith.constant 0 : index
    %c0_34 = arith.constant 0 : index
    %27 = vector.load %arg10[%c0_32, %c0_33, %c0_34] : memref<5x80x128xbf16, #tpu.memory_space<vmem>>, vector<1x80x128xbf16>
    %28 = vector.shape_cast %27 : vector<1x80x128xbf16> to vector<80x128xbf16>
    %c1 = arith.constant 1 : index
    %c0_35 = arith.constant 0 : index
    %c0_36 = arith.constant 0 : index
    %29 = vector.load %arg10[%c1, %c0_35, %c0_36] : memref<5x80x128xbf16, #tpu.memory_space<vmem>>, vector<1x80x128xbf16>
    %30 = vector.shape_cast %29 : vector<1x80x128xbf16> to vector<80x128xbf16>
    %c2 = arith.constant 2 : index
    %c0_37 = arith.constant 0 : index
    %c0_38 = arith.constant 0 : index
    %31 = vector.load %arg10[%c2, %c0_37, %c0_38] : memref<5x80x128xbf16, #tpu.memory_space<vmem>>, vector<1x80x128xbf16>
    %32 = vector.shape_cast %31 : vector<1x80x128xbf16> to vector<80x128xbf16>
    %c3 = arith.constant 3 : index
    %c0_39 = arith.constant 0 : index
    %c0_40 = arith.constant 0 : index
    %33 = vector.load %arg10[%c3, %c0_39, %c0_40] : memref<5x80x128xbf16, #tpu.memory_space<vmem>>, vector<1x80x128xbf16>
    %34 = vector.shape_cast %33 : vector<1x80x128xbf16> to vector<80x128xbf16>
    %c4 = arith.constant 4 : index
    %c0_41 = arith.constant 0 : index
    %c0_42 = arith.constant 0 : index
    %35 = vector.load %arg10[%c4, %c0_41, %c0_42] : memref<5x80x128xbf16, #tpu.memory_space<vmem>>, vector<1x80x128xbf16>
    %36 = vector.shape_cast %35 : vector<1x80x128xbf16> to vector<80x128xbf16>
    %c0_43 = arith.constant 0 : index
    %c0_44 = arith.constant 0 : index
    %37 = vector.load %arg11[%c0_43, %c0_44] : memref<1x128xf32, #tpu.memory_space<vmem>>, vector<1x128xf32>
    %c0_45 = arith.constant 0 : index
    %c0_46 = arith.constant 0 : index
    %38 = vector.load %arg12[%c0_45, %c0_46] : memref<128x128xbf16, #tpu.memory_space<vmem>>, vector<128x128xbf16>
    %c0_47 = arith.constant 0 : index
    %c0_48 = arith.constant 0 : index
    %39 = vector.load %arg13[%c0_47, %c0_48] : memref<1x128xf32, #tpu.memory_space<vmem>>, vector<1x128xf32>
    %c0_49 = arith.constant 0 : index
    %c0_50 = arith.constant 0 : index
    %40 = vector.load %arg14[%c0_49, %c0_50] : memref<128x128xbf16, #tpu.memory_space<vmem>>, vector<128x128xbf16>
    %c0_51 = arith.constant 0 : index
    %c0_52 = arith.constant 0 : index
    %41 = vector.load %arg15[%c0_51, %c0_52] : memref<1x128xf32, #tpu.memory_space<vmem>>, vector<1x128xf32>
    %c0_53 = arith.constant 0 : index
    %c0_54 = arith.constant 0 : index
    %c0_55 = arith.constant 0 : index
    %42 = vector.load %arg17[%c0_53, %c0_54, %c0_55] : memref<2x28x160xf32, #tpu.memory_space<vmem>>, vector<1x28x160xf32>
    %43 = vector.shape_cast %42 : vector<1x28x160xf32> to vector<28x160xf32>
    %44 = arith.truncf %43 : vector<28x160xf32> to vector<28x160xbf16>
    %cst_56 = arith.constant dense<0.000000e+00> : vector<28x168xf32>
    %45 = tpu.matmul %44, %19, %cst_56 {dimension_numbers = #tpu.dot_dimension_numbers<[1], [0], [0], [1], [0, 0, 1, 1], [], []>} : vector<28x160xbf16>, vector<160x168xbf16>, vector<28x168xf32> -> vector<28x168xf32>
    %46 = vector.broadcast %20 : vector<1x168xf32> to vector<28x168xf32>
    %47 = arith.addf %45, %46 : vector<28x168xf32>
    %cst_57 = arith.constant 0.000000e+00 : f32
    %48 = vector.broadcast %cst_57 : f32 to vector<28x168xf32>
    %49 = arith.maximumf %47, %48 : vector<28x168xf32>
    %cst_58 = arith.constant 2.66667175 : f32
    %50 = vector.broadcast %cst_58 : f32 to vector<28x168xf32>
    %51 = arith.mulf %49, %50 : vector<28x168xf32>
    %52 = math.floor %51 : vector<28x168xf32>
    %cst_59 = arith.constant -1.280000e+02 : f32
    %cst_60 = arith.constant 1.270000e+02 : f32
    %53 = vector.broadcast %cst_59 : f32 to vector<28x168xf32>
    %54 = arith.maximumf %53, %52 : vector<28x168xf32>
    %55 = vector.broadcast %cst_60 : f32 to vector<28x168xf32>
    %56 = arith.minimumf %55, %54 : vector<28x168xf32>
    %57 = vector.extract_strided_slice %56 {offsets = [0, 0], sizes = [27, 167], strides = [1, 1]} : vector<28x168xf32> to vector<27x167xf32>
    %58 = vector.extract_strided_slice %56 {offsets = [0, 1], sizes = [27, 167], strides = [1, 1]} : vector<28x168xf32> to vector<27x167xf32>
    %59 = arith.maximumf %57, %58 : vector<27x167xf32>
    %60 = vector.extract_strided_slice %56 {offsets = [1, 0], sizes = [27, 167], strides = [1, 1]} : vector<28x168xf32> to vector<27x167xf32>
    %61 = vector.extract_strided_slice %56 {offsets = [1, 1], sizes = [27, 167], strides = [1, 1]} : vector<28x168xf32> to vector<27x167xf32>
    %62 = arith.maximumf %60, %61 : vector<27x167xf32>
    %63 = arith.maximumf %59, %62 : vector<27x167xf32>
    %64 = arith.truncf %63 : vector<27x167xf32> to vector<27x167xbf16>
    %cst_61 = arith.constant dense<0.000000e+00> : vector<14x167xf32>
    %65 = tpu.matmul %21, %64, %cst_61 {dimension_numbers = #tpu.dot_dimension_numbers<[1], [0], [0], [1], [0, 0, 1, 1], [], []>} : vector<14x27xbf16>, vector<27x167xbf16>, vector<14x167xf32> -> vector<14x167xf32>
    %66 = arith.truncf %65 : vector<14x167xf32> to vector<14x167xbf16>
    %cst_62 = arith.constant dense<0.000000e+00> : vector<14x84xf32>
    %67 = tpu.matmul %66, %22, %cst_62 {dimension_numbers = #tpu.dot_dimension_numbers<[1], [0], [0], [1], [0, 0, 1, 1], [], []>} : vector<14x167xbf16>, vector<167x84xbf16>, vector<14x84xf32> -> vector<14x84xf32>
    %68 = vector.extract_strided_slice %67 {offsets = [0, 0], sizes = [10, 14], strides = [1, 1]} : vector<14x84xf32> to vector<10x14xf32>
    %c0_63 = arith.constant 0 : index
    %c0_64 = arith.constant 0 : index
    %c0_65 = arith.constant 0 : index
    %69 = vector.load %arg18[%c0_63, %c0_64, %c0_65] : memref<2x10x420xf32, #tpu.memory_space<vmem>>, vector<1x10x14xf32>
    %70 = vector.shape_cast %69 : vector<1x10x14xf32> to vector<10x14xf32>
    %71 = vector.shape_cast %68 : vector<10x14xf32> to vector<1x10x14xf32>
    tpu.vector_store %arg18[%c0_63, %c0_64, %c0_65], %71 {strides = array<i32>} : memref<2x10x420xf32, #tpu.memory_space<vmem>>, vector<1x10x14xf32>,
    %72 = vector.extract_strided_slice %67 {offsets = [1, 0], sizes = [10, 14], strides = [1, 1]} : vector<14x84xf32> to vector<10x14xf32>
    %c0_66 = arith.constant 0 : index
    %c0_67 = arith.constant 0 : index
    %c14 = arith.constant 14 : index
    %73 = vector.load %arg18[%c0_66, %c0_67, %c14] : memref<2x10x420xf32, #tpu.memory_space<vmem>>, vector<1x10x14xf32>
    %74 = vector.shape_cast %73 : vector<1x10x14xf32> to vector<10x14xf32>
    %75 = vector.shape_cast %72 : vector<10x14xf32> to vector<1x10x14xf32>
    tpu.vector_store %arg18[%c0_66, %c0_67, %c14], %75 {strides = array<i32>} : memref<2x10x420xf32, #tpu.memory_space<vmem>>, vector<1x10x14xf32>,
    %76 = vector.extract_strided_slice %67 {offsets = [2, 0], sizes = [10, 14], strides = [1, 1]} : vector<14x84xf32> to vector<10x14xf32>
    %c0_68 = arith.constant 0 : index
    %c0_69 = arith.constant 0 : index
    %c28 = arith.constant 28 : index
    %77 = vector.load %arg18[%c0_68, %c0_69, %c28] : memref<2x10x420xf32, #tpu.memory_space<vmem>>, vector<1x10x14xf32>
    %78 = vector.shape_cast %77 : vector<1x10x14xf32> to vector<10x14xf32>
    %79 = vector.shape_cast %76 : vector<10x14xf32> to vector<1x10x14xf32>
    tpu.vector_store %arg18[%c0_68, %c0_69, %c28], %79 {strides = array<i32>} : memref<2x10x420xf32, #tpu.memory_space<vmem>>, vector<1x10x14xf32>,
    %80 = vector.extract_strided_slice %67 {offsets = [3, 0], sizes = [10, 14], strides = [1, 1]} : vector<14x84xf32> to vector<10x14xf32>
    %c0_70 = arith.constant 0 : index
    %c0_71 = arith.constant 0 : index
    %c42 = arith.constant 42 : index
    %81 = vector.load %arg18[%c0_70, %c0_71, %c42] : memref<2x10x420xf32, #tpu.memory_space<vmem>>, vector<1x10x14xf32>
    %82 = vector.shape_cast %81 : vector<1x10x14xf32> to vector<10x14xf32>
    %83 = vector.shape_cast %80 : vector<10x14xf32> to vector<1x10x14xf32>
    tpu.vector_store %arg18[%c0_70, %c0_71, %c42], %83 {strides = array<i32>} : memref<2x10x420xf32, #tpu.memory_space<vmem>>, vector<1x10x14xf32>,
    %84 = vector.extract_strided_slice %67 {offsets = [4, 0], sizes = [10, 14], strides = [1, 1]} : vector<14x84xf32> to vector<10x14xf32>
    %c0_72 = arith.constant 0 : index
    %c0_73 = arith.constant 0 : index
    %c56 = arith.constant 56 : index
    %85 = vector.load %arg18[%c0_72, %c0_73, %c56] : memref<2x10x420xf32, #tpu.memory_space<vmem>>, vector<1x10x14xf32>
    %86 = vector.shape_cast %85 : vector<1x10x14xf32> to vector<10x14xf32>
    %87 = vector.shape_cast %84 : vector<10x14xf32> to vector<1x10x14xf32>
    tpu.vector_store %arg18[%c0_72, %c0_73, %c56], %87 {strides = array<i32>} : memref<2x10x420xf32, #tpu.memory_space<vmem>>, vector<1x10x14xf32>,
    %88 = vector.extract_strided_slice %67 {offsets = [0, 14], sizes = [10, 14], strides = [1, 1]} : vector<14x84xf32> to vector<10x14xf32>
    %c0_74 = arith.constant 0 : index
    %c0_75 = arith.constant 0 : index
    %c70 = arith.constant 70 : index
    %89 = vector.load %arg18[%c0_74, %c0_75, %c70] : memref<2x10x420xf32, #tpu.memory_space<vmem>>, vector<1x10x14xf32>
    %90 = vector.shape_cast %89 : vector<1x10x14xf32> to vector<10x14xf32>
    %91 = vector.shape_cast %88 : vector<10x14xf32> to vector<1x10x14xf32>
    tpu.vector_store %arg18[%c0_74, %c0_75, %c70], %91 {strides = array<i32>} : memref<2x10x420xf32, #tpu.memory_space<vmem>>, vector<1x10x14xf32>,
    %92 = vector.extract_strided_slice %67 {offsets = [1, 14], sizes = [10, 14], strides = [1, 1]} : vector<14x84xf32> to vector<10x14xf32>
    %c0_76 = arith.constant 0 : index
    %c0_77 = arith.constant 0 : index
    %c84 = arith.constant 84 : index
    %93 = vector.load %arg18[%c0_76, %c0_77, %c84] : memref<2x10x420xf32, #tpu.memory_space<vmem>>, vector<1x10x14xf32>
    %94 = vector.shape_cast %93 : vector<1x10x14xf32> to vector<10x14xf32>
    %95 = vector.shape_cast %92 : vector<10x14xf32> to vector<1x10x14xf32>
    tpu.vector_store %arg18[%c0_76, %c0_77, %c84], %95 {strides = array<i32>} : memref<2x10x420xf32, #tpu.memory_space<vmem>>, vector<1x10x14xf32>,
    %96 = vector.extract_strided_slice %67 {offsets = [2, 14], sizes = [10, 14], strides = [1, 1]} : vector<14x84xf32> to vector<10x14xf32>
    %c0_78 = arith.constant 0 : index
    %c0_79 = arith.constant 0 : index
    %c98 = arith.constant 98 : index
    %97 = vector.load %arg18[%c0_78, %c0_79, %c98] : memref<2x10x420xf32, #tpu.memory_space<vmem>>, vector<1x10x14xf32>
    %98 = vector.shape_cast %97 : vector<1x10x14xf32> to vector<10x14xf32>
    %99 = vector.shape_cast %96 : vector<10x14xf32> to vector<1x10x14xf32>
    tpu.vector_store %arg18[%c0_78, %c0_79, %c98], %99 {strides = array<i32>} : memref<2x10x420xf32, #tpu.memory_space<vmem>>, vector<1x10x14xf32>,
    %100 = vector.extract_strided_slice %67 {offsets = [3, 14], sizes = [10, 14], strides = [1, 1]} : vector<14x84xf32> to vector<10x14xf32>
    %c0_80 = arith.constant 0 : index
    %c0_81 = arith.constant 0 : index
    %c112 = arith.constant 112 : index
    %101 = vector.load %arg18[%c0_80, %c0_81, %c112] : memref<2x10x420xf32, #tpu.memory_space<vmem>>, vector<1x10x14xf32>
    %102 = vector.shape_cast %101 : vector<1x10x14xf32> to vector<10x14xf32>
    %103 = vector.shape_cast %100 : vector<10x14xf32> to vector<1x10x14xf32>
    tpu.vector_store %arg18[%c0_80, %c0_81, %c112], %103 {strides = array<i32>} : memref<2x10x420xf32, #tpu.memory_space<vmem>>, vector<1x10x14xf32>,
    %104 = vector.extract_strided_slice %67 {offsets = [4, 14], sizes = [10, 14], strides = [1, 1]} : vector<14x84xf32> to vector<10x14xf32>
    %c0_82 = arith.constant 0 : index
    %c0_83 = arith.constant 0 : index
    %c126 = arith.constant 126 : index
    %105 = vector.load %arg18[%c0_82, %c0_83, %c126] : memref<2x10x420xf32, #tpu.memory_space<vmem>>, vector<1x10x14xf32>
    %106 = vector.shape_cast %105 : vector<1x10x14xf32> to vector<10x14xf32>
    %107 = vector.shape_cast %104 : vector<10x14xf32> to vector<1x10x14xf32>
    tpu.vector_store %arg18[%c0_82, %c0_83, %c126], %107 {strides = array<i32>} : memref<2x10x420xf32, #tpu.memory_space<vmem>>, vector<1x10x14xf32>,
    %108 = vector.extract_strided_slice %67 {offsets = [0, 28], sizes = [10, 14], strides = [1, 1]} : vector<14x84xf32> to vector<10x14xf32>
    %c0_84 = arith.constant 0 : index
    %c0_85 = arith.constant 0 : index
    %c140 = arith.constant 140 : index
    %109 = vector.load %arg18[%c0_84, %c0_85, %c140] : memref<2x10x420xf32, #tpu.memory_space<vmem>>, vector<1x10x14xf32>
    %110 = vector.shape_cast %109 : vector<1x10x14xf32> to vector<10x14xf32>
    %111 = vector.shape_cast %108 : vector<10x14xf32> to vector<1x10x14xf32>
    tpu.vector_store %arg18[%c0_84, %c0_85, %c140], %111 {strides = array<i32>} : memref<2x10x420xf32, #tpu.memory_space<vmem>>, vector<1x10x14xf32>,
    %112 = vector.extract_strided_slice %67 {offsets = [1, 28], sizes = [10, 14], strides = [1, 1]} : vector<14x84xf32> to vector<10x14xf32>
    %c0_86 = arith.constant 0 : index
    %c0_87 = arith.constant 0 : index
    %c154 = arith.constant 154 : index
    %113 = vector.load %arg18[%c0_86, %c0_87, %c154] : memref<2x10x420xf32, #tpu.memory_space<vmem>>, vector<1x10x14xf32>
    %114 = vector.shape_cast %113 : vector<1x10x14xf32> to vector<10x14xf32>
    %115 = vector.shape_cast %112 : vector<10x14xf32> to vector<1x10x14xf32>
    tpu.vector_store %arg18[%c0_86, %c0_87, %c154], %115 {strides = array<i32>} : memref<2x10x420xf32, #tpu.memory_space<vmem>>, vector<1x10x14xf32>,
    %116 = vector.extract_strided_slice %67 {offsets = [2, 28], sizes = [10, 14], strides = [1, 1]} : vector<14x84xf32> to vector<10x14xf32>
    %c0_88 = arith.constant 0 : index
    %c0_89 = arith.constant 0 : index
    %c168 = arith.constant 168 : index
    %117 = vector.load %arg18[%c0_88, %c0_89, %c168] : memref<2x10x420xf32, #tpu.memory_space<vmem>>, vector<1x10x14xf32>
    %118 = vector.shape_cast %117 : vector<1x10x14xf32> to vector<10x14xf32>
    %119 = vector.shape_cast %116 : vector<10x14xf32> to vector<1x10x14xf32>
    tpu.vector_store %arg18[%c0_88, %c0_89, %c168], %119 {strides = array<i32>} : memref<2x10x420xf32, #tpu.memory_space<vmem>>, vector<1x10x14xf32>,
    %120 = vector.extract_strided_slice %67 {offsets = [3, 28], sizes = [10, 14], strides = [1, 1]} : vector<14x84xf32> to vector<10x14xf32>
    %c0_90 = arith.constant 0 : index
    %c0_91 = arith.constant 0 : index
    %c182 = arith.constant 182 : index
    %121 = vector.load %arg18[%c0_90, %c0_91, %c182] : memref<2x10x420xf32, #tpu.memory_space<vmem>>, vector<1x10x14xf32>
    %122 = vector.shape_cast %121 : vector<1x10x14xf32> to vector<10x14xf32>
    %123 = vector.shape_cast %120 : vector<10x14xf32> to vector<1x10x14xf32>
    tpu.vector_store %arg18[%c0_90, %c0_91, %c182], %123 {strides = array<i32>} : memref<2x10x420xf32, #tpu.memory_space<vmem>>, vector<1x10x14xf32>,
    %124 = vector.extract_strided_slice %67 {offsets = [4, 28], sizes = [10, 14], strides = [1, 1]} : vector<14x84xf32> to vector<10x14xf32>
    %c0_92 = arith.constant 0 : index
    %c0_93 = arith.constant 0 : index
    %c196 = arith.constant 196 : index
    %125 = vector.load %arg18[%c0_92, %c0_93, %c196] : memref<2x10x420xf32, #tpu.memory_space<vmem>>, vector<1x10x14xf32>
    %126 = vector.shape_cast %125 : vector<1x10x14xf32> to vector<10x14xf32>
    %127 = vector.shape_cast %124 : vector<10x14xf32> to vector<1x10x14xf32>
    tpu.vector_store %arg18[%c0_92, %c0_93, %c196], %127 {strides = array<i32>} : memref<2x10x420xf32, #tpu.memory_space<vmem>>, vector<1x10x14xf32>,
    %128 = vector.extract_strided_slice %67 {offsets = [0, 42], sizes = [10, 14], strides = [1, 1]} : vector<14x84xf32> to vector<10x14xf32>
    %c0_94 = arith.constant 0 : index
    %c0_95 = arith.constant 0 : index
    %c210 = arith.constant 210 : index
    %129 = vector.load %arg18[%c0_94, %c0_95, %c210] : memref<2x10x420xf32, #tpu.memory_space<vmem>>, vector<1x10x14xf32>
    %130 = vector.shape_cast %129 : vector<1x10x14xf32> to vector<10x14xf32>
    %131 = vector.shape_cast %128 : vector<10x14xf32> to vector<1x10x14xf32>
    tpu.vector_store %arg18[%c0_94, %c0_95, %c210], %131 {strides = array<i32>} : memref<2x10x420xf32, #tpu.memory_space<vmem>>, vector<1x10x14xf32>,
    %132 = vector.extract_strided_slice %67 {offsets = [1, 42], sizes = [10, 14], strides = [1, 1]} : vector<14x84xf32> to vector<10x14xf32>
    %c0_96 = arith.constant 0 : index
    %c0_97 = arith.constant 0 : index
    %c224 = arith.constant 224 : index
    %133 = vector.load %arg18[%c0_96, %c0_97, %c224] : memref<2x10x420xf32, #tpu.memory_space<vmem>>, vector<1x10x14xf32>
    %134 = vector.shape_cast %133 : vector<1x10x14xf32> to vector<10x14xf32>
    %135 = vector.shape_cast %132 : vector<10x14xf32> to vector<1x10x14xf32>
    tpu.vector_store %arg18[%c0_96, %c0_97, %c224], %135 {strides = array<i32>} : memref<2x10x420xf32, #tpu.memory_space<vmem>>, vector<1x10x14xf32>,
    %136 = vector.extract_strided_slice %67 {offsets = [2, 42], sizes = [10, 14], strides = [1, 1]} : vector<14x84xf32> to vector<10x14xf32>
    %c0_98 = arith.constant 0 : index
    %c0_99 = arith.constant 0 : index
    %c238 = arith.constant 238 : index
    %137 = vector.load %arg18[%c0_98, %c0_99, %c238] : memref<2x10x420xf32, #tpu.memory_space<vmem>>, vector<1x10x14xf32>
    %138 = vector.shape_cast %137 : vector<1x10x14xf32> to vector<10x14xf32>
    %139 = vector.shape_cast %136 : vector<10x14xf32> to vector<1x10x14xf32>
    tpu.vector_store %arg18[%c0_98, %c0_99, %c238], %139 {strides = array<i32>} : memref<2x10x420xf32, #tpu.memory_space<vmem>>, vector<1x10x14xf32>,
    %140 = vector.extract_strided_slice %67 {offsets = [3, 42], sizes = [10, 14], strides = [1, 1]} : vector<14x84xf32> to vector<10x14xf32>
    %c0_100 = arith.constant 0 : index
    %c0_101 = arith.constant 0 : index
    %c252 = arith.constant 252 : index
    %141 = vector.load %arg18[%c0_100, %c0_101, %c252] : memref<2x10x420xf32, #tpu.memory_space<vmem>>, vector<1x10x14xf32>
    %142 = vector.shape_cast %141 : vector<1x10x14xf32> to vector<10x14xf32>
    %143 = vector.shape_cast %140 : vector<10x14xf32> to vector<1x10x14xf32>
    tpu.vector_store %arg18[%c0_100, %c0_101, %c252], %143 {strides = array<i32>} : memref<2x10x420xf32, #tpu.memory_space<vmem>>, vector<1x10x14xf32>,
    %144 = vector.extract_strided_slice %67 {offsets = [4, 42], sizes = [10, 14], strides = [1, 1]} : vector<14x84xf32> to vector<10x14xf32>
    %c0_102 = arith.constant 0 : index
    %c0_103 = arith.constant 0 : index
    %c266 = arith.constant 266 : index
    %145 = vector.load %arg18[%c0_102, %c0_103, %c266] : memref<2x10x420xf32, #tpu.memory_space<vmem>>, vector<1x10x14xf32>
    %146 = vector.shape_cast %145 : vector<1x10x14xf32> to vector<10x14xf32>
    %147 = vector.shape_cast %144 : vector<10x14xf32> to vector<1x10x14xf32>
    tpu.vector_store %arg18[%c0_102, %c0_103, %c266], %147 {strides = array<i32>} : memref<2x10x420xf32, #tpu.memory_space<vmem>>, vector<1x10x14xf32>,
    %148 = vector.extract_strided_slice %67 {offsets = [0, 56], sizes = [10, 14], strides = [1, 1]} : vector<14x84xf32> to vector<10x14xf32>
    %c0_104 = arith.constant 0 : index
    %c0_105 = arith.constant 0 : index
    %c280 = arith.constant 280 : index
    %149 = vector.load %arg18[%c0_104, %c0_105, %c280] : memref<2x10x420xf32, #tpu.memory_space<vmem>>, vector<1x10x14xf32>
    %150 = vector.shape_cast %149 : vector<1x10x14xf32> to vector<10x14xf32>
    %151 = vector.shape_cast %148 : vector<10x14xf32> to vector<1x10x14xf32>
    tpu.vector_store %arg18[%c0_104, %c0_105, %c280], %151 {strides = array<i32>} : memref<2x10x420xf32, #tpu.memory_space<vmem>>, vector<1x10x14xf32>,
    %152 = vector.extract_strided_slice %67 {offsets = [1, 56], sizes = [10, 14], strides = [1, 1]} : vector<14x84xf32> to vector<10x14xf32>
    %c0_106 = arith.constant 0 : index
    %c0_107 = arith.constant 0 : index
    %c294 = arith.constant 294 : index
    %153 = vector.load %arg18[%c0_106, %c0_107, %c294] : memref<2x10x420xf32, #tpu.memory_space<vmem>>, vector<1x10x14xf32>
    %154 = vector.shape_cast %153 : vector<1x10x14xf32> to vector<10x14xf32>
    %155 = vector.shape_cast %152 : vector<10x14xf32> to vector<1x10x14xf32>
    tpu.vector_store %arg18[%c0_106, %c0_107, %c294], %155 {strides = array<i32>} : memref<2x10x420xf32, #tpu.memory_space<vmem>>, vector<1x10x14xf32>,
    %156 = vector.extract_strided_slice %67 {offsets = [2, 56], sizes = [10, 14], strides = [1, 1]} : vector<14x84xf32> to vector<10x14xf32>
    %c0_108 = arith.constant 0 : index
    %c0_109 = arith.constant 0 : index
    %c308 = arith.constant 308 : index
    %157 = vector.load %arg18[%c0_108, %c0_109, %c308] : memref<2x10x420xf32, #tpu.memory_space<vmem>>, vector<1x10x14xf32>
    %158 = vector.shape_cast %157 : vector<1x10x14xf32> to vector<10x14xf32>
    %159 = vector.shape_cast %156 : vector<10x14xf32> to vector<1x10x14xf32>
    tpu.vector_store %arg18[%c0_108, %c0_109, %c308], %159 {strides = array<i32>} : memref<2x10x420xf32, #tpu.memory_space<vmem>>, vector<1x10x14xf32>,
    %160 = vector.extract_strided_slice %67 {offsets = [3, 56], sizes = [10, 14], strides = [1, 1]} : vector<14x84xf32> to vector<10x14xf32>
    %c0_110 = arith.constant 0 : index
    %c0_111 = arith.constant 0 : index
    %c322 = arith.constant 322 : index
    %161 = vector.load %arg18[%c0_110, %c0_111, %c322] : memref<2x10x420xf32, #tpu.memory_space<vmem>>, vector<1x10x14xf32>
    %162 = vector.shape_cast %161 : vector<1x10x14xf32> to vector<10x14xf32>
    %163 = vector.shape_cast %160 : vector<10x14xf32> to vector<1x10x14xf32>
    tpu.vector_store %arg18[%c0_110, %c0_111, %c322], %163 {strides = array<i32>} : memref<2x10x420xf32, #tpu.memory_space<vmem>>, vector<1x10x14xf32>,
    %164 = vector.extract_strided_slice %67 {offsets = [4, 56], sizes = [10, 14], strides = [1, 1]} : vector<14x84xf32> to vector<10x14xf32>
    %c0_112 = arith.constant 0 : index
    %c0_113 = arith.constant 0 : index
    %c336 = arith.constant 336 : index
    %165 = vector.load %arg18[%c0_112, %c0_113, %c336] : memref<2x10x420xf32, #tpu.memory_space<vmem>>, vector<1x10x14xf32>
    %166 = vector.shape_cast %165 : vector<1x10x14xf32> to vector<10x14xf32>
    %167 = vector.shape_cast %164 : vector<10x14xf32> to vector<1x10x14xf32>
    tpu.vector_store %arg18[%c0_112, %c0_113, %c336], %167 {strides = array<i32>} : memref<2x10x420xf32, #tpu.memory_space<vmem>>, vector<1x10x14xf32>,
    %168 = vector.extract_strided_slice %67 {offsets = [0, 70], sizes = [10, 14], strides = [1, 1]} : vector<14x84xf32> to vector<10x14xf32>
    %c0_114 = arith.constant 0 : index
    %c0_115 = arith.constant 0 : index
    %c350 = arith.constant 350 : index
    %169 = vector.load %arg18[%c0_114, %c0_115, %c350] : memref<2x10x420xf32, #tpu.memory_space<vmem>>, vector<1x10x14xf32>
    %170 = vector.shape_cast %169 : vector<1x10x14xf32> to vector<10x14xf32>
    %171 = vector.shape_cast %168 : vector<10x14xf32> to vector<1x10x14xf32>
    tpu.vector_store %arg18[%c0_114, %c0_115, %c350], %171 {strides = array<i32>} : memref<2x10x420xf32, #tpu.memory_space<vmem>>, vector<1x10x14xf32>,
    %172 = vector.extract_strided_slice %67 {offsets = [1, 70], sizes = [10, 14], strides = [1, 1]} : vector<14x84xf32> to vector<10x14xf32>
    %c0_116 = arith.constant 0 : index
    %c0_117 = arith.constant 0 : index
    %c364 = arith.constant 364 : index
    %173 = vector.load %arg18[%c0_116, %c0_117, %c364] : memref<2x10x420xf32, #tpu.memory_space<vmem>>, vector<1x10x14xf32>
    %174 = vector.shape_cast %173 : vector<1x10x14xf32> to vector<10x14xf32>
    %175 = vector.shape_cast %172 : vector<10x14xf32> to vector<1x10x14xf32>
    tpu.vector_store %arg18[%c0_116, %c0_117, %c364], %175 {strides = array<i32>} : memref<2x10x420xf32, #tpu.memory_space<vmem>>, vector<1x10x14xf32>,
    %176 = vector.extract_strided_slice %67 {offsets = [2, 70], sizes = [10, 14], strides = [1, 1]} : vector<14x84xf32> to vector<10x14xf32>
    %c0_118 = arith.constant 0 : index
    %c0_119 = arith.constant 0 : index
    %c378 = arith.constant 378 : index
    %177 = vector.load %arg18[%c0_118, %c0_119, %c378] : memref<2x10x420xf32, #tpu.memory_space<vmem>>, vector<1x10x14xf32>
    %178 = vector.shape_cast %177 : vector<1x10x14xf32> to vector<10x14xf32>
    %179 = vector.shape_cast %176 : vector<10x14xf32> to vector<1x10x14xf32>
    tpu.vector_store %arg18[%c0_118, %c0_119, %c378], %179 {strides = array<i32>} : memref<2x10x420xf32, #tpu.memory_space<vmem>>, vector<1x10x14xf32>,
    %180 = vector.extract_strided_slice %67 {offsets = [3, 70], sizes = [10, 14], strides = [1, 1]} : vector<14x84xf32> to vector<10x14xf32>
    %c0_120 = arith.constant 0 : index
    %c0_121 = arith.constant 0 : index
    %c392 = arith.constant 392 : index
    %181 = vector.load %arg18[%c0_120, %c0_121, %c392] : memref<2x10x420xf32, #tpu.memory_space<vmem>>, vector<1x10x14xf32>
    %182 = vector.shape_cast %181 : vector<1x10x14xf32> to vector<10x14xf32>
    %183 = vector.shape_cast %180 : vector<10x14xf32> to vector<1x10x14xf32>
    tpu.vector_store %arg18[%c0_120, %c0_121, %c392], %183 {strides = array<i32>} : memref<2x10x420xf32, #tpu.memory_space<vmem>>, vector<1x10x14xf32>,
    %184 = vector.extract_strided_slice %67 {offsets = [4, 70], sizes = [10, 14], strides = [1, 1]} : vector<14x84xf32> to vector<10x14xf32>
    %c0_122 = arith.constant 0 : index
    %c0_123 = arith.constant 0 : index
    %c406 = arith.constant 406 : index
    %185 = vector.load %arg18[%c0_122, %c0_123, %c406] : memref<2x10x420xf32, #tpu.memory_space<vmem>>, vector<1x10x14xf32>
    %186 = vector.shape_cast %185 : vector<1x10x14xf32> to vector<10x14xf32>
    %187 = vector.shape_cast %184 : vector<10x14xf32> to vector<1x10x14xf32>
    tpu.vector_store %arg18[%c0_122, %c0_123, %c406], %187 {strides = array<i32>} : memref<2x10x420xf32, #tpu.memory_space<vmem>>, vector<1x10x14xf32>,
    %c0_124 = arith.constant 0 : index
    %c0_125 = arith.constant 0 : index
    %c0_126 = arith.constant 0 : index
    %188 = vector.load %arg18[%c0_124, %c0_125, %c0_126] : memref<2x10x420xf32, #tpu.memory_space<vmem>>, vector<1x10x420xf32>
    %189 = vector.shape_cast %188 : vector<1x10x420xf32> to vector<10x420xf32>
    %190 = arith.truncf %189 : vector<10x420xf32> to vector<10x420xbf16>
    %cst_127 = arith.constant dense<0.000000e+00> : vector<10x160xf32>
    %191 = tpu.matmul %190, %23, %cst_127 {dimension_numbers = #tpu.dot_dimension_numbers<[1], [0], [0], [1], [0, 0, 1, 1], [], []>} : vector<10x420xbf16>, vector<420x160xbf16>, vector<10x160xf32> -> vector<10x160xf32>
    %192 = vector.broadcast %24 : vector<1x160xf32> to vector<10x160xf32>
    %193 = arith.addf %191, %192 : vector<10x160xf32>
    %cst_128 = arith.constant 0.000000e+00 : f32
    %194 = vector.broadcast %cst_128 : f32 to vector<10x160xf32>
    %195 = arith.maximumf %193, %194 : vector<10x160xf32>
    %cst_129 = arith.constant 1.600000e+01 : f32
    %196 = vector.broadcast %cst_129 : f32 to vector<10x160xf32>
    %197 = arith.mulf %195, %196 : vector<10x160xf32>
    %198 = math.floor %197 : vector<10x160xf32>
    %cst_130 = arith.constant -1.280000e+02 : f32
    %cst_131 = arith.constant 1.270000e+02 : f32
    %199 = vector.broadcast %cst_130 : f32 to vector<10x160xf32>
    %200 = arith.maximumf %199, %198 : vector<10x160xf32>
    %201 = vector.broadcast %cst_131 : f32 to vector<10x160xf32>
    %202 = arith.minimumf %201, %200 : vector<10x160xf32>
    %203 = vector.extract_strided_slice %202 {offsets = [0, 0], sizes = [9, 159], strides = [1, 1]} : vector<10x160xf32> to vector<9x159xf32>
    %204 = vector.extract_strided_slice %202 {offsets = [0, 1], sizes = [9, 159], strides = [1, 1]} : vector<10x160xf32> to vector<9x159xf32>
    %205 = arith.maximumf %203, %204 : vector<9x159xf32>
    %206 = vector.extract_strided_slice %202 {offsets = [1, 0], sizes = [9, 159], strides = [1, 1]} : vector<10x160xf32> to vector<9x159xf32>
    %207 = vector.extract_strided_slice %202 {offsets = [1, 1], sizes = [9, 159], strides = [1, 1]} : vector<10x160xf32> to vector<9x159xf32>
    %208 = arith.maximumf %206, %207 : vector<9x159xf32>
    %209 = arith.maximumf %205, %208 : vector<9x159xf32>
    %210 = arith.truncf %209 : vector<9x159xf32> to vector<9x159xbf16>
    %cst_132 = arith.constant dense<0.000000e+00> : vector<5x159xf32>
    %211 = tpu.matmul %25, %210, %cst_132 {dimension_numbers = #tpu.dot_dimension_numbers<[1], [0], [0], [1], [0, 0, 1, 1], [], []>} : vector<5x9xbf16>, vector<9x159xbf16>, vector<5x159xf32> -> vector<5x159xf32>
    %212 = arith.truncf %211 : vector<5x159xf32> to vector<5x159xbf16>
    %cst_133 = arith.constant dense<0.000000e+00> : vector<5x80xf32>
    %213 = tpu.matmul %212, %26, %cst_133 {dimension_numbers = #tpu.dot_dimension_numbers<[1], [0], [0], [1], [0, 0, 1, 1], [], []>} : vector<5x159xbf16>, vector<159x80xbf16>, vector<5x80xf32> -> vector<5x80xf32>
    %cst_134 = arith.constant 0.000000e+00 : f32
    %214 = vector.broadcast %cst_134 : f32 to vector<1x128xf32>
    %215 = vector.extract_strided_slice %213 {offsets = [0, 0], sizes = [1, 80], strides = [1, 1]} : vector<5x80xf32> to vector<1x80xf32>
    %216 = arith.truncf %215 : vector<1x80xf32> to vector<1x80xbf16>
    %cst_135 = arith.constant dense<0.000000e+00> : vector<1x128xf32>
    %217 = tpu.matmul %216, %28, %cst_135 {dimension_numbers = #tpu.dot_dimension_numbers<[1], [0], [0], [1], [0, 0, 1, 1], [], []>} : vector<1x80xbf16>, vector<80x128xbf16>, vector<1x128xf32> -> vector<1x128xf32>
    %218 = arith.addf %214, %217 : vector<1x128xf32>
    %219 = vector.extract_strided_slice %213 {offsets = [1, 0], sizes = [1, 80], strides = [1, 1]} : vector<5x80xf32> to vector<1x80xf32>
    %220 = arith.truncf %219 : vector<1x80xf32> to vector<1x80xbf16>
    %cst_136 = arith.constant dense<0.000000e+00> : vector<1x128xf32>
    %221 = tpu.matmul %220, %30, %cst_136 {dimension_numbers = #tpu.dot_dimension_numbers<[1], [0], [0], [1], [0, 0, 1, 1], [], []>} : vector<1x80xbf16>, vector<80x128xbf16>, vector<1x128xf32> -> vector<1x128xf32>
    %222 = arith.addf %218, %221 : vector<1x128xf32>
    %223 = vector.extract_strided_slice %213 {offsets = [2, 0], sizes = [1, 80], strides = [1, 1]} : vector<5x80xf32> to vector<1x80xf32>
    %224 = arith.truncf %223 : vector<1x80xf32> to vector<1x80xbf16>
    %cst_137 = arith.constant dense<0.000000e+00> : vector<1x128xf32>
    %225 = tpu.matmul %224, %32, %cst_137 {dimension_numbers = #tpu.dot_dimension_numbers<[1], [0], [0], [1], [0, 0, 1, 1], [], []>} : vector<1x80xbf16>, vector<80x128xbf16>, vector<1x128xf32> -> vector<1x128xf32>
    %226 = arith.addf %222, %225 : vector<1x128xf32>
    %227 = vector.extract_strided_slice %213 {offsets = [3, 0], sizes = [1, 80], strides = [1, 1]} : vector<5x80xf32> to vector<1x80xf32>
    %228 = arith.truncf %227 : vector<1x80xf32> to vector<1x80xbf16>
    %cst_138 = arith.constant dense<0.000000e+00> : vector<1x128xf32>
    %229 = tpu.matmul %228, %34, %cst_138 {dimension_numbers = #tpu.dot_dimension_numbers<[1], [0], [0], [1], [0, 0, 1, 1], [], []>} : vector<1x80xbf16>, vector<80x128xbf16>, vector<1x128xf32> -> vector<1x128xf32>
    %230 = arith.addf %226, %229 : vector<1x128xf32>
    %231 = vector.extract_strided_slice %213 {offsets = [4, 0], sizes = [1, 80], strides = [1, 1]} : vector<5x80xf32> to vector<1x80xf32>
    %232 = arith.truncf %231 : vector<1x80xf32> to vector<1x80xbf16>
    %cst_139 = arith.constant dense<0.000000e+00> : vector<1x128xf32>
    %233 = tpu.matmul %232, %36, %cst_139 {dimension_numbers = #tpu.dot_dimension_numbers<[1], [0], [0], [1], [0, 0, 1, 1], [], []>} : vector<1x80xbf16>, vector<80x128xbf16>, vector<1x128xf32> -> vector<1x128xf32>
    %234 = arith.addf %230, %233 : vector<1x128xf32>
    %235 = arith.addf %234, %37 : vector<1x128xf32>
    %cst_140 = arith.constant 0.000000e+00 : f32
    %236 = vector.broadcast %cst_140 : f32 to vector<1x128xf32>
    %237 = arith.maximumf %235, %236 : vector<1x128xf32>
    %cst_141 = arith.constant 3.200000e+01 : f32
    %238 = vector.broadcast %cst_141 : f32 to vector<1x128xf32>
    %239 = arith.mulf %237, %238 : vector<1x128xf32>
    %240 = math.floor %239 : vector<1x128xf32>
    %cst_142 = arith.constant -1.280000e+02 : f32
    %cst_143 = arith.constant 1.270000e+02 : f32
    %241 = vector.broadcast %cst_142 : f32 to vector<1x128xf32>
    %242 = arith.maximumf %241, %240 : vector<1x128xf32>
    %243 = vector.broadcast %cst_143 : f32 to vector<1x128xf32>
    %244 = arith.minimumf %243, %242 : vector<1x128xf32>
    %245 = arith.truncf %244 : vector<1x128xf32> to vector<1x128xbf16>
    %cst_144 = arith.constant dense<0.000000e+00> : vector<1x128xf32>
    %246 = tpu.matmul %245, %38, %cst_144 {dimension_numbers = #tpu.dot_dimension_numbers<[1], [0], [0], [1], [0, 0, 1, 1], [], []>} : vector<1x128xbf16>, vector<128x128xbf16>, vector<1x128xf32> -> vector<1x128xf32>
    %247 = arith.addf %246, %39 : vector<1x128xf32>
    %cst_145 = arith.constant 0.000000e+00 : f32
    %248 = vector.broadcast %cst_145 : f32 to vector<1x128xf32>
    %249 = arith.maximumf %247, %248 : vector<1x128xf32>
    %cst_146 = arith.constant 7.680000e+01 : f32
    %250 = vector.broadcast %cst_146 : f32 to vector<1x128xf32>
    %251 = arith.mulf %249, %250 : vector<1x128xf32>
    %252 = math.floor %251 : vector<1x128xf32>
    %cst_147 = arith.constant -1.280000e+02 : f32
    %cst_148 = arith.constant 1.270000e+02 : f32
    %253 = vector.broadcast %cst_147 : f32 to vector<1x128xf32>
    %254 = arith.maximumf %253, %252 : vector<1x128xf32>
    %255 = vector.broadcast %cst_148 : f32 to vector<1x128xf32>
    %256 = arith.minimumf %255, %254 : vector<1x128xf32>
    %257 = arith.truncf %256 : vector<1x128xf32> to vector<1x128xbf16>
    %cst_149 = arith.constant dense<0.000000e+00> : vector<1x128xf32>
    %258 = tpu.matmul %257, %40, %cst_149 {dimension_numbers = #tpu.dot_dimension_numbers<[1], [0], [0], [1], [0, 0, 1, 1], [], []>} : vector<1x128xbf16>, vector<128x128xbf16>, vector<1x128xf32> -> vector<1x128xf32>
    %259 = arith.addf %258, %41 : vector<1x128xf32>
    %cst_150 = arith.constant 2.000000e+01 : f32
    %260 = vector.broadcast %cst_150 : f32 to vector<1x128xf32>
    %261 = arith.mulf %259, %260 : vector<1x128xf32>
    %262 = math.floor %261 : vector<1x128xf32>
    %cst_151 = arith.constant -1.280000e+02 : f32
    %cst_152 = arith.constant 1.270000e+02 : f32
    %263 = vector.broadcast %cst_151 : f32 to vector<1x128xf32>
    %264 = arith.maximumf %263, %262 : vector<1x128xf32>
    %265 = vector.broadcast %cst_152 : f32 to vector<1x128xf32>
    %266 = arith.minimumf %265, %264 : vector<1x128xf32>
    %c0_153 = arith.constant 0 : index
    %c0_154 = arith.constant 0 : index
    %267 = vector.load %arg16[%c0_153, %c0_154] : memref<2x128xf32, #tpu.memory_space<vmem>>, vector<1x128xf32>
    tpu.vector_store %arg16[%c0_153, %c0_154], %266 {strides = array<i32>} : memref<2x128xf32, #tpu.memory_space<vmem>>, vector<1x128xf32>,
    %c1_155 = arith.constant 1 : index
    %c0_156 = arith.constant 0 : index
    %c0_157 = arith.constant 0 : index
    %268 = vector.load %arg17[%c1_155, %c0_156, %c0_157] : memref<2x28x160xf32, #tpu.memory_space<vmem>>, vector<1x28x160xf32>
    %269 = vector.shape_cast %268 : vector<1x28x160xf32> to vector<28x160xf32>
    %270 = arith.truncf %269 : vector<28x160xf32> to vector<28x160xbf16>
    %cst_158 = arith.constant dense<0.000000e+00> : vector<28x168xf32>
    %271 = tpu.matmul %270, %19, %cst_158 {dimension_numbers = #tpu.dot_dimension_numbers<[1], [0], [0], [1], [0, 0, 1, 1], [], []>} : vector<28x160xbf16>, vector<160x168xbf16>, vector<28x168xf32> -> vector<28x168xf32>
    %272 = vector.broadcast %20 : vector<1x168xf32> to vector<28x168xf32>
    %273 = arith.addf %271, %272 : vector<28x168xf32>
    %cst_159 = arith.constant 0.000000e+00 : f32
    %274 = vector.broadcast %cst_159 : f32 to vector<28x168xf32>
    %275 = arith.maximumf %273, %274 : vector<28x168xf32>
    %cst_160 = arith.constant 2.66667175 : f32
    %276 = vector.broadcast %cst_160 : f32 to vector<28x168xf32>
    %277 = arith.mulf %275, %276 : vector<28x168xf32>
    %278 = math.floor %277 : vector<28x168xf32>
    %cst_161 = arith.constant -1.280000e+02 : f32
    %cst_162 = arith.constant 1.270000e+02 : f32
    %279 = vector.broadcast %cst_161 : f32 to vector<28x168xf32>
    %280 = arith.maximumf %279, %278 : vector<28x168xf32>
    %281 = vector.broadcast %cst_162 : f32 to vector<28x168xf32>
    %282 = arith.minimumf %281, %280 : vector<28x168xf32>
    %283 = vector.extract_strided_slice %282 {offsets = [0, 0], sizes = [27, 167], strides = [1, 1]} : vector<28x168xf32> to vector<27x167xf32>
    %284 = vector.extract_strided_slice %282 {offsets = [0, 1], sizes = [27, 167], strides = [1, 1]} : vector<28x168xf32> to vector<27x167xf32>
    %285 = arith.maximumf %283, %284 : vector<27x167xf32>
    %286 = vector.extract_strided_slice %282 {offsets = [1, 0], sizes = [27, 167], strides = [1, 1]} : vector<28x168xf32> to vector<27x167xf32>
    %287 = vector.extract_strided_slice %282 {offsets = [1, 1], sizes = [27, 167], strides = [1, 1]} : vector<28x168xf32> to vector<27x167xf32>
    %288 = arith.maximumf %286, %287 : vector<27x167xf32>
    %289 = arith.maximumf %285, %288 : vector<27x167xf32>
    %290 = arith.truncf %289 : vector<27x167xf32> to vector<27x167xbf16>
    %cst_163 = arith.constant dense<0.000000e+00> : vector<14x167xf32>
    %291 = tpu.matmul %21, %290, %cst_163 {dimension_numbers = #tpu.dot_dimension_numbers<[1], [0], [0], [1], [0, 0, 1, 1], [], []>} : vector<14x27xbf16>, vector<27x167xbf16>, vector<14x167xf32> -> vector<14x167xf32>
    %292 = arith.truncf %291 : vector<14x167xf32> to vector<14x167xbf16>
    %cst_164 = arith.constant dense<0.000000e+00> : vector<14x84xf32>
    %293 = tpu.matmul %292, %22, %cst_164 {dimension_numbers = #tpu.dot_dimension_numbers<[1], [0], [0], [1], [0, 0, 1, 1], [], []>} : vector<14x167xbf16>, vector<167x84xbf16>, vector<14x84xf32> -> vector<14x84xf32>
    %294 = vector.extract_strided_slice %293 {offsets = [0, 0], sizes = [10, 14], strides = [1, 1]} : vector<14x84xf32> to vector<10x14xf32>
    %c1_165 = arith.constant 1 : index
    %c0_166 = arith.constant 0 : index
    %c0_167 = arith.constant 0 : index
    %295 = vector.load %arg18[%c1_165, %c0_166, %c0_167] : memref<2x10x420xf32, #tpu.memory_space<vmem>>, vector<1x10x14xf32>
    %296 = vector.shape_cast %295 : vector<1x10x14xf32> to vector<10x14xf32>
    %297 = vector.shape_cast %294 : vector<10x14xf32> to vector<1x10x14xf32>
    tpu.vector_store %arg18[%c1_165, %c0_166, %c0_167], %297 {strides = array<i32>} : memref<2x10x420xf32, #tpu.memory_space<vmem>>, vector<1x10x14xf32>,
    %298 = vector.extract_strided_slice %293 {offsets = [1, 0], sizes = [10, 14], strides = [1, 1]} : vector<14x84xf32> to vector<10x14xf32>
    %c1_168 = arith.constant 1 : index
    %c0_169 = arith.constant 0 : index
    %c14_170 = arith.constant 14 : index
    %299 = vector.load %arg18[%c1_168, %c0_169, %c14_170] : memref<2x10x420xf32, #tpu.memory_space<vmem>>, vector<1x10x14xf32>
    %300 = vector.shape_cast %299 : vector<1x10x14xf32> to vector<10x14xf32>
    %301 = vector.shape_cast %298 : vector<10x14xf32> to vector<1x10x14xf32>
    tpu.vector_store %arg18[%c1_168, %c0_169, %c14_170], %301 {strides = array<i32>} : memref<2x10x420xf32, #tpu.memory_space<vmem>>, vector<1x10x14xf32>,
    %302 = vector.extract_strided_slice %293 {offsets = [2, 0], sizes = [10, 14], strides = [1, 1]} : vector<14x84xf32> to vector<10x14xf32>
    %c1_171 = arith.constant 1 : index
    %c0_172 = arith.constant 0 : index
    %c28_173 = arith.constant 28 : index
    %303 = vector.load %arg18[%c1_171, %c0_172, %c28_173] : memref<2x10x420xf32, #tpu.memory_space<vmem>>, vector<1x10x14xf32>
    %304 = vector.shape_cast %303 : vector<1x10x14xf32> to vector<10x14xf32>
    %305 = vector.shape_cast %302 : vector<10x14xf32> to vector<1x10x14xf32>
    tpu.vector_store %arg18[%c1_171, %c0_172, %c28_173], %305 {strides = array<i32>} : memref<2x10x420xf32, #tpu.memory_space<vmem>>, vector<1x10x14xf32>,
    %306 = vector.extract_strided_slice %293 {offsets = [3, 0], sizes = [10, 14], strides = [1, 1]} : vector<14x84xf32> to vector<10x14xf32>
    %c1_174 = arith.constant 1 : index
    %c0_175 = arith.constant 0 : index
    %c42_176 = arith.constant 42 : index
    %307 = vector.load %arg18[%c1_174, %c0_175, %c42_176] : memref<2x10x420xf32, #tpu.memory_space<vmem>>, vector<1x10x14xf32>
    %308 = vector.shape_cast %307 : vector<1x10x14xf32> to vector<10x14xf32>
    %309 = vector.shape_cast %306 : vector<10x14xf32> to vector<1x10x14xf32>
    tpu.vector_store %arg18[%c1_174, %c0_175, %c42_176], %309 {strides = array<i32>} : memref<2x10x420xf32, #tpu.memory_space<vmem>>, vector<1x10x14xf32>,
    %310 = vector.extract_strided_slice %293 {offsets = [4, 0], sizes = [10, 14], strides = [1, 1]} : vector<14x84xf32> to vector<10x14xf32>
    %c1_177 = arith.constant 1 : index
    %c0_178 = arith.constant 0 : index
    %c56_179 = arith.constant 56 : index
    %311 = vector.load %arg18[%c1_177, %c0_178, %c56_179] : memref<2x10x420xf32, #tpu.memory_space<vmem>>, vector<1x10x14xf32>
    %312 = vector.shape_cast %311 : vector<1x10x14xf32> to vector<10x14xf32>
    %313 = vector.shape_cast %310 : vector<10x14xf32> to vector<1x10x14xf32>
    tpu.vector_store %arg18[%c1_177, %c0_178, %c56_179], %313 {strides = array<i32>} : memref<2x10x420xf32, #tpu.memory_space<vmem>>, vector<1x10x14xf32>,
    %314 = vector.extract_strided_slice %293 {offsets = [0, 14], sizes = [10, 14], strides = [1, 1]} : vector<14x84xf32> to vector<10x14xf32>
    %c1_180 = arith.constant 1 : index
    %c0_181 = arith.constant 0 : index
    %c70_182 = arith.constant 70 : index
    %315 = vector.load %arg18[%c1_180, %c0_181, %c70_182] : memref<2x10x420xf32, #tpu.memory_space<vmem>>, vector<1x10x14xf32>
    %316 = vector.shape_cast %315 : vector<1x10x14xf32> to vector<10x14xf32>
    %317 = vector.shape_cast %314 : vector<10x14xf32> to vector<1x10x14xf32>
    tpu.vector_store %arg18[%c1_180, %c0_181, %c70_182], %317 {strides = array<i32>} : memref<2x10x420xf32, #tpu.memory_space<vmem>>, vector<1x10x14xf32>,
    %318 = vector.extract_strided_slice %293 {offsets = [1, 14], sizes = [10, 14], strides = [1, 1]} : vector<14x84xf32> to vector<10x14xf32>
    %c1_183 = arith.constant 1 : index
    %c0_184 = arith.constant 0 : index
    %c84_185 = arith.constant 84 : index
    %319 = vector.load %arg18[%c1_183, %c0_184, %c84_185] : memref<2x10x420xf32, #tpu.memory_space<vmem>>, vector<1x10x14xf32>
    %320 = vector.shape_cast %319 : vector<1x10x14xf32> to vector<10x14xf32>
    %321 = vector.shape_cast %318 : vector<10x14xf32> to vector<1x10x14xf32>
    tpu.vector_store %arg18[%c1_183, %c0_184, %c84_185], %321 {strides = array<i32>} : memref<2x10x420xf32, #tpu.memory_space<vmem>>, vector<1x10x14xf32>,
    %322 = vector.extract_strided_slice %293 {offsets = [2, 14], sizes = [10, 14], strides = [1, 1]} : vector<14x84xf32> to vector<10x14xf32>
    %c1_186 = arith.constant 1 : index
    %c0_187 = arith.constant 0 : index
    %c98_188 = arith.constant 98 : index
    %323 = vector.load %arg18[%c1_186, %c0_187, %c98_188] : memref<2x10x420xf32, #tpu.memory_space<vmem>>, vector<1x10x14xf32>
    %324 = vector.shape_cast %323 : vector<1x10x14xf32> to vector<10x14xf32>
    %325 = vector.shape_cast %322 : vector<10x14xf32> to vector<1x10x14xf32>
    tpu.vector_store %arg18[%c1_186, %c0_187, %c98_188], %325 {strides = array<i32>} : memref<2x10x420xf32, #tpu.memory_space<vmem>>, vector<1x10x14xf32>,
    %326 = vector.extract_strided_slice %293 {offsets = [3, 14], sizes = [10, 14], strides = [1, 1]} : vector<14x84xf32> to vector<10x14xf32>
    %c1_189 = arith.constant 1 : index
    %c0_190 = arith.constant 0 : index
    %c112_191 = arith.constant 112 : index
    %327 = vector.load %arg18[%c1_189, %c0_190, %c112_191] : memref<2x10x420xf32, #tpu.memory_space<vmem>>, vector<1x10x14xf32>
    %328 = vector.shape_cast %327 : vector<1x10x14xf32> to vector<10x14xf32>
    %329 = vector.shape_cast %326 : vector<10x14xf32> to vector<1x10x14xf32>
    tpu.vector_store %arg18[%c1_189, %c0_190, %c112_191], %329 {strides = array<i32>} : memref<2x10x420xf32, #tpu.memory_space<vmem>>, vector<1x10x14xf32>,
    %330 = vector.extract_strided_slice %293 {offsets = [4, 14], sizes = [10, 14], strides = [1, 1]} : vector<14x84xf32> to vector<10x14xf32>
    %c1_192 = arith.constant 1 : index
    %c0_193 = arith.constant 0 : index
    %c126_194 = arith.constant 126 : index
    %331 = vector.load %arg18[%c1_192, %c0_193, %c126_194] : memref<2x10x420xf32, #tpu.memory_space<vmem>>, vector<1x10x14xf32>
    %332 = vector.shape_cast %331 : vector<1x10x14xf32> to vector<10x14xf32>
    %333 = vector.shape_cast %330 : vector<10x14xf32> to vector<1x10x14xf32>
    tpu.vector_store %arg18[%c1_192, %c0_193, %c126_194], %333 {strides = array<i32>} : memref<2x10x420xf32, #tpu.memory_space<vmem>>, vector<1x10x14xf32>,
    %334 = vector.extract_strided_slice %293 {offsets = [0, 28], sizes = [10, 14], strides = [1, 1]} : vector<14x84xf32> to vector<10x14xf32>
    %c1_195 = arith.constant 1 : index
    %c0_196 = arith.constant 0 : index
    %c140_197 = arith.constant 140 : index
    %335 = vector.load %arg18[%c1_195, %c0_196, %c140_197] : memref<2x10x420xf32, #tpu.memory_space<vmem>>, vector<1x10x14xf32>
    %336 = vector.shape_cast %335 : vector<1x10x14xf32> to vector<10x14xf32>
    %337 = vector.shape_cast %334 : vector<10x14xf32> to vector<1x10x14xf32>
    tpu.vector_store %arg18[%c1_195, %c0_196, %c140_197], %337 {strides = array<i32>} : memref<2x10x420xf32, #tpu.memory_space<vmem>>, vector<1x10x14xf32>,
    %338 = vector.extract_strided_slice %293 {offsets = [1, 28], sizes = [10, 14], strides = [1, 1]} : vector<14x84xf32> to vector<10x14xf32>
    %c1_198 = arith.constant 1 : index
    %c0_199 = arith.constant 0 : index
    %c154_200 = arith.constant 154 : index
    %339 = vector.load %arg18[%c1_198, %c0_199, %c154_200] : memref<2x10x420xf32, #tpu.memory_space<vmem>>, vector<1x10x14xf32>
    %340 = vector.shape_cast %339 : vector<1x10x14xf32> to vector<10x14xf32>
    %341 = vector.shape_cast %338 : vector<10x14xf32> to vector<1x10x14xf32>
    tpu.vector_store %arg18[%c1_198, %c0_199, %c154_200], %341 {strides = array<i32>} : memref<2x10x420xf32, #tpu.memory_space<vmem>>, vector<1x10x14xf32>,
    %342 = vector.extract_strided_slice %293 {offsets = [2, 28], sizes = [10, 14], strides = [1, 1]} : vector<14x84xf32> to vector<10x14xf32>
    %c1_201 = arith.constant 1 : index
    %c0_202 = arith.constant 0 : index
    %c168_203 = arith.constant 168 : index
    %343 = vector.load %arg18[%c1_201, %c0_202, %c168_203] : memref<2x10x420xf32, #tpu.memory_space<vmem>>, vector<1x10x14xf32>
    %344 = vector.shape_cast %343 : vector<1x10x14xf32> to vector<10x14xf32>
    %345 = vector.shape_cast %342 : vector<10x14xf32> to vector<1x10x14xf32>
    tpu.vector_store %arg18[%c1_201, %c0_202, %c168_203], %345 {strides = array<i32>} : memref<2x10x420xf32, #tpu.memory_space<vmem>>, vector<1x10x14xf32>,
    %346 = vector.extract_strided_slice %293 {offsets = [3, 28], sizes = [10, 14], strides = [1, 1]} : vector<14x84xf32> to vector<10x14xf32>
    %c1_204 = arith.constant 1 : index
    %c0_205 = arith.constant 0 : index
    %c182_206 = arith.constant 182 : index
    %347 = vector.load %arg18[%c1_204, %c0_205, %c182_206] : memref<2x10x420xf32, #tpu.memory_space<vmem>>, vector<1x10x14xf32>
    %348 = vector.shape_cast %347 : vector<1x10x14xf32> to vector<10x14xf32>
    %349 = vector.shape_cast %346 : vector<10x14xf32> to vector<1x10x14xf32>
    tpu.vector_store %arg18[%c1_204, %c0_205, %c182_206], %349 {strides = array<i32>} : memref<2x10x420xf32, #tpu.memory_space<vmem>>, vector<1x10x14xf32>,
    %350 = vector.extract_strided_slice %293 {offsets = [4, 28], sizes = [10, 14], strides = [1, 1]} : vector<14x84xf32> to vector<10x14xf32>
    %c1_207 = arith.constant 1 : index
    %c0_208 = arith.constant 0 : index
    %c196_209 = arith.constant 196 : index
    %351 = vector.load %arg18[%c1_207, %c0_208, %c196_209] : memref<2x10x420xf32, #tpu.memory_space<vmem>>, vector<1x10x14xf32>
    %352 = vector.shape_cast %351 : vector<1x10x14xf32> to vector<10x14xf32>
    %353 = vector.shape_cast %350 : vector<10x14xf32> to vector<1x10x14xf32>
    tpu.vector_store %arg18[%c1_207, %c0_208, %c196_209], %353 {strides = array<i32>} : memref<2x10x420xf32, #tpu.memory_space<vmem>>, vector<1x10x14xf32>,
    %354 = vector.extract_strided_slice %293 {offsets = [0, 42], sizes = [10, 14], strides = [1, 1]} : vector<14x84xf32> to vector<10x14xf32>
    %c1_210 = arith.constant 1 : index
    %c0_211 = arith.constant 0 : index
    %c210_212 = arith.constant 210 : index
    %355 = vector.load %arg18[%c1_210, %c0_211, %c210_212] : memref<2x10x420xf32, #tpu.memory_space<vmem>>, vector<1x10x14xf32>
    %356 = vector.shape_cast %355 : vector<1x10x14xf32> to vector<10x14xf32>
    %357 = vector.shape_cast %354 : vector<10x14xf32> to vector<1x10x14xf32>
    tpu.vector_store %arg18[%c1_210, %c0_211, %c210_212], %357 {strides = array<i32>} : memref<2x10x420xf32, #tpu.memory_space<vmem>>, vector<1x10x14xf32>,
    %358 = vector.extract_strided_slice %293 {offsets = [1, 42], sizes = [10, 14], strides = [1, 1]} : vector<14x84xf32> to vector<10x14xf32>
    %c1_213 = arith.constant 1 : index
    %c0_214 = arith.constant 0 : index
    %c224_215 = arith.constant 224 : index
    %359 = vector.load %arg18[%c1_213, %c0_214, %c224_215] : memref<2x10x420xf32, #tpu.memory_space<vmem>>, vector<1x10x14xf32>
    %360 = vector.shape_cast %359 : vector<1x10x14xf32> to vector<10x14xf32>
    %361 = vector.shape_cast %358 : vector<10x14xf32> to vector<1x10x14xf32>
    tpu.vector_store %arg18[%c1_213, %c0_214, %c224_215], %361 {strides = array<i32>} : memref<2x10x420xf32, #tpu.memory_space<vmem>>, vector<1x10x14xf32>,
    %362 = vector.extract_strided_slice %293 {offsets = [2, 42], sizes = [10, 14], strides = [1, 1]} : vector<14x84xf32> to vector<10x14xf32>
    %c1_216 = arith.constant 1 : index
    %c0_217 = arith.constant 0 : index
    %c238_218 = arith.constant 238 : index
    %363 = vector.load %arg18[%c1_216, %c0_217, %c238_218] : memref<2x10x420xf32, #tpu.memory_space<vmem>>, vector<1x10x14xf32>
    %364 = vector.shape_cast %363 : vector<1x10x14xf32> to vector<10x14xf32>
    %365 = vector.shape_cast %362 : vector<10x14xf32> to vector<1x10x14xf32>
    tpu.vector_store %arg18[%c1_216, %c0_217, %c238_218], %365 {strides = array<i32>} : memref<2x10x420xf32, #tpu.memory_space<vmem>>, vector<1x10x14xf32>,
    %366 = vector.extract_strided_slice %293 {offsets = [3, 42], sizes = [10, 14], strides = [1, 1]} : vector<14x84xf32> to vector<10x14xf32>
    %c1_219 = arith.constant 1 : index
    %c0_220 = arith.constant 0 : index
    %c252_221 = arith.constant 252 : index
    %367 = vector.load %arg18[%c1_219, %c0_220, %c252_221] : memref<2x10x420xf32, #tpu.memory_space<vmem>>, vector<1x10x14xf32>
    %368 = vector.shape_cast %367 : vector<1x10x14xf32> to vector<10x14xf32>
    %369 = vector.shape_cast %366 : vector<10x14xf32> to vector<1x10x14xf32>
    tpu.vector_store %arg18[%c1_219, %c0_220, %c252_221], %369 {strides = array<i32>} : memref<2x10x420xf32, #tpu.memory_space<vmem>>, vector<1x10x14xf32>,
    %370 = vector.extract_strided_slice %293 {offsets = [4, 42], sizes = [10, 14], strides = [1, 1]} : vector<14x84xf32> to vector<10x14xf32>
    %c1_222 = arith.constant 1 : index
    %c0_223 = arith.constant 0 : index
    %c266_224 = arith.constant 266 : index
    %371 = vector.load %arg18[%c1_222, %c0_223, %c266_224] : memref<2x10x420xf32, #tpu.memory_space<vmem>>, vector<1x10x14xf32>
    %372 = vector.shape_cast %371 : vector<1x10x14xf32> to vector<10x14xf32>
    %373 = vector.shape_cast %370 : vector<10x14xf32> to vector<1x10x14xf32>
    tpu.vector_store %arg18[%c1_222, %c0_223, %c266_224], %373 {strides = array<i32>} : memref<2x10x420xf32, #tpu.memory_space<vmem>>, vector<1x10x14xf32>,
    %374 = vector.extract_strided_slice %293 {offsets = [0, 56], sizes = [10, 14], strides = [1, 1]} : vector<14x84xf32> to vector<10x14xf32>
    %c1_225 = arith.constant 1 : index
    %c0_226 = arith.constant 0 : index
    %c280_227 = arith.constant 280 : index
    %375 = vector.load %arg18[%c1_225, %c0_226, %c280_227] : memref<2x10x420xf32, #tpu.memory_space<vmem>>, vector<1x10x14xf32>
    %376 = vector.shape_cast %375 : vector<1x10x14xf32> to vector<10x14xf32>
    %377 = vector.shape_cast %374 : vector<10x14xf32> to vector<1x10x14xf32>
    tpu.vector_store %arg18[%c1_225, %c0_226, %c280_227], %377 {strides = array<i32>} : memref<2x10x420xf32, #tpu.memory_space<vmem>>, vector<1x10x14xf32>,
    %378 = vector.extract_strided_slice %293 {offsets = [1, 56], sizes = [10, 14], strides = [1, 1]} : vector<14x84xf32> to vector<10x14xf32>
    %c1_228 = arith.constant 1 : index
    %c0_229 = arith.constant 0 : index
    %c294_230 = arith.constant 294 : index
    %379 = vector.load %arg18[%c1_228, %c0_229, %c294_230] : memref<2x10x420xf32, #tpu.memory_space<vmem>>, vector<1x10x14xf32>
    %380 = vector.shape_cast %379 : vector<1x10x14xf32> to vector<10x14xf32>
    %381 = vector.shape_cast %378 : vector<10x14xf32> to vector<1x10x14xf32>
    tpu.vector_store %arg18[%c1_228, %c0_229, %c294_230], %381 {strides = array<i32>} : memref<2x10x420xf32, #tpu.memory_space<vmem>>, vector<1x10x14xf32>,
    %382 = vector.extract_strided_slice %293 {offsets = [2, 56], sizes = [10, 14], strides = [1, 1]} : vector<14x84xf32> to vector<10x14xf32>
    %c1_231 = arith.constant 1 : index
    %c0_232 = arith.constant 0 : index
    %c308_233 = arith.constant 308 : index
    %383 = vector.load %arg18[%c1_231, %c0_232, %c308_233] : memref<2x10x420xf32, #tpu.memory_space<vmem>>, vector<1x10x14xf32>
    %384 = vector.shape_cast %383 : vector<1x10x14xf32> to vector<10x14xf32>
    %385 = vector.shape_cast %382 : vector<10x14xf32> to vector<1x10x14xf32>
    tpu.vector_store %arg18[%c1_231, %c0_232, %c308_233], %385 {strides = array<i32>} : memref<2x10x420xf32, #tpu.memory_space<vmem>>, vector<1x10x14xf32>,
    %386 = vector.extract_strided_slice %293 {offsets = [3, 56], sizes = [10, 14], strides = [1, 1]} : vector<14x84xf32> to vector<10x14xf32>
    %c1_234 = arith.constant 1 : index
    %c0_235 = arith.constant 0 : index
    %c322_236 = arith.constant 322 : index
    %387 = vector.load %arg18[%c1_234, %c0_235, %c322_236] : memref<2x10x420xf32, #tpu.memory_space<vmem>>, vector<1x10x14xf32>
    %388 = vector.shape_cast %387 : vector<1x10x14xf32> to vector<10x14xf32>
    %389 = vector.shape_cast %386 : vector<10x14xf32> to vector<1x10x14xf32>
    tpu.vector_store %arg18[%c1_234, %c0_235, %c322_236], %389 {strides = array<i32>} : memref<2x10x420xf32, #tpu.memory_space<vmem>>, vector<1x10x14xf32>,
    %390 = vector.extract_strided_slice %293 {offsets = [4, 56], sizes = [10, 14], strides = [1, 1]} : vector<14x84xf32> to vector<10x14xf32>
    %c1_237 = arith.constant 1 : index
    %c0_238 = arith.constant 0 : index
    %c336_239 = arith.constant 336 : index
    %391 = vector.load %arg18[%c1_237, %c0_238, %c336_239] : memref<2x10x420xf32, #tpu.memory_space<vmem>>, vector<1x10x14xf32>
    %392 = vector.shape_cast %391 : vector<1x10x14xf32> to vector<10x14xf32>
    %393 = vector.shape_cast %390 : vector<10x14xf32> to vector<1x10x14xf32>
    tpu.vector_store %arg18[%c1_237, %c0_238, %c336_239], %393 {strides = array<i32>} : memref<2x10x420xf32, #tpu.memory_space<vmem>>, vector<1x10x14xf32>,
    %394 = vector.extract_strided_slice %293 {offsets = [0, 70], sizes = [10, 14], strides = [1, 1]} : vector<14x84xf32> to vector<10x14xf32>
    %c1_240 = arith.constant 1 : index
    %c0_241 = arith.constant 0 : index
    %c350_242 = arith.constant 350 : index
    %395 = vector.load %arg18[%c1_240, %c0_241, %c350_242] : memref<2x10x420xf32, #tpu.memory_space<vmem>>, vector<1x10x14xf32>
    %396 = vector.shape_cast %395 : vector<1x10x14xf32> to vector<10x14xf32>
    %397 = vector.shape_cast %394 : vector<10x14xf32> to vector<1x10x14xf32>
    tpu.vector_store %arg18[%c1_240, %c0_241, %c350_242], %397 {strides = array<i32>} : memref<2x10x420xf32, #tpu.memory_space<vmem>>, vector<1x10x14xf32>,
    %398 = vector.extract_strided_slice %293 {offsets = [1, 70], sizes = [10, 14], strides = [1, 1]} : vector<14x84xf32> to vector<10x14xf32>
    %c1_243 = arith.constant 1 : index
    %c0_244 = arith.constant 0 : index
    %c364_245 = arith.constant 364 : index
    %399 = vector.load %arg18[%c1_243, %c0_244, %c364_245] : memref<2x10x420xf32, #tpu.memory_space<vmem>>, vector<1x10x14xf32>
    %400 = vector.shape_cast %399 : vector<1x10x14xf32> to vector<10x14xf32>
    %401 = vector.shape_cast %398 : vector<10x14xf32> to vector<1x10x14xf32>
    tpu.vector_store %arg18[%c1_243, %c0_244, %c364_245], %401 {strides = array<i32>} : memref<2x10x420xf32, #tpu.memory_space<vmem>>, vector<1x10x14xf32>,
    %402 = vector.extract_strided_slice %293 {offsets = [2, 70], sizes = [10, 14], strides = [1, 1]} : vector<14x84xf32> to vector<10x14xf32>
    %c1_246 = arith.constant 1 : index
    %c0_247 = arith.constant 0 : index
    %c378_248 = arith.constant 378 : index
    %403 = vector.load %arg18[%c1_246, %c0_247, %c378_248] : memref<2x10x420xf32, #tpu.memory_space<vmem>>, vector<1x10x14xf32>
    %404 = vector.shape_cast %403 : vector<1x10x14xf32> to vector<10x14xf32>
    %405 = vector.shape_cast %402 : vector<10x14xf32> to vector<1x10x14xf32>
    tpu.vector_store %arg18[%c1_246, %c0_247, %c378_248], %405 {strides = array<i32>} : memref<2x10x420xf32, #tpu.memory_space<vmem>>, vector<1x10x14xf32>,
    %406 = vector.extract_strided_slice %293 {offsets = [3, 70], sizes = [10, 14], strides = [1, 1]} : vector<14x84xf32> to vector<10x14xf32>
    %c1_249 = arith.constant 1 : index
    %c0_250 = arith.constant 0 : index
    %c392_251 = arith.constant 392 : index
    %407 = vector.load %arg18[%c1_249, %c0_250, %c392_251] : memref<2x10x420xf32, #tpu.memory_space<vmem>>, vector<1x10x14xf32>
    %408 = vector.shape_cast %407 : vector<1x10x14xf32> to vector<10x14xf32>
    %409 = vector.shape_cast %406 : vector<10x14xf32> to vector<1x10x14xf32>
    tpu.vector_store %arg18[%c1_249, %c0_250, %c392_251], %409 {strides = array<i32>} : memref<2x10x420xf32, #tpu.memory_space<vmem>>, vector<1x10x14xf32>,
    %410 = vector.extract_strided_slice %293 {offsets = [4, 70], sizes = [10, 14], strides = [1, 1]} : vector<14x84xf32> to vector<10x14xf32>
    %c1_252 = arith.constant 1 : index
    %c0_253 = arith.constant 0 : index
    %c406_254 = arith.constant 406 : index
    %411 = vector.load %arg18[%c1_252, %c0_253, %c406_254] : memref<2x10x420xf32, #tpu.memory_space<vmem>>, vector<1x10x14xf32>
    %412 = vector.shape_cast %411 : vector<1x10x14xf32> to vector<10x14xf32>
    %413 = vector.shape_cast %410 : vector<10x14xf32> to vector<1x10x14xf32>
    tpu.vector_store %arg18[%c1_252, %c0_253, %c406_254], %413 {strides = array<i32>} : memref<2x10x420xf32, #tpu.memory_space<vmem>>, vector<1x10x14xf32>,
    %c1_255 = arith.constant 1 : index
    %c0_256 = arith.constant 0 : index
    %c0_257 = arith.constant 0 : index
    %414 = vector.load %arg18[%c1_255, %c0_256, %c0_257] : memref<2x10x420xf32, #tpu.memory_space<vmem>>, vector<1x10x420xf32>
    %415 = vector.shape_cast %414 : vector<1x10x420xf32> to vector<10x420xf32>
    %416 = arith.truncf %415 : vector<10x420xf32> to vector<10x420xbf16>
    %cst_258 = arith.constant dense<0.000000e+00> : vector<10x160xf32>
    %417 = tpu.matmul %416, %23, %cst_258 {dimension_numbers = #tpu.dot_dimension_numbers<[1], [0], [0], [1], [0, 0, 1, 1], [], []>} : vector<10x420xbf16>, vector<420x160xbf16>, vector<10x160xf32> -> vector<10x160xf32>
    %418 = vector.broadcast %24 : vector<1x160xf32> to vector<10x160xf32>
    %419 = arith.addf %417, %418 : vector<10x160xf32>
    %cst_259 = arith.constant 0.000000e+00 : f32
    %420 = vector.broadcast %cst_259 : f32 to vector<10x160xf32>
    %421 = arith.maximumf %419, %420 : vector<10x160xf32>
    %cst_260 = arith.constant 1.600000e+01 : f32
    %422 = vector.broadcast %cst_260 : f32 to vector<10x160xf32>
    %423 = arith.mulf %421, %422 : vector<10x160xf32>
    %424 = math.floor %423 : vector<10x160xf32>
    %cst_261 = arith.constant -1.280000e+02 : f32
    %cst_262 = arith.constant 1.270000e+02 : f32
    %425 = vector.broadcast %cst_261 : f32 to vector<10x160xf32>
    %426 = arith.maximumf %425, %424 : vector<10x160xf32>
    %427 = vector.broadcast %cst_262 : f32 to vector<10x160xf32>
    %428 = arith.minimumf %427, %426 : vector<10x160xf32>
    %429 = vector.extract_strided_slice %428 {offsets = [0, 0], sizes = [9, 159], strides = [1, 1]} : vector<10x160xf32> to vector<9x159xf32>
    %430 = vector.extract_strided_slice %428 {offsets = [0, 1], sizes = [9, 159], strides = [1, 1]} : vector<10x160xf32> to vector<9x159xf32>
    %431 = arith.maximumf %429, %430 : vector<9x159xf32>
    %432 = vector.extract_strided_slice %428 {offsets = [1, 0], sizes = [9, 159], strides = [1, 1]} : vector<10x160xf32> to vector<9x159xf32>
    %433 = vector.extract_strided_slice %428 {offsets = [1, 1], sizes = [9, 159], strides = [1, 1]} : vector<10x160xf32> to vector<9x159xf32>
    %434 = arith.maximumf %432, %433 : vector<9x159xf32>
    %435 = arith.maximumf %431, %434 : vector<9x159xf32>
    %436 = arith.truncf %435 : vector<9x159xf32> to vector<9x159xbf16>
    %cst_263 = arith.constant dense<0.000000e+00> : vector<5x159xf32>
    %437 = tpu.matmul %25, %436, %cst_263 {dimension_numbers = #tpu.dot_dimension_numbers<[1], [0], [0], [1], [0, 0, 1, 1], [], []>} : vector<5x9xbf16>, vector<9x159xbf16>, vector<5x159xf32> -> vector<5x159xf32>
    %438 = arith.truncf %437 : vector<5x159xf32> to vector<5x159xbf16>
    %cst_264 = arith.constant dense<0.000000e+00> : vector<5x80xf32>
    %439 = tpu.matmul %438, %26, %cst_264 {dimension_numbers = #tpu.dot_dimension_numbers<[1], [0], [0], [1], [0, 0, 1, 1], [], []>} : vector<5x159xbf16>, vector<159x80xbf16>, vector<5x80xf32> -> vector<5x80xf32>
    %cst_265 = arith.constant 0.000000e+00 : f32
    %440 = vector.broadcast %cst_265 : f32 to vector<1x128xf32>
    %441 = vector.extract_strided_slice %439 {offsets = [0, 0], sizes = [1, 80], strides = [1, 1]} : vector<5x80xf32> to vector<1x80xf32>
    %442 = arith.truncf %441 : vector<1x80xf32> to vector<1x80xbf16>
    %cst_266 = arith.constant dense<0.000000e+00> : vector<1x128xf32>
    %443 = tpu.matmul %442, %28, %cst_266 {dimension_numbers = #tpu.dot_dimension_numbers<[1], [0], [0], [1], [0, 0, 1, 1], [], []>} : vector<1x80xbf16>, vector<80x128xbf16>, vector<1x128xf32> -> vector<1x128xf32>
    %444 = arith.addf %440, %443 : vector<1x128xf32>
    %445 = vector.extract_strided_slice %439 {offsets = [1, 0], sizes = [1, 80], strides = [1, 1]} : vector<5x80xf32> to vector<1x80xf32>
    %446 = arith.truncf %445 : vector<1x80xf32> to vector<1x80xbf16>
    %cst_267 = arith.constant dense<0.000000e+00> : vector<1x128xf32>
    %447 = tpu.matmul %446, %30, %cst_267 {dimension_numbers = #tpu.dot_dimension_numbers<[1], [0], [0], [1], [0, 0, 1, 1], [], []>} : vector<1x80xbf16>, vector<80x128xbf16>, vector<1x128xf32> -> vector<1x128xf32>
    %448 = arith.addf %444, %447 : vector<1x128xf32>
    %449 = vector.extract_strided_slice %439 {offsets = [2, 0], sizes = [1, 80], strides = [1, 1]} : vector<5x80xf32> to vector<1x80xf32>
    %450 = arith.truncf %449 : vector<1x80xf32> to vector<1x80xbf16>
    %cst_268 = arith.constant dense<0.000000e+00> : vector<1x128xf32>
    %451 = tpu.matmul %450, %32, %cst_268 {dimension_numbers = #tpu.dot_dimension_numbers<[1], [0], [0], [1], [0, 0, 1, 1], [], []>} : vector<1x80xbf16>, vector<80x128xbf16>, vector<1x128xf32> -> vector<1x128xf32>
    %452 = arith.addf %448, %451 : vector<1x128xf32>
    %453 = vector.extract_strided_slice %439 {offsets = [3, 0], sizes = [1, 80], strides = [1, 1]} : vector<5x80xf32> to vector<1x80xf32>
    %454 = arith.truncf %453 : vector<1x80xf32> to vector<1x80xbf16>
    %cst_269 = arith.constant dense<0.000000e+00> : vector<1x128xf32>
    %455 = tpu.matmul %454, %34, %cst_269 {dimension_numbers = #tpu.dot_dimension_numbers<[1], [0], [0], [1], [0, 0, 1, 1], [], []>} : vector<1x80xbf16>, vector<80x128xbf16>, vector<1x128xf32> -> vector<1x128xf32>
    %456 = arith.addf %452, %455 : vector<1x128xf32>
    %457 = vector.extract_strided_slice %439 {offsets = [4, 0], sizes = [1, 80], strides = [1, 1]} : vector<5x80xf32> to vector<1x80xf32>
    %458 = arith.truncf %457 : vector<1x80xf32> to vector<1x80xbf16>
    %cst_270 = arith.constant dense<0.000000e+00> : vector<1x128xf32>
    %459 = tpu.matmul %458, %36, %cst_270 {dimension_numbers = #tpu.dot_dimension_numbers<[1], [0], [0], [1], [0, 0, 1, 1], [], []>} : vector<1x80xbf16>, vector<80x128xbf16>, vector<1x128xf32> -> vector<1x128xf32>
    %460 = arith.addf %456, %459 : vector<1x128xf32>
    %461 = arith.addf %460, %37 : vector<1x128xf32>
    %cst_271 = arith.constant 0.000000e+00 : f32
    %462 = vector.broadcast %cst_271 : f32 to vector<1x128xf32>
    %463 = arith.maximumf %461, %462 : vector<1x128xf32>
    %cst_272 = arith.constant 3.200000e+01 : f32
    %464 = vector.broadcast %cst_272 : f32 to vector<1x128xf32>
    %465 = arith.mulf %463, %464 : vector<1x128xf32>
    %466 = math.floor %465 : vector<1x128xf32>
    %cst_273 = arith.constant -1.280000e+02 : f32
    %cst_274 = arith.constant 1.270000e+02 : f32
    %467 = vector.broadcast %cst_273 : f32 to vector<1x128xf32>
    %468 = arith.maximumf %467, %466 : vector<1x128xf32>
    %469 = vector.broadcast %cst_274 : f32 to vector<1x128xf32>
    %470 = arith.minimumf %469, %468 : vector<1x128xf32>
    %471 = arith.truncf %470 : vector<1x128xf32> to vector<1x128xbf16>
    %cst_275 = arith.constant dense<0.000000e+00> : vector<1x128xf32>
    %472 = tpu.matmul %471, %38, %cst_275 {dimension_numbers = #tpu.dot_dimension_numbers<[1], [0], [0], [1], [0, 0, 1, 1], [], []>} : vector<1x128xbf16>, vector<128x128xbf16>, vector<1x128xf32> -> vector<1x128xf32>
    %473 = arith.addf %472, %39 : vector<1x128xf32>
    %cst_276 = arith.constant 0.000000e+00 : f32
    %474 = vector.broadcast %cst_276 : f32 to vector<1x128xf32>
    %475 = arith.maximumf %473, %474 : vector<1x128xf32>
    %cst_277 = arith.constant 7.680000e+01 : f32
    %476 = vector.broadcast %cst_277 : f32 to vector<1x128xf32>
    %477 = arith.mulf %475, %476 : vector<1x128xf32>
    %478 = math.floor %477 : vector<1x128xf32>
    %cst_278 = arith.constant -1.280000e+02 : f32
    %cst_279 = arith.constant 1.270000e+02 : f32
    %479 = vector.broadcast %cst_278 : f32 to vector<1x128xf32>
    %480 = arith.maximumf %479, %478 : vector<1x128xf32>
    %481 = vector.broadcast %cst_279 : f32 to vector<1x128xf32>
    %482 = arith.minimumf %481, %480 : vector<1x128xf32>
    %483 = arith.truncf %482 : vector<1x128xf32> to vector<1x128xbf16>
    %cst_280 = arith.constant dense<0.000000e+00> : vector<1x128xf32>
    %484 = tpu.matmul %483, %40, %cst_280 {dimension_numbers = #tpu.dot_dimension_numbers<[1], [0], [0], [1], [0, 0, 1, 1], [], []>} : vector<1x128xbf16>, vector<128x128xbf16>, vector<1x128xf32> -> vector<1x128xf32>
    %485 = arith.addf %484, %41 : vector<1x128xf32>
    %cst_281 = arith.constant 2.000000e+01 : f32
    %486 = vector.broadcast %cst_281 : f32 to vector<1x128xf32>
    %487 = arith.mulf %485, %486 : vector<1x128xf32>
    %488 = math.floor %487 : vector<1x128xf32>
    %cst_282 = arith.constant -1.280000e+02 : f32
    %cst_283 = arith.constant 1.270000e+02 : f32
    %489 = vector.broadcast %cst_282 : f32 to vector<1x128xf32>
    %490 = arith.maximumf %489, %488 : vector<1x128xf32>
    %491 = vector.broadcast %cst_283 : f32 to vector<1x128xf32>
    %492 = arith.minimumf %491, %490 : vector<1x128xf32>
    %c1_284 = arith.constant 1 : index
    %c0_285 = arith.constant 0 : index
    %493 = vector.load %arg16[%c1_284, %c0_285] : memref<2x128xf32, #tpu.memory_space<vmem>>, vector<1x128xf32>
    tpu.vector_store %arg16[%c1_284, %c0_285], %492 {strides = array<i32>} : memref<2x128xf32, #tpu.memory_space<vmem>>, vector<1x128xf32>,
    return
  }
  func.func @transform_0(%arg0: i32) -> (i32, i32, i32, i32) {
    %c0_i32 = arith.constant 0 : i32
    %c0_i32_0 = arith.constant 0 : i32
    %c0_i32_1 = arith.constant 0 : i32
    %c0_i32_2 = arith.constant 0 : i32
    %c0_i32_3 = arith.constant 0 : i32
    return %c0_i32, %c0_i32_0, %c0_i32_1, %c0_i32_2 : i32, i32, i32, i32
  }
  func.func @transform_1(%arg0: i32) -> (i32, i32) {
    %c0_i32 = arith.constant 0 : i32
    %c0_i32_0 = arith.constant 0 : i32
    %c0_i32_1 = arith.constant 0 : i32
    return %c0_i32, %c0_i32_0 : i32, i32
  }
  func.func @transform_2(%arg0: i32) -> (i32, i32) {
    %c0_i32 = arith.constant 0 : i32
    %c0_i32_0 = arith.constant 0 : i32
    %c0_i32_1 = arith.constant 0 : i32
    return %c0_i32, %c0_i32_0 : i32, i32
  }
  func.func @transform_3(%arg0: i32) -> (i32, i32) {
    %c0_i32 = arith.constant 0 : i32
    %c0_i32_0 = arith.constant 0 : i32
    %c0_i32_1 = arith.constant 0 : i32
    return %c0_i32, %c0_i32_0 : i32, i32
  }
  func.func @transform_4(%arg0: i32) -> (i32, i32) {
    %c0_i32 = arith.constant 0 : i32
    %c0_i32_0 = arith.constant 0 : i32
    %c0_i32_1 = arith.constant 0 : i32
    return %c0_i32, %c0_i32_0 : i32, i32
  }
  func.func @transform_5(%arg0: i32) -> (i32, i32) {
    %c0_i32 = arith.constant 0 : i32
    %c0_i32_0 = arith.constant 0 : i32
    %c0_i32_1 = arith.constant 0 : i32
    return %c0_i32, %c0_i32_0 : i32, i32
  }
  func.func @transform_6(%arg0: i32) -> (i32, i32) {
    %c0_i32 = arith.constant 0 : i32
    %c0_i32_0 = arith.constant 0 : i32
    %c0_i32_1 = arith.constant 0 : i32
    return %c0_i32, %c0_i32_0 : i32, i32
  }
  func.func @transform_7(%arg0: i32) -> (i32, i32) {
    %c0_i32 = arith.constant 0 : i32
    %c0_i32_0 = arith.constant 0 : i32
    %c0_i32_1 = arith.constant 0 : i32
    return %c0_i32, %c0_i32_0 : i32, i32
  }
  func.func @transform_8(%arg0: i32) -> (i32, i32) {
    %c0_i32 = arith.constant 0 : i32
    %c0_i32_0 = arith.constant 0 : i32
    %c0_i32_1 = arith.constant 0 : i32
    return %c0_i32, %c0_i32_0 : i32, i32
  }
  func.func @transform_9(%arg0: i32) -> (i32, i32, i32) {
    %c0_i32 = arith.constant 0 : i32
    %c0_i32_0 = arith.constant 0 : i32
    %c0_i32_1 = arith.constant 0 : i32
    %c0_i32_2 = arith.constant 0 : i32
    return %c0_i32, %c0_i32_0, %c0_i32_1 : i32, i32, i32
  }
  func.func @transform_10(%arg0: i32) -> (i32, i32) {
    %c0_i32 = arith.constant 0 : i32
    %c0_i32_0 = arith.constant 0 : i32
    %c0_i32_1 = arith.constant 0 : i32
    return %c0_i32, %c0_i32_0 : i32, i32
  }
  func.func @transform_11(%arg0: i32) -> (i32, i32) {
    %c0_i32 = arith.constant 0 : i32
    %c0_i32_0 = arith.constant 0 : i32
    %c0_i32_1 = arith.constant 0 : i32
    return %c0_i32, %c0_i32_0 : i32, i32
  }
  func.func @transform_12(%arg0: i32) -> (i32, i32) {
    %c0_i32 = arith.constant 0 : i32
    %c0_i32_0 = arith.constant 0 : i32
    %c0_i32_1 = arith.constant 0 : i32
    return %c0_i32, %c0_i32_0 : i32, i32
  }
  func.func @transform_13(%arg0: i32) -> (i32, i32) {
    %c0_i32 = arith.constant 0 : i32
    %c0_i32_0 = arith.constant 0 : i32
    %c0_i32_1 = arith.constant 0 : i32
    return %c0_i32, %c0_i32_0 : i32, i32
  }
  func.func @transform_14(%arg0: i32) -> (i32, i32) {
    %c0_i32 = arith.constant 0 : i32
    %c0_i32_0 = arith.constant 0 : i32
    %c0_i32_1 = arith.constant 0 : i32
    return %c0_i32, %c0_i32_0 : i32, i32
  }
  func.func @transform_15(%arg0: i32) -> (i32, i32) {
    %c0_i32 = arith.constant 0 : i32
    %c0_i32_0 = arith.constant 0 : i32
    %c0_i32_1 = arith.constant 0 : i32
    return %c0_i32, %c0_i32_0 : i32, i32
  }
}

</mosaic_0001>

<llo_original>
// kernel: tpu_custom_call.1
$region0: #{tpu_custom_call.1}
  #allocation0 [shape = 'u32[]', space=smem, size = 0x4, offset = 0x4, fixed_abs, tag = 'smem constant byte address 0x4 - core index']
  #allocation1 [shape = 'u32[72,128]{1,0:T(1,128)}', space=vmem, size = 0x9000, scoped, tag = 'internal scratch']
  #allocation2 [shape = 'f32[2,28,160]{2,1,0:T(8,128)}', space=vmem, size = 0x10000, scoped, tag = 'scratch operand']
  #allocation3 [shape = 'f32[2,10,420]{2,1,0:T(8,128)}', space=vmem, size = 0x10000, scoped, tag = 'scratch operand']
  %s0 = inlined_call_operand.vmem [shape: f32[2,1,32,32], index: 0, kind: input, shape index: {}]
  %s1 = inlined_call_operand.vmem [shape: bf16[160,168], index: 1, kind: input, shape index: {}]
  %s2 = inlined_call_operand.vmem [shape: f32[1,168], index: 2, kind: input, shape index: {}]
  %s3 = inlined_call_operand.vmem [shape: bf16[14,27], index: 3, kind: input, shape index: {}]
  %s4 = inlined_call_operand.vmem [shape: bf16[167,84], index: 4, kind: input, shape index: {}]
  %s5 = inlined_call_operand.vmem [shape: bf16[420,160], index: 5, kind: input, shape index: {}]
  %s6 = inlined_call_operand.vmem [shape: f32[1,160], index: 6, kind: input, shape index: {}]
  %s7 = inlined_call_operand.vmem [shape: bf16[5,9], index: 7, kind: input, shape index: {}]
  %s8 = inlined_call_operand.vmem [shape: bf16[159,80], index: 8, kind: input, shape index: {}]
  %s9 = inlined_call_operand.vmem [shape: bf16[5,80,128], index: 9, kind: input, shape index: {}]
  %s10 = inlined_call_operand.vmem [shape: f32[1,128], index: 10, kind: input, shape index: {}]
  %s11 = inlined_call_operand.vmem [shape: bf16[128,128], index: 11, kind: input, shape index: {}]
  %s12 = inlined_call_operand.vmem [shape: f32[1,128], index: 12, kind: input, shape index: {}]
  %s13 = inlined_call_operand.vmem [shape: bf16[128,128], index: 13, kind: input, shape index: {}]
  %s14 = inlined_call_operand.vmem [shape: f32[1,128], index: 14, kind: input, shape index: {}]
  %s15 = inlined_call_operand.hbm [shape: f32[2,128], index: 15, kind: output, shape index: {}]
  %s16 = sld [smem:[#allocation0]]
  $region70: #{tpu_custom_call.1} parent=0
    _
  %s18 = ssub.s32 1, %s16
  %s19 = scalar_select 0, %s18, %s16
  $region1: #{tpu_custom_call.1} parent=0
    #allocation4 [shape = 'u8[1024]{0}', space=vmem, size = 0x400, scoped, tag = 'output window, operand 0, single buffered']
    #allocation5 [shape = 's32[1]{0}', space=sflag, size = 0x4, scoped, tag = 'scoped memory for tpu_custom_call.1']
    %20 = vsyncpa [#allocation5], 0
    // Predicated region
    $region2: #{tpu_custom_call.1} parent=1 // pred_check
      _
    $region3: #{tpu_custom_call.1} parent=1 // pred_check_branch
      %22 = sbr.rel (0) target = $region5
    $region4: #{tpu_custom_call.1} parent=1 // pred_region
      _
    $region5: #{tpu_custom_call.1} parent=1 // pred_fallthru
      _
    // Predicated region
    $region6: #{tpu_custom_call.1} parent=1 // pred_check
      _
    $region7: #{tpu_custom_call.1} parent=1 // pred_check_branch
      %24 = sbr.rel (0) target = $region9
    $region8: #{tpu_custom_call.1} parent=1 // pred_region
      _
    $region9: #{tpu_custom_call.1} parent=1 // pred_fallthru
      _
    // Predicated region
    $region10: #{tpu_custom_call.1} parent=1 // pred_check
      _
    $region11: #{tpu_custom_call.1} parent=1 // pred_check_branch
      %26 = sbr.rel (0) target = $region13
    $region12: #{tpu_custom_call.1} parent=1 // pred_region
      _
    $region13: #{tpu_custom_call.1} parent=1 // pred_fallthru
      _
    // Predicated region
    $region14: #{tpu_custom_call.1} parent=1 // pred_check
      _
    $region15: #{tpu_custom_call.1} parent=1 // pred_check_branch
      %28 = sbr.rel (0) target = $region17
    $region16: #{tpu_custom_call.1} parent=1 // pred_region
      _
    $region17: #{tpu_custom_call.1} parent=1 // pred_fallthru
      _
    // Predicated region
    $region18: #{tpu_custom_call.1} parent=1 // pred_check
      _
    $region19: #{tpu_custom_call.1} parent=1 // pred_check_branch
      %30 = sbr.rel (0) target = $region21
    $region20: #{tpu_custom_call.1} parent=1 // pred_region
      _
    $region21: #{tpu_custom_call.1} parent=1 // pred_fallthru
      _
    // Predicated region
    $region22: #{tpu_custom_call.1} parent=1 // pred_check
      _
    $region23: #{tpu_custom_call.1} parent=1 // pred_check_branch
      %32 = sbr.rel (0) target = $region25
    $region24: #{tpu_custom_call.1} parent=1 // pred_region
      _
    $region25: #{tpu_custom_call.1} parent=1 // pred_fallthru
      _
    // Predicated region
    $region26: #{tpu_custom_call.1} parent=1 // pred_check
      _
    $region27: #{tpu_custom_call.1} parent=1 // pred_check_branch
      %34 = sbr.rel (0) target = $region29
    $region28: #{tpu_custom_call.1} parent=1 // pred_region
      _
    $region29: #{tpu_custom_call.1} parent=1 // pred_fallthru
      _
    // Predicated region
    $region30: #{tpu_custom_call.1} parent=1 // pred_check
      _
    $region31: #{tpu_custom_call.1} parent=1 // pred_check_branch
      %36 = sbr.rel (0) target = $region33
    $region32: #{tpu_custom_call.1} parent=1 // pred_region
      _
    $region33: #{tpu_custom_call.1} parent=1 // pred_fallthru
      _
    // Predicated region
    $region34: #{tpu_custom_call.1} parent=1 // pred_check
      _
    $region35: #{tpu_custom_call.1} parent=1 // pred_check_branch
      %38 = sbr.rel (0) target = $region37
    $region36: #{tpu_custom_call.1} parent=1 // pred_region
      _
    $region37: #{tpu_custom_call.1} parent=1 // pred_fallthru
      _
    // Predicated region
    $region38: #{tpu_custom_call.1} parent=1 // pred_check
      _
    $region39: #{tpu_custom_call.1} parent=1 // pred_check_branch
      %40 = sbr.rel (0) target = $region41
    $region40: #{tpu_custom_call.1} parent=1 // pred_region
      _
    $region41: #{tpu_custom_call.1} parent=1 // pred_fallthru
      _
    // Predicated region
    $region42: #{tpu_custom_call.1} parent=1 // pred_check
      _
    $region43: #{tpu_custom_call.1} parent=1 // pred_check_branch
      %42 = sbr.rel (0) target = $region45
    $region44: #{tpu_custom_call.1} parent=1 // pred_region
      _
    $region45: #{tpu_custom_call.1} parent=1 // pred_fallthru
      _
    // Predicated region
    $region46: #{tpu_custom_call.1} parent=1 // pred_check
      _
    $region47: #{tpu_custom_call.1} parent=1 // pred_check_branch
      %44 = sbr.rel (0) target = $region49
    $region48: #{tpu_custom_call.1} parent=1 // pred_region
      _
    $region49: #{tpu_custom_call.1} parent=1 // pred_fallthru
      _
    // Predicated region
    $region50: #{tpu_custom_call.1} parent=1 // pred_check
      _
    $region51: #{tpu_custom_call.1} parent=1 // pred_check_branch
      %46 = sbr.rel (0) target = $region53
    $region52: #{tpu_custom_call.1} parent=1 // pred_region
      _
    $region53: #{tpu_custom_call.1} parent=1 // pred_fallthru
      _
    // Predicated region
    $region54: #{tpu_custom_call.1} parent=1 // pred_check
      _
    $region55: #{tpu_custom_call.1} parent=1 // pred_check_branch
      %48 = sbr.rel (0) target = $region57
    $region56: #{tpu_custom_call.1} parent=1 // pred_region
      _
    $region57: #{tpu_custom_call.1} parent=1 // pred_fallthru
      _
    // Predicated region
    $region58: #{tpu_custom_call.1} parent=1 // pred_check
      _
    $region59: #{tpu_custom_call.1} parent=1 // pred_check_branch
      %50 = sbr.rel (0) target = $region61
    $region60: #{tpu_custom_call.1} parent=1 // pred_region
      _
    $region61: #{tpu_custom_call.1} parent=1 // pred_fallthru
      _
    %v52 = vld [vmem:[%s0] sm:$0xff]
    %v53 = vld [vmem:[%s0 + $0x8] sm:$0xff]
    %v54 = vld [vmem:[%s0 + $0x10] sm:$0xff]
    %v55 = vld [vmem:[%s0 + $0x18] sm:$0xff]
    %v56 = vld [vmem:[%s0 + $0x20] sm:$0xff]
    %v57 = vld [vmem:[%s0 + $0x28] sm:$0xff]
    %v58 = vld [vmem:[%s0 + $0x30] sm:$0xff]
    %v59 = vld [vmem:[%s0 + $0x38] sm:$0xff]
    %v60 = vmul.f32 %v52, 127.5
    %v61 = vmul.f32 %v53, 127.5
    %v62 = vmul.f32 %v54, 127.5
    %v63 = vmul.f32 %v55, 127.5
    %v64 = vmul.f32 %v56, 127.5
    %v65 = vmul.f32 %v57, 127.5
    %v66 = vmul.f32 %v58, 127.5
    %v67 = vmul.f32 %v59, 127.5
    %v68 = vfloor.f32 %v60
    %v69 = vfloor.f32 %v61
    %v70 = vfloor.f32 %v62
    %v71 = vfloor.f32 %v63
    %v72 = vfloor.f32 %v64
    %v73 = vfloor.f32 %v65
    %v74 = vfloor.f32 %v66
    %v75 = vfloor.f32 %v67
    %v76 = vmax.f32 %v68, -128.0
    %v77 = vmax.f32 %v69, -128.0
    %v78 = vmax.f32 %v70, -128.0
    %v79 = vmax.f32 %v71, -128.0
    %v80 = vmax.f32 %v72, -128.0
    %v81 = vmax.f32 %v73, -128.0
    %v82 = vmax.f32 %v74, -128.0
    %v83 = vmax.f32 %v75, -128.0
    %v84 = vmin.f32 %v76, 127.0
    %v85 = vmin.f32 %v77, 127.0
    %v86 = vmin.f32 %v78, 127.0
    %v87 = vmin.f32 %v79, 127.0
    %v88 = vmin.f32 %v80, 127.0
    %v89 = vmin.f32 %v81, 127.0
    %v90 = vmin.f32 %v82, 127.0
    %v91 = vmin.f32 %v83, 127.0
    %vm92 = vcmask 261120
    %93 = vst.msk [vmem:[#allocation2] sm:$0xff] %vm92, %v84
    %94 = vst.msk [vmem:[#allocation2 + $0x10] sm:$0xff] %vm92, %v85
    %95 = vst.msk [vmem:[#allocation2 + $0x20] sm:$0xff] %vm92, %v86
    %vm96 = vcmask 257024
    %97 = vst.msk [vmem:[#allocation2 + $0x30] sm:$0xf] %vm96, %v87
    %98 = vst.msk [vmem:[#allocation2 + $0x40] sm:$0xff] %vm92, %v88
    %99 = vst.msk [vmem:[#allocation2 + $0x50] sm:$0xff] %vm92, %v89
    %100 = vst.msk [vmem:[#allocation2 + $0x60] sm:$0xff] %vm92, %v90
    %101 = vst.msk [vmem:[#allocation2 + $0x70] sm:$0xf] %vm96, %v91
    %vm110 = vcmask 1046528
    %v111 = vrot.slane %v84, 1
    %v112 = vrot.slane %v85, 1
    %v113 = vsel %vm110, %v111, %v112
    %v114 = vrot.slane %v86, 1
    %v115 = vsel %vm110, %v112, %v114
    %v116 = vrot.slane %v87, 1
    %v117 = vsel %vm110, %v114, %v116
    %v118 = vrot.slane %v88, 1
    %v119 = vrot.slane %v89, 1
    %v120 = vsel %vm110, %v118, %v119
    %v121 = vrot.slane %v90, 1
    %v122 = vsel %vm110, %v119, %v121
    %v123 = vrot.slane %v91, 1
    %v124 = vsel %vm110, %v121, %v123
    %125 = vrot.lane.b32.xlu0 %v113, 32
    %v126 = vpop.permute.xlu0 %125
    %127 = vrot.lane.b32.xlu0 %v115, 32
    %v128 = vpop.permute.xlu0 %127
    %129 = vrot.lane.b32.xlu0 %v117, 32
    %v130 = vpop.permute.xlu0 %129
    %131 = vrot.lane.b32.xlu0 %v116, 32
    %v132 = vpop.permute.xlu0 %131
    %133 = vrot.lane.b32.xlu0 %v120, 32
    %v134 = vpop.permute.xlu0 %133
    %135 = vrot.lane.b32.xlu0 %v122, 32
    %v136 = vpop.permute.xlu0 %135
    %137 = vrot.lane.b32.xlu0 %v124, 32
    %v138 = vpop.permute.xlu0 %137
    %139 = vrot.lane.b32.xlu0 %v123, 32
    %v140 = vpop.permute.xlu0 %139
    %vm149 = vcmask 523520
    %150 = vst.msk [vmem:[#allocation2] sm:$0xff] %vm149, %v126
    %151 = vst.msk [vmem:[#allocation2 + $0x10] sm:$0xff] %vm149, %v128
    %152 = vst.msk [vmem:[#allocation2 + $0x20] sm:$0xff] %vm149, %v130
    %vm153 = vcmask 519424
    %154 = vst.msk [vmem:[#allocation2 + $0x30] sm:$0xf] %vm153, %v132
    %155 = vst.msk [vmem:[#allocation2 + $0x40] sm:$0xff] %vm149, %v134
    %156 = vst.msk [vmem:[#allocation2 + $0x50] sm:$0xff] %vm149, %v136
    %157 = vst.msk [vmem:[#allocation2 + $0x60] sm:$0xff] %vm149, %v138
    %158 = vst.msk [vmem:[#allocation2 + $0x70] sm:$0xf] %vm153, %v140
    %vm159 = vcmask 1045504
    %v160 = vrot.slane %v84, 2
    %v161 = vrot.slane %v85, 2
    %v162 = vsel %vm159, %v160, %v161
    %v163 = vrot.slane %v86, 2
    %v164 = vsel %vm159, %v161, %v163
    %v165 = vrot.slane %v87, 2
    %v166 = vsel %vm159, %v163, %v165
    %v167 = vrot.slane %v88, 2
    %v168 = vrot.slane %v89, 2
    %v169 = vsel %vm159, %v167, %v168
    %v170 = vrot.slane %v90, 2
    %v171 = vsel %vm159, %v168, %v170
    %v172 = vrot.slane %v91, 2
    %v173 = vsel %vm159, %v170, %v172
    %174 = vrot.lane.b32.xlu0 %v162, 64
    %v175 = vpop.permute.xlu0 %174
    %176 = vrot.lane.b32.xlu0 %v164, 64
    %v177 = vpop.permute.xlu0 %176
    %178 = vrot.lane.b32.xlu0 %v166, 64
    %v179 = vpop.permute.xlu0 %178
    %180 = vrot.lane.b32.xlu0 %v165, 64
    %v181 = vpop.permute.xlu0 %180
    %182 = vrot.lane.b32.xlu0 %v169, 64
    %v183 = vpop.permute.xlu0 %182
    %184 = vrot.lane.b32.xlu0 %v171, 64
    %v185 = vpop.permute.xlu0 %184
    %186 = vrot.lane.b32.xlu0 %v173, 64
    %v187 = vpop.permute.xlu0 %186
    %188 = vrot.lane.b32.xlu0 %v172, 64
    %v189 = vpop.permute.xlu0 %188
    %vm198 = vcmask 785920
    %199 = vst.msk [vmem:[#allocation2] sm:$0xff] %vm198, %v175
    %200 = vst.msk [vmem:[#allocation2 + $0x10] sm:$0xff] %vm198, %v177
    %201 = vst.msk [vmem:[#allocation2 + $0x20] sm:$0xff] %vm198, %v179
    %vm202 = vcmask 781824
    %203 = vst.msk [vmem:[#allocation2 + $0x30] sm:$0xf] %vm202, %v181
    %204 = vst.msk [vmem:[#allocation2 + $0x40] sm:$0xff] %vm198, %v183
    %205 = vst.msk [vmem:[#allocation2 + $0x50] sm:$0xff] %vm198, %v185
    %206 = vst.msk [vmem:[#allocation2 + $0x60] sm:$0xff] %vm198, %v187
    %207 = vst.msk [vmem:[#allocation2 + $0x70] sm:$0xf] %vm202, %v189
    %vm208 = vcmask 1044480
    %v209 = vrot.slane %v84, 3
    %v210 = vrot.slane %v85, 3
    %v211 = vsel %vm208, %v209, %v210
    %v212 = vrot.slane %v86, 3
    %v213 = vsel %vm208, %v210, %v212
    %v214 = vrot.slane %v87, 3
    %v215 = vsel %vm208, %v212, %v214
    %v216 = vrot.slane %v88, 3
    %v217 = vrot.slane %v89, 3
    %v218 = vsel %vm208, %v216, %v217
    %v219 = vrot.slane %v90, 3
    %v220 = vsel %vm208, %v217, %v219
    %v221 = vrot.slane %v91, 3
    %v222 = vsel %vm208, %v219, %v221
    %223 = vrot.lane.b32.xlu0 %v211, 96
    %v224 = vpop.permute.xlu0 %223
    %225 = vrot.lane.b32.xlu0 %v213, 96
    %v226 = vpop.permute.xlu0 %225
    %227 = vrot.lane.b32.xlu0 %v215, 96
    %v228 = vpop.permute.xlu0 %227
    %229 = vrot.lane.b32.xlu0 %v214, 96
    %v230 = vpop.permute.xlu0 %229
    %231 = vrot.lane.b32.xlu0 %v218, 96
    %v232 = vpop.permute.xlu0 %231
    %233 = vrot.lane.b32.xlu0 %v220, 96
    %v234 = vpop.permute.xlu0 %233
    %235 = vrot.lane.b32.xlu0 %v222, 96
    %v236 = vpop.permute.xlu0 %235
    %237 = vrot.lane.b32.xlu0 %v221, 96
    %v238 = vpop.permute.xlu0 %237
    %vm247 = vcmask 1048320
    %248 = vst.msk [vmem:[#allocation2] sm:$0xff] %vm247, %v224
    %249 = vst.msk [vmem:[#allocation2 + $0x10] sm:$0xff] %vm247, %v226
    %250 = vst.msk [vmem:[#allocation2 + $0x20] sm:$0xff] %vm247, %v228
    %vm251 = vcmask 1044224
    %252 = vst.msk [vmem:[#allocation2 + $0x30] sm:$0xf] %vm251, %v230
    %253 = vst.msk [vmem:[#allocation2 + $0x40] sm:$0xff] %vm247, %v232
    %254 = vst.msk [vmem:[#allocation2 + $0x50] sm:$0xff] %vm247, %v234
    %255 = vst.msk [vmem:[#allocation2 + $0x60] sm:$0xff] %vm247, %v236
    %256 = vst.msk [vmem:[#allocation2 + $0x70] sm:$0xf] %vm251, %v238
    %vm257 = vcmask 1043456
    %v258 = vrot.slane %v84, 4
    %v259 = vrot.slane %v85, 4
    %v260 = vsel %vm257, %v258, %v259
    %v261 = vrot.slane %v86, 4
    %v262 = vsel %vm257, %v259, %v261
    %v263 = vrot.slane %v87, 4
    %v264 = vsel %vm257, %v261, %v263
    %v265 = vrot.slane %v88, 4
    %v266 = vrot.slane %v89, 4
    %v267 = vsel %vm257, %v265, %v266
    %v268 = vrot.slane %v90, 4
    %v269 = vsel %vm257, %v266, %v268
    %v270 = vrot.slane %v91, 4
    %v271 = vsel %vm257, %v268, %v270
    %280 = vst.msk [vmem:[#allocation2 + $0x8] sm:$0xff] %vm92, %v260
    %281 = vst.msk [vmem:[#allocation2 + $0x18] sm:$0xff] %vm92, %v262
    %282 = vst.msk [vmem:[#allocation2 + $0x28] sm:$0xff] %vm92, %v264
    %283 = vst.msk [vmem:[#allocation2 + $0x38] sm:$0xf] %vm96, %v263
    %284 = vst.msk [vmem:[#allocation2 + $0x48] sm:$0xff] %vm92, %v267
    %285 = vst.msk [vmem:[#allocation2 + $0x58] sm:$0xff] %vm92, %v269
    %286 = vst.msk [vmem:[#allocation2 + $0x68] sm:$0xff] %vm92, %v271
    %287 = vst.msk [vmem:[#allocation2 + $0x78] sm:$0xf] %vm96, %v270
    %v288 = vld [vmem:[%s1] sm:$0xff]
    %v289 = vld [vmem:[%s1 + $0x8] sm:$0xff]
    %v290 = vld [vmem:[%s1 + $0x10] sm:$0xff]
    %v291 = vld [vmem:[%s1 + $0x18] sm:$0xff]
    %v292 = vld [vmem:[%s1 + $0x20] sm:$0xff]
    %v293 = vld [vmem:[%s1 + $0x28] sm:$0xff]
    %v294 = vld [vmem:[%s1 + $0x30] sm:$0xff]
    %v295 = vld [vmem:[%s1 + $0x38] sm:$0xff]
    %v296 = vld [vmem:[%s1 + $0x40] sm:$0xff]
    %v297 = vld [vmem:[%s1 + $0x48] sm:$0xff]
    %v298 = vld [vmem:[%s1 + $0x50] sm:$0xff]
    %v299 = vld [vmem:[%s1 + $0x58] sm:$0xff]
    %v300 = vld [vmem:[%s1 + $0x60] sm:$0xff]
    %v301 = vld [vmem:[%s1 + $0x68] sm:$0xff]
    %v302 = vld [vmem:[%s1 + $0x70] sm:$0xff]
    %v303 = vld [vmem:[%s1 + $0x78] sm:$0xff]
    %v304 = vld [vmem:[%s1 + $0x80] sm:$0xff]
    %v305 = vld [vmem:[%s1 + $0x88] sm:$0xff]
    %v306 = vld [vmem:[%s1 + $0x90] sm:$0xff]
    %v307 = vld [vmem:[%s1 + $0x98] sm:$0xff]
    %v308 = vld [vmem:[%s2] sm:$0x3]
    %v309 = vld [vmem:[%s3] sm:$0xf]
    %v310 = vld [vmem:[%s3 + $0x4] sm:$0x7]
    %v311 = vld [vmem:[%s4] sm:$0xf]
    %v312 = vld [vmem:[%s4 + $0x4] sm:$0xf]
    %v313 = vld [vmem:[%s4 + $0x8] sm:$0xf]
    %v314 = vld [vmem:[%s4 + $0xc] sm:$0xf]
    %v315 = vld [vmem:[%s4 + $0x10] sm:$0xf]
    %v316 = vld [vmem:[%s4 + $0x14] sm:$0xf]
    %v317 = vld [vmem:[%s4 + $0x18] sm:$0xf]
    %v318 = vld [vmem:[%s4 + $0x1c] sm:$0xf]
    %v319 = vld [vmem:[%s4 + $0x20] sm:$0xf]
    %v320 = vld [vmem:[%s4 + $0x24] sm:$0xf]
    %v321 = vld [vmem:[%s4 + $0x28] sm:$0xf]
    %v322 = vld [vmem:[%s4 + $0x2c] sm:$0xf]
    %v323 = vld [vmem:[%s4 + $0x30] sm:$0xf]
    %v324 = vld [vmem:[%s4 + $0x34] sm:$0xf]
    %v325 = vld [vmem:[%s4 + $0x38] sm:$0xf]
    %v326 = vld [vmem:[%s4 + $0x3c] sm:$0xf]
    %v327 = vld [vmem:[%s4 + $0x40] sm:$0xf]
    %v328 = vld [vmem:[%s4 + $0x44] sm:$0xf]
    %v329 = vld [vmem:[%s4 + $0x48] sm:$0xf]
    %v330 = vld [vmem:[%s4 + $0x4c] sm:$0xf]
    %v331 = vld [vmem:[%s4 + $0x50] sm:$0xf]
    %v332 = vld [vmem:[%s5] sm:$0xff]
    %v333 = vld [vmem:[%s5 + $0x8] sm:$0xff]
    %v334 = vld [vmem:[%s5 + $0x10] sm:$0xff]
    %v335 = vld [vmem:[%s5 + $0x18] sm:$0xff]
    %v336 = vld [vmem:[%s5 + $0x20] sm:$0xff]
    %v337 = vld [vmem:[%s5 + $0x28] sm:$0xff]
    %v338 = vld [vmem:[%s5 + $0x30] sm:$0xff]
    %v339 = vld [vmem:[%s5 + $0x38] sm:$0xff]
    %v340 = vld [vmem:[%s5 + $0x40] sm:$0xff]
    %v341 = vld [vmem:[%s5 + $0x48] sm:$0xff]
    %v342 = vld [vmem:[%s5 + $0x50] sm:$0xff]
    %v343 = vld [vmem:[%s5 + $0x58] sm:$0xff]
    %v344 = vld [vmem:[%s5 + $0x60] sm:$0xff]
    %v345 = vld [vmem:[%s5 + $0x68] sm:$0xff]
    %v346 = vld [vmem:[%s5 + $0x70] sm:$0xff]
    %v347 = vld [vmem:[%s5 + $0x78] sm:$0xff]
    %v348 = vld [vmem:[%s5 + $0x80] sm:$0xff]
    %v349 = vld [vmem:[%s5 + $0x88] sm:$0xff]
    %v350 = vld [vmem:[%s5 + $0x90] sm:$0xff]
    %v351 = vld [vmem:[%s5 + $0x98] sm:$0xff]
    %v352 = vld [vmem:[%s5 + $0xa0] sm:$0xff]
    %v353 = vld [vmem:[%s5 + $0xa8] sm:$0xff]
    %v354 = vld [vmem:[%s5 + $0xb0] sm:$0xff]
    %v355 = vld [vmem:[%s5 + $0xb8] sm:$0xff]
    %v356 = vld [vmem:[%s5 + $0xc0] sm:$0xff]
    %v357 = vld [vmem:[%s5 + $0xc8] sm:$0xff]
    %v358 = vld [vmem:[%s5 + $0xd0] sm:$0xff]
    %v359 = vld [vmem:[%s5 + $0xd8] sm:$0xff]
    %v360 = vld [vmem:[%s5 + $0xe0] sm:$0xff]
    %v361 = vld [vmem:[%s5 + $0xe8] sm:$0xff]
    %v362 = vld [vmem:[%s5 + $0xf0] sm:$0xff]
    %v363 = vld [vmem:[%s5 + $0xf8] sm:$0xff]
    %v364 = vld [vmem:[%s5 + $0x100] sm:$0xff]
    %v365 = vld [vmem:[%s5 + $0x108] sm:$0xff]
    %v366 = vld [vmem:[%s5 + $0x110] sm:$0xff]
    %v367 = vld [vmem:[%s5 + $0x118] sm:$0xff]
    %v368 = vld [vmem:[%s5 + $0x120] sm:$0xff]
    %v369 = vld [vmem:[%s5 + $0x128] sm:$0xff]
    %v370 = vld [vmem:[%s5 + $0x130] sm:$0xff]
    %v371 = vld [vmem:[%s5 + $0x138] sm:$0xff]
    %v372 = vld [vmem:[%s5 + $0x140] sm:$0xff]
    %v373 = vld [vmem:[%s5 + $0x148] sm:$0xff]
    %v374 = vld [vmem:[%s5 + $0x150] sm:$0xff]
    %v375 = vld [vmem:[%s5 + $0x158] sm:$0xff]
    %v376 = vld [vmem:[%s5 + $0x160] sm:$0xff]
    %v377 = vld [vmem:[%s5 + $0x168] sm:$0xff]
    %v378 = vld [vmem:[%s5 + $0x170] sm:$0xff]
    %v379 = vld [vmem:[%s5 + $0x178] sm:$0xff]
    %v380 = vld [vmem:[%s5 + $0x180] sm:$0xff]
    %v381 = vld [vmem:[%s5 + $0x188] sm:$0xff]
    %v382 = vld [vmem:[%s5 + $0x190] sm:$0xff]
    %v383 = vld [vmem:[%s5 + $0x198] sm:$0xff]
    %v384 = vld [vmem:[%s5 + $0x1a0] sm:$0x33]
    %v385 = vld [vmem:[%s6] sm:$0x3]
    %v386 = vld [vmem:[%s7] sm:$0x7]
    %v387 = vld [vmem:[%s8] sm:$0xf]
    %v388 = vld [vmem:[%s8 + $0x4] sm:$0xf]
    %v389 = vld [vmem:[%s8 + $0x8] sm:$0xf]
    %v390 = vld [vmem:[%s8 + $0xc] sm:$0xf]
    %v391 = vld [vmem:[%s8 + $0x10] sm:$0xf]
    %v392 = vld [vmem:[%s8 + $0x14] sm:$0xf]
    %v393 = vld [vmem:[%s8 + $0x18] sm:$0xf]
    %v394 = vld [vmem:[%s8 + $0x1c] sm:$0xf]
    %v395 = vld [vmem:[%s8 + $0x20] sm:$0xf]
    %v396 = vld [vmem:[%s8 + $0x24] sm:$0xf]
    %v397 = vld [vmem:[%s8 + $0x28] sm:$0xf]
    %v398 = vld [vmem:[%s8 + $0x2c] sm:$0xf]
    %v399 = vld [vmem:[%s8 + $0x30] sm:$0xf]
    %v400 = vld [vmem:[%s8 + $0x34] sm:$0xf]
    %v401 = vld [vmem:[%s8 + $0x38] sm:$0xf]
    %v402 = vld [vmem:[%s8 + $0x3c] sm:$0xf]
    %v403 = vld [vmem:[%s8 + $0x40] sm:$0xf]
    %v404 = vld [vmem:[%s8 + $0x44] sm:$0xf]
    %v405 = vld [vmem:[%s8 + $0x48] sm:$0xf]
    %v406 = vld [vmem:[%s8 + $0x4c] sm:$0xf]
    %v407 = vld [vmem:[%s9] sm:$0xf]
    %v408 = vld [vmem:[%s9 + $0x4] sm:$0xf]
    %v409 = vld [vmem:[%s9 + $0x8] sm:$0xf]
    %v410 = vld [vmem:[%s9 + $0xc] sm:$0xf]
    %v411 = vld [vmem:[%s9 + $0x10] sm:$0xf]
    %v412 = vld [vmem:[%s9 + $0x14] sm:$0xf]
    %v413 = vld [vmem:[%s9 + $0x18] sm:$0xf]
    %v414 = vld [vmem:[%s9 + $0x1c] sm:$0xf]
    %v415 = vld [vmem:[%s9 + $0x20] sm:$0xf]
    %v416 = vld [vmem:[%s9 + $0x24] sm:$0xf]
    %s417 = scalar_lea.vmem %s9, 40
    %v418 = vld [vmem:[%s417] sm:$0xf]
    %v419 = vld [vmem:[%s417 + $0x4] sm:$0xf]
    %v420 = vld [vmem:[%s417 + $0x8] sm:$0xf]
    %v421 = vld [vmem:[%s417 + $0xc] sm:$0xf]
    %v422 = vld [vmem:[%s417 + $0x10] sm:$0xf]
    %v423 = vld [vmem:[%s417 + $0x14] sm:$0xf]
    %v424 = vld [vmem:[%s417 + $0x18] sm:$0xf]
    %v425 = vld [vmem:[%s417 + $0x1c] sm:$0xf]
    %v426 = vld [vmem:[%s417 + $0x20] sm:$0xf]
    %v427 = vld [vmem:[%s417 + $0x24] sm:$0xf]
    %s428 = scalar_lea.vmem %s9, 80
    %v429 = vld [vmem:[%s428] sm:$0xf]
    %v430 = vld [vmem:[%s428 + $0x4] sm:$0xf]
    %v431 = vld [vmem:[%s428 + $0x8] sm:$0xf]
    %v432 = vld [vmem:[%s428 + $0xc] sm:$0xf]
    %v433 = vld [vmem:[%s428 + $0x10] sm:$0xf]
    %v434 = vld [vmem:[%s428 + $0x14] sm:$0xf]
    %v435 = vld [vmem:[%s428 + $0x18] sm:$0xf]
    %v436 = vld [vmem:[%s428 + $0x1c] sm:$0xf]
    %v437 = vld [vmem:[%s428 + $0x20] sm:$0xf]
    %v438 = vld [vmem:[%s428 + $0x24] sm:$0xf]
    %s439 = scalar_lea.vmem %s9, 120
    %v440 = vld [vmem:[%s439] sm:$0xf]
    %v441 = vld [vmem:[%s439 + $0x4] sm:$0xf]
    %v442 = vld [vmem:[%s439 + $0x8] sm:$0xf]
    %v443 = vld [vmem:[%s439 + $0xc] sm:$0xf]
    %v444 = vld [vmem:[%s439 + $0x10] sm:$0xf]
    %v445 = vld [vmem:[%s439 + $0x14] sm:$0xf]
    %v446 = vld [vmem:[%s439 + $0x18] sm:$0xf]
    %v447 = vld [vmem:[%s439 + $0x1c] sm:$0xf]
    %v448 = vld [vmem:[%s439 + $0x20] sm:$0xf]
    %v449 = vld [vmem:[%s439 + $0x24] sm:$0xf]
    %s450 = scalar_lea.vmem %s9, 160
    %v451 = vld [vmem:[%s450] sm:$0xf]
    %v452 = vld [vmem:[%s450 + $0x4] sm:$0xf]
    %v453 = vld [vmem:[%s450 + $0x8] sm:$0xf]
    %v454 = vld [vmem:[%s450 + $0xc] sm:$0xf]
    %v455 = vld [vmem:[%s450 + $0x10] sm:$0xf]
    %v456 = vld [vmem:[%s450 + $0x14] sm:$0xf]
    %v457 = vld [vmem:[%s450 + $0x18] sm:$0xf]
    %v458 = vld [vmem:[%s450 + $0x1c] sm:$0xf]
    %v459 = vld [vmem:[%s450 + $0x20] sm:$0xf]
    %v460 = vld [vmem:[%s450 + $0x24] sm:$0xf]
    %v461 = vld [vmem:[%s10] sm:$0x1]
    %v462 = vld [vmem:[%s11] sm:$0xf]
    %v463 = vld [vmem:[%s11 + $0x4] sm:$0xf]
    %v464 = vld [vmem:[%s11 + $0x8] sm:$0xf]
    %v465 = vld [vmem:[%s11 + $0xc] sm:$0xf]
    %v466 = vld [vmem:[%s11 + $0x10] sm:$0xf]
    %v467 = vld [vmem:[%s11 + $0x14] sm:$0xf]
    %v468 = vld [vmem:[%s11 + $0x18] sm:$0xf]
    %v469 = vld [vmem:[%s11 + $0x1c] sm:$0xf]
    %v470 = vld [vmem:[%s11 + $0x20] sm:$0xf]
    %v471 = vld [vmem:[%s11 + $0x24] sm:$0xf]
    %v472 = vld [vmem:[%s11 + $0x28] sm:$0xf]
    %v473 = vld [vmem:[%s11 + $0x2c] sm:$0xf]
    %v474 = vld [vmem:[%s11 + $0x30] sm:$0xf]
    %v475 = vld [vmem:[%s11 + $0x34] sm:$0xf]
    %v476 = vld [vmem:[%s11 + $0x38] sm:$0xf]
    %v477 = vld [vmem:[%s11 + $0x3c] sm:$0xf]
    %v478 = vld [vmem:[%s12] sm:$0x1]
    %v479 = vld [vmem:[%s13] sm:$0xf]
    %v480 = vld [vmem:[%s13 + $0x4] sm:$0xf]
    %v481 = vld [vmem:[%s13 + $0x8] sm:$0xf]
    %v482 = vld [vmem:[%s13 + $0xc] sm:$0xf]
    %v483 = vld [vmem:[%s13 + $0x10] sm:$0xf]
    %v484 = vld [vmem:[%s13 + $0x14] sm:$0xf]
    %v485 = vld [vmem:[%s13 + $0x18] sm:$0xf]
    %v486 = vld [vmem:[%s13 + $0x1c] sm:$0xf]
    %v487 = vld [vmem:[%s13 + $0x20] sm:$0xf]
    %v488 = vld [vmem:[%s13 + $0x24] sm:$0xf]
    %v489 = vld [vmem:[%s13 + $0x28] sm:$0xf]
    %v490 = vld [vmem:[%s13 + $0x2c] sm:$0xf]
    %v491 = vld [vmem:[%s13 + $0x30] sm:$0xf]
    %v492 = vld [vmem:[%s13 + $0x34] sm:$0xf]
    %v493 = vld [vmem:[%s13 + $0x38] sm:$0xf]
    %v494 = vld [vmem:[%s13 + $0x3c] sm:$0xf]
    %v495 = vld [vmem:[%s14] sm:$0x1]
    %v496 = vld [vmem:[#allocation2] sm:$0xff]
    %v497 = vld [vmem:[#allocation2 + $0x8] sm:$0xff]
    %v498 = vld [vmem:[#allocation2 + $0x10] sm:$0xff]
    %v499 = vld [vmem:[#allocation2 + $0x18] sm:$0xff]
    %v500 = vld [vmem:[#allocation2 + $0x20] sm:$0xff]
    %v501 = vld [vmem:[#allocation2 + $0x28] sm:$0xff]
    %v502 = vld [vmem:[#allocation2 + $0x30] sm:$0xf]
    %v503 = vld [vmem:[#allocation2 + $0x38] sm:$0xf]
    %v504 = vpack.c.bf16 %v498, %v496
    %v505 = vpack.c.bf16 %v499, %v497
    %v506 = vpack.c.bf16 %v502, %v500
    %v507 = vpack.c.bf16 %v503, %v501
    %v509 = vperm.slane %v308, 0
    %v510 = vperm.slane %v308, 1
    %v533 = vunpack.c.l.b16 %v288
    %v534 = vunpack.c.h.b16 %v288
    %v535 = vunpack.c.l.b16 %v289
    %v536 = vunpack.c.h.b16 %v289
    %v537 = vunpack.c.l.b16 %v290
    %v538 = vunpack.c.h.b16 %v290
    %v539 = vunpack.c.l.b16 %v291
    %v540 = vunpack.c.h.b16 %v291
    %v541 = vunpack.c.l.b16 %v292
    %v542 = vunpack.c.h.b16 %v292
    %v543 = vunpack.c.l.b16 %v293
    %v544 = vunpack.c.h.b16 %v293
    %v545 = vunpack.c.l.b16 %v294
    %v546 = vunpack.c.h.b16 %v294
    %v547 = vunpack.c.l.b16 %v295
    %v548 = vunpack.c.h.b16 %v295
    %v549 = vunpack.c.l.b16 %v296
    %v550 = vunpack.c.h.b16 %v296
    %v551 = vunpack.c.l.b16 %v297
    %v552 = vunpack.c.h.b16 %v297
    %v553 = vunpack.c.l.b16 %v298
    %v554 = vunpack.c.h.b16 %v298
    %v555 = vunpack.c.l.b16 %v299
    %v556 = vunpack.c.h.b16 %v299
    %v557 = vunpack.c.l.b16 %v300
    %v558 = vunpack.c.h.b16 %v300
    %v559 = vunpack.c.l.b16 %v301
    %v560 = vunpack.c.h.b16 %v301
    %v561 = vunpack.c.l.b16 %v302
    %v562 = vunpack.c.h.b16 %v302
    %v563 = vunpack.c.l.b16 %v303
    %v564 = vunpack.c.h.b16 %v303
    %v565 = vunpack.c.l.b16 %v304
    %v566 = vunpack.c.h.b16 %v304
    %v567 = vunpack.c.l.b16 %v305
    %v568 = vunpack.c.h.b16 %v305
    %v569 = vunpack.c.l.b16 %v306
    %v570 = vunpack.c.h.b16 %v306
    %v571 = vunpack.c.l.b16 %v307
    %v572 = vunpack.c.h.b16 %v307
    %v573 = vpack.c.b16 %v535, %v533
    %v574 = vpack.c.b16 %v536, %v534
    %v575 = vpack.c.b16 %v539, %v537
    %v576 = vpack.c.b16 %v540, %v538
    %v577 = vpack.c.b16 %v543, %v541
    %v578 = vpack.c.b16 %v544, %v542
    %v579 = vpack.c.b16 %v547, %v545
    %v580 = vpack.c.b16 %v548, %v546
    %v581 = vpack.c.b16 %v551, %v549
    %v582 = vpack.c.b16 %v552, %v550
    %v583 = vpack.c.b16 %v555, %v553
    %v584 = vpack.c.b16 %v556, %v554
    %v585 = vpack.c.b16 %v559, %v557
    %v586 = vpack.c.b16 %v560, %v558
    %v587 = vpack.c.b16 %v563, %v561
    %v588 = vpack.c.b16 %v564, %v562
    %v589 = vpack.c.b16 %v567, %v565
    %v590 = vpack.c.b16 %v568, %v566
    %v591 = vpack.c.b16 %v571, %v569
    %v592 = vpack.c.b16 %v572, %v570
    %v614 = vsel %vm92, %v505, 0
    %v617 = vsel %vm92, %v507, 0
    %619 = vmatpush.bf16.msra.mxu0 %v587
    %620 = vmatpush.bf16.msra.mxu0 %v585
    %621 = vmatpush.bf16.msra.mxu0 %v583
    %622 = vmatpush.bf16.msra.mxu0 %v581
    %623 = vmatpush.bf16.msra.mxu0 %v579
    %624 = vmatpush.bf16.msra.mxu0 %v577
    %625 = vmatpush.bf16.msra.mxu0 %v575
    %626 = vmatpush.bf16.msra.mxu0 %v573
    %627 = vmatmul.bf16.gmra.mxu0 %v504
    %v628 = vpop.f32.mrf.mxu0
    %v629 = vadd.f32 %v509, %v628
    %v630 = vpop.f32.mrf.mxu0
    %v631 = vadd.f32 %v509, %v630
    %632 = vmatmul.bf16.gmra.mxu0 %v506
    %v633 = vpop.f32.mrf.mxu0
    %v634 = vadd.f32 %v509, %v633
    %v635 = vpop.f32.mrf.mxu0
    %v636 = vadd.f32 %v509, %v635
    %637 = vdwg.mxu0
    %638 = vmatpush.bf16.msra.mxu0 0
    %639 = vmatpush.bf16.msra.mxu0 0
    %640 = vmatpush.bf16.msra.mxu0 0
    %641 = vmatpush.bf16.msra.mxu0 0
    %642 = vmatpush.bf16.msra.mxu0 0
    %643 = vmatpush.bf16.msra.mxu0 0
    %644 = vmatpush.bf16.msra.mxu0 %v591
    %645 = vmatpush.bf16.msra.mxu0 %v589
    %646 = vmatmul.bf16.gmra.mxu0 %v614
    %v647 = vpop.f32.mrf.mxu0
    %v648 = vadd.f32 %v629, %v647
    %v649 = vpop.f32.mrf.mxu0
    %v650 = vadd.f32 %v631, %v649
    %651 = vmatmul.bf16.gmra.mxu0 %v617
    %v652 = vpop.f32.mrf.mxu0
    %v653 = vadd.f32 %v634, %v652
    %v654 = vpop.f32.mrf.mxu0
    %v655 = vadd.f32 %v636, %v654
    %656 = vdwg.mxu0
    %657 = vmatpush.bf16.msra.mxu0 %v588
    %658 = vmatpush.bf16.msra.mxu0 %v586
    %659 = vmatpush.bf16.msra.mxu0 %v584
    %660 = vmatpush.bf16.msra.mxu0 %v582
    %661 = vmatpush.bf16.msra.mxu0 %v580
    %662 = vmatpush.bf16.msra.mxu0 %v578
    %663 = vmatpush.bf16.msra.mxu0 %v576
    %664 = vmatpush.bf16.msra.mxu0 %v574
    %665 = vmatmul.bf16.gmra.mxu0 %v504
    %v666 = vpop.f32.mrf.mxu0
    %v667 = vadd.f32 %v510, %v666
    %v668 = vpop.f32.mrf.mxu0
    %v669 = vadd.f32 %v510, %v668
    %670 = vmatmul.bf16.gmra.mxu0 %v506
    %v671 = vpop.f32.mrf.mxu0
    %v672 = vadd.f32 %v510, %v671
    %v673 = vpop.f32.mrf.mxu0
    %v674 = vadd.f32 %v510, %v673
    %675 = vdwg.mxu0
    %676 = vmatpush.bf16.msra.mxu0 0
    %677 = vmatpush.bf16.msra.mxu0 0
    %678 = vmatpush.bf16.msra.mxu0 0
    %679 = vmatpush.bf16.msra.mxu0 0
    %680 = vmatpush.bf16.msra.mxu0 0
    %681 = vmatpush.bf16.msra.mxu0 0
    %682 = vmatpush.bf16.msra.mxu0 %v592
    %683 = vmatpush.bf16.msra.mxu0 %v590
    %684 = vmatmul.bf16.gmra.mxu0 %v614
    %v685 = vpop.f32.mrf.mxu0
    %v686 = vadd.f32 %v667, %v685
    %v687 = vpop.f32.mrf.mxu0
    %v688 = vadd.f32 %v669, %v687
    %689 = vmatmul.bf16.gmra.mxu0 %v617
    %v690 = vpop.f32.mrf.mxu0
    %v691 = vadd.f32 %v672, %v690
    %v692 = vpop.f32.mrf.mxu0
    %v693 = vadd.f32 %v674, %v692
    %694 = vdwg.mxu0
    %v695 = vmax.f32 %v648, 0.0
    %v696 = vmax.f32 %v686, 0.0
    %v697 = vmax.f32 %v650, 0.0
    %v698 = vmax.f32 %v688, 0.0
    %v699 = vmax.f32 %v653, 0.0
    %v700 = vmax.f32 %v691, 0.0
    %v701 = vmax.f32 %v655, 0.0
    %v702 = vmax.f32 %v693, 0.0
    %v703 = vmul.f32 %v695, 2.6666718
    %v704 = vmul.f32 %v696, 2.6666718
    %v705 = vmul.f32 %v697, 2.6666718
    %v706 = vmul.f32 %v698, 2.6666718
    %v707 = vmul.f32 %v699, 2.6666718
    %v708 = vmul.f32 %v700, 2.6666718
    %v709 = vmul.f32 %v701, 2.6666718
    %v710 = vmul.f32 %v702, 2.6666718
    %v711 = vfloor.f32 %v703
    %v712 = vfloor.f32 %v704
    %v713 = vfloor.f32 %v705
    %v714 = vfloor.f32 %v706
    %v715 = vfloor.f32 %v707
    %v716 = vfloor.f32 %v708
    %v717 = vfloor.f32 %v709
    %v718 = vfloor.f32 %v710
    %v719 = vmax.f32 %v711, -128.0
    %v720 = vmax.f32 %v712, -128.0
    %v721 = vmax.f32 %v713, -128.0
    %v722 = vmax.f32 %v714, -128.0
    %v723 = vmax.f32 %v715, -128.0
    %v724 = vmax.f32 %v716, -128.0
    %v725 = vmax.f32 %v717, -128.0
    %v726 = vmax.f32 %v718, -128.0
    %v727 = vmin.f32 %v719, 127.0
    %v728 = vmin.f32 %v720, 127.0
    %v729 = vmin.f32 %v721, 127.0
    %v730 = vmin.f32 %v722, 127.0
    %v731 = vmin.f32 %v723, 127.0
    %v732 = vmin.f32 %v724, 127.0
    %v733 = vmin.f32 %v725, 127.0
    %v734 = vmin.f32 %v726, 127.0
    %743 = vrot.lane.b32.xlu0 %v727, 127
    %v744 = vpop.permute.xlu0 %743
    %745 = vrot.lane.b32.xlu0 %v728, 127
    %v746 = vpop.permute.xlu0 %745
    %747 = vrot.lane.b32.xlu0 %v729, 127
    %v748 = vpop.permute.xlu0 %747
    %749 = vrot.lane.b32.xlu0 %v730, 127
    %v750 = vpop.permute.xlu0 %749
    %751 = vrot.lane.b32.xlu0 %v731, 127
    %v752 = vpop.permute.xlu0 %751
    %753 = vrot.lane.b32.xlu0 %v732, 127
    %v754 = vpop.permute.xlu0 %753
    %755 = vrot.lane.b32.xlu0 %v733, 127
    %v756 = vpop.permute.xlu0 %755
    %757 = vrot.lane.b32.xlu0 %v734, 127
    %v758 = vpop.permute.xlu0 %757
    %vm759 = vcmask 1039360
    %v760 = vsel %vm759, %v744, %v746
    %v761 = vsel %vm759, %v748, %v750
    %v762 = vsel %vm759, %v752, %v754
    %v763 = vsel %vm759, %v756, %v758
    %v772 = vmax.f32 %v727, %v760
    %v773 = vmax.f32 %v728, %v746
    %v774 = vmax.f32 %v729, %v761
    %v775 = vmax.f32 %v730, %v750
    %v776 = vmax.f32 %v731, %v762
    %v777 = vmax.f32 %v732, %v754
    %v778 = vmax.f32 %v733, %v763
    %v779 = vmax.f32 %v734, %v758
    %v788 = vrot.slane %v772, 1
    %v789 = vrot.slane %v774, 1
    %v790 = vsel %vm110, %v788, %v789
    %v791 = vrot.slane %v773, 1
    %v792 = vrot.slane %v775, 1
    %v793 = vsel %vm110, %v791, %v792
    %v794 = vrot.slane %v776, 1
    %v795 = vsel %vm110, %v789, %v794
    %v796 = vrot.slane %v777, 1
    %v797 = vsel %vm110, %v792, %v796
    %v798 = vrot.slane %v778, 1
    %v799 = vsel %vm110, %v794, %v798
    %v800 = vrot.slane %v779, 1
    %v801 = vsel %vm110, %v796, %v800
    %v810 = vmax.f32 %v772, %v790
    %v811 = vmax.f32 %v773, %v793
    %v812 = vmax.f32 %v774, %v795
    %v813 = vmax.f32 %v775, %v797
    %v814 = vmax.f32 %v776, %v799
    %v815 = vmax.f32 %v777, %v801
    %v816 = vmax.f32 %v778, %v798
    %v817 = vmax.f32 %v779, %v800
    %v818 = vpack.c.bf16 %v812, %v810
    %v819 = vpack.c.bf16 %v813, %v811
    %v820 = vpack.c.bf16 %v816, %v814
    %v821 = vpack.c.bf16 %v817, %v815
    %v824 = vunpack.c.l.b16 %v309
    %v825 = vunpack.c.l.b16 %v310
    %v826 = vpack.c.b16 %v825, %v824
    %vm827 = vcmask 220160
    %v829 = vsel %vm827, %v826, 0
    %v831 = vsel %vm208, 4294967295, 65535
    %v832 = vsel %vm159, %v831, 0
    %v834 = vand.u32 %v820, %v832
    %v837 = vand.u32 %v821, %v832
    %839 = vmatpush.bf16.msra.mxu0 0
    %840 = vmatpush.bf16.msra.mxu0 0
    %841 = vmatpush.bf16.msra.mxu0 0
    %842 = vmatpush.bf16.msra.mxu0 0
    %843 = vmatpush.bf16.msra.mxu0 0
    %844 = vmatpush.bf16.msra.mxu0 0
    %845 = vmatpush.bf16.msra.mxu0 %v834
    %846 = vmatpush.bf16.msra.mxu0 %v818
    %847 = vmatmul.bf16.gmra.mxu0 %v829
    %v848 = vpop.f32.mrf.mxu0
    %v849 = vadd.f32 0.0, %v848
    %v850 = vpop.f32.mrf.mxu0
    %v851 = vadd.f32 0.0, %v850
    %852 = vdwg.mxu0
    %853 = vmatpush.bf16.msra.mxu0 0
    %854 = vmatpush.bf16.msra.mxu0 0
    %855 = vmatpush.bf16.msra.mxu0 0
    %856 = vmatpush.bf16.msra.mxu0 0
    %857 = vmatpush.bf16.msra.mxu0 0
    %858 = vmatpush.bf16.msra.mxu0 0
    %859 = vmatpush.bf16.msra.mxu0 %v837
    %860 = vmatpush.bf16.msra.mxu0 %v819
    %861 = vmatmul.bf16.gmra.mxu0 %v829
    %v862 = vpop.f32.mrf.mxu0
    %v863 = vadd.f32 0.0, %v862
    %v864 = vpop.f32.mrf.mxu0
    %v865 = vadd.f32 0.0, %v864
    %866 = vdwg.mxu0
    %v867 = vpack.c.bf16 %v851, %v849
    %v868 = vpack.c.bf16 %v865, %v863
    %v890 = vunpack.c.l.b16 %v311
    %v891 = vunpack.c.l.b16 %v312
    %v892 = vunpack.c.l.b16 %v313
    %v893 = vunpack.c.l.b16 %v314
    %v894 = vunpack.c.l.b16 %v315
    %v895 = vunpack.c.l.b16 %v316
    %v896 = vunpack.c.l.b16 %v317
    %v897 = vunpack.c.l.b16 %v318
    %v898 = vunpack.c.l.b16 %v319
    %v899 = vunpack.c.l.b16 %v320
    %v900 = vunpack.c.l.b16 %v321
    %v901 = vunpack.c.l.b16 %v322
    %v902 = vunpack.c.l.b16 %v323
    %v903 = vunpack.c.l.b16 %v324
    %v904 = vunpack.c.l.b16 %v325
    %v905 = vunpack.c.l.b16 %v326
    %v906 = vunpack.c.l.b16 %v327
    %v907 = vunpack.c.l.b16 %v328
    %v908 = vunpack.c.l.b16 %v329
    %v909 = vunpack.c.l.b16 %v330
    %v910 = vunpack.c.l.b16 %v331
    %v911 = vpack.c.b16 %v891, %v890
    %v912 = vpack.c.b16 %v893, %v892
    %v913 = vpack.c.b16 %v895, %v894
    %v914 = vpack.c.b16 %v897, %v896
    %v915 = vpack.c.b16 %v899, %v898
    %v916 = vpack.c.b16 %v901, %v900
    %v917 = vpack.c.b16 %v903, %v902
    %v918 = vpack.c.b16 %v905, %v904
    %v919 = vpack.c.b16 %v907, %v906
    %v920 = vpack.c.b16 %v909, %v908
    %v921 = vpack.c.b16 %v910, %v910
    %vm932 = vcmask 318464
    %v934 = vsel %vm932, %v868, 0
    %vm936 = vcmask 1042432
    %v937 = vsel %vm936, 4294967295, 65535
    %v938 = vsel %vm257, %v937, 0
    %v940 = vand.u32 %v921, %v938
    %942 = vmatpush.bf16.msra.mxu0 %v918
    %943 = vmatpush.bf16.msra.mxu0 %v917
    %944 = vmatpush.bf16.msra.mxu0 %v916
    %945 = vmatpush.bf16.msra.mxu0 %v915
    %946 = vmatpush.bf16.msra.mxu0 %v914
    %947 = vmatpush.bf16.msra.mxu0 %v913
    %948 = vmatpush.bf16.msra.mxu0 %v912
    %949 = vmatpush.bf16.msra.mxu0 %v911
    %950 = vmatmul.bf16.gmra.mxu0 %v867
    %v951 = vpop.f32.mrf.mxu0
    %v952 = vadd.f32 0.0, %v951
    %v953 = vpop.f32.mrf.mxu0
    %v954 = vadd.f32 0.0, %v953
    %955 = vdwg.mxu0
    %956 = vmatpush.bf16.msra.mxu0 0
    %957 = vmatpush.bf16.msra.mxu0 0
    %958 = vmatpush.bf16.msra.mxu0 0
    %959 = vmatpush.bf16.msra.mxu0 0
    %960 = vmatpush.bf16.msra.mxu0 0
    %961 = vmatpush.bf16.msra.mxu0 %v940
    %962 = vmatpush.bf16.msra.mxu0 %v920
    %963 = vmatpush.bf16.msra.mxu0 %v919
    %964 = vmatmul.bf16.gmra.mxu0 %v934
    %v965 = vpop.f32.mrf.mxu0
    %v966 = vadd.f32 %v952, %v965
    %v967 = vpop.f32.mrf.mxu0
    %v968 = vadd.f32 %v954, %v967
    %969 = vdwg.mxu0
    %vm970 = vcmask 113664
    %971 = vst.msk [vmem:[#allocation3] sm:$0xff] %vm970, %v966
    %vm972 = vcmask 107520
    %973 = vst.msk [vmem:[#allocation3 + $0x20] sm:$0x3] %vm972, %v968
    %v976 = vrot.slane %v966, 1
    %v977 = vrot.slane %v968, 1
    %v978 = vsel %vm110, %v976, %v977
    %979 = vrot.lane.b32.xlu0 %v978, 14
    %v980 = vpop.permute.xlu0 %979
    %981 = vrot.lane.b32.xlu0 %v977, 14
    %v982 = vpop.permute.xlu0 %981
    %vm985 = vcmask 228464
    %986 = vst.msk [vmem:[#allocation3] sm:$0xff] %vm985, %v980
    %vm987 = vcmask 222320
    %988 = vst.msk [vmem:[#allocation3 + $0x20] sm:$0x3] %vm987, %v982
    %v989 = vrot.slane %v966, 2
    %v990 = vrot.slane %v968, 2
    %v991 = vsel %vm159, %v989, %v990
    %992 = vrot.lane.b32.xlu0 %v991, 28
    %v993 = vpop.permute.xlu0 %992
    %994 = vrot.lane.b32.xlu0 %v990, 28
    %v995 = vpop.permute.xlu0 %994
    %vm998 = vcmask 343264
    %999 = vst.msk [vmem:[#allocation3] sm:$0xff] %vm998, %v993
    %vm1000 = vcmask 337120
    %1001 = vst.msk [vmem:[#allocation3 + $0x20] sm:$0x3] %vm1000, %v995
    %v1002 = vrot.slane %v966, 3
    %v1003 = vrot.slane %v968, 3
    %v1004 = vsel %vm208, %v1002, %v1003
    %1005 = vrot.lane.b32.xlu0 %v1004, 42
    %v1006 = vpop.permute.xlu0 %1005
    %1007 = vrot.lane.b32.xlu0 %v1003, 42
    %v1008 = vpop.permute.xlu0 %1007
    %vm1011 = vcmask 458064
    %1012 = vst.msk [vmem:[#allocation3] sm:$0xff] %vm1011, %v1006
    %vm1013 = vcmask 451920
    %1014 = vst.msk [vmem:[#allocation3 + $0x20] sm:$0x3] %vm1013, %v1008
    %v1015 = vrot.slane %v966, 4
    %v1016 = vrot.slane %v968, 4
    %v1017 = vsel %vm257, %v1015, %v1016
    %1018 = vrot.lane.b32.xlu0 %v1017, 56
    %v1019 = vpop.permute.xlu0 %1018
    %1020 = vrot.lane.b32.xlu0 %v1016, 56
    %v1021 = vpop.permute.xlu0 %1020
    %vm1024 = vcmask 572864
    %1025 = vst.msk [vmem:[#allocation3] sm:$0xff] %vm1024, %v1019
    %vm1026 = vcmask 566720
    %1027 = vst.msk [vmem:[#allocation3 + $0x20] sm:$0x3] %vm1026, %v1021
    %1028 = vrot.lane.b32.xlu0 %v966, 56
    %v1029 = vpop.permute.xlu0 %1028
    %1030 = vrot.lane.b32.xlu0 %v968, 56
    %v1031 = vpop.permute.xlu0 %1030
    %vm1034 = vcmask 687664
    %1035 = vst.msk [vmem:[#allocation3] sm:$0xff] %vm1034, %v1029
    %vm1036 = vcmask 681520
    %1037 = vst.msk [vmem:[#allocation3 + $0x20] sm:$0x3] %vm1036, %v1031
    %1038 = vrot.lane.b32.xlu0 %v978, 70
    %v1039 = vpop.permute.xlu0 %1038
    %1040 = vrot.lane.b32.xlu0 %v977, 70
    %v1041 = vpop.permute.xlu0 %1040
    %vm1044 = vcmask 802464
    %1045 = vst.msk [vmem:[#allocation3] sm:$0xff] %vm1044, %v1039
    %vm1046 = vcmask 796320
    %1047 = vst.msk [vmem:[#allocation3 + $0x20] sm:$0x3] %vm1046, %v1041
    %1048 = vrot.lane.b32.xlu0 %v991, 84
    %v1049 = vpop.permute.xlu0 %1048
    %1050 = vrot.lane.b32.xlu0 %v990, 84
    %v1051 = vpop.permute.xlu0 %1050
    %vm1054 = vcmask 917264
    %1055 = vst.msk [vmem:[#allocation3] sm:$0xff] %vm1054, %v1049
    %vm1056 = vcmask 911120
    %1057 = vst.msk [vmem:[#allocation3 + $0x20] sm:$0x3] %vm1056, %v1051
    %1058 = vrot.lane.b32.xlu0 %v1004, 98
    %v1059 = vpop.permute.xlu0 %1058
    %1060 = vrot.lane.b32.xlu0 %v1003, 98
    %v1061 = vpop.permute.xlu0 %1060
    %vm1064 = vcmask 1032064
    %1065 = vst.msk [vmem:[#allocation3] sm:$0xff] %vm1064, %v1059
    %vm1066 = vcmask 1025920
    %1067 = vst.msk [vmem:[#allocation3 + $0x20] sm:$0x3] %vm1066, %v1061
    %1068 = vrot.lane.b32.xlu0 %v1017, 112
    %v1069 = vpop.permute.xlu0 %1068
    %1070 = vrot.lane.b32.xlu0 %v1016, 112
    %v1071 = vpop.permute.xlu0 %1070
    %vm1074 = vcmask 1048560
    %1075 = vst.msk [vmem:[#allocation3] sm:$0xff] %vm1074, %v1069
    %vm1076 = vcmask 97280
    %1077 = vst.msk [vmem:[#allocation3 + $0x8] sm:$0xff] %vm1076, %v1069
    %vm1078 = vcmask 1042416
    %1079 = vst.msk [vmem:[#allocation3 + $0x20] sm:$0x3] %vm1078, %v1071
    %vm1080 = vcmask 91136
    %1081 = vst.msk [vmem:[#allocation3 + $0x28] sm:$0x3] %vm1080, %v1071
    %1082 = vrot.lane.b32.xlu0 %v966, 112
    %v1083 = vpop.permute.xlu0 %1082
    %1084 = vrot.lane.b32.xlu0 %v968, 112
    %v1085 = vpop.permute.xlu0 %1084
    %vm1088 = vcmask 212064
    %1089 = vst.msk [vmem:[#allocation3 + $0x8] sm:$0xff] %vm1088, %v1083
    %vm1090 = vcmask 205920
    %1091 = vst.msk [vmem:[#allocation3 + $0x28] sm:$0x3] %vm1090, %v1085
    %1092 = vrot.lane.b32.xlu0 %v978, 126
    %v1093 = vpop.permute.xlu0 %1092
    %1094 = vrot.lane.b32.xlu0 %v977, 126
    %v1095 = vpop.permute.xlu0 %1094
    %vm1098 = vcmask 326864
    %1099 = vst.msk [vmem:[#allocation3 + $0x8] sm:$0xff] %vm1098, %v1093
    %vm1100 = vcmask 320720
    %1101 = vst.msk [vmem:[#allocation3 + $0x28] sm:$0x3] %vm1100, %v1095
    %1102 = vrot.lane.b32.xlu0 %v991, 12
    %v1103 = vpop.permute.xlu0 %1102
    %1104 = vrot.lane.b32.xlu0 %v990, 12
    %v1105 = vpop.permute.xlu0 %1104
    %vm1108 = vcmask 441664
    %1109 = vst.msk [vmem:[#allocation3 + $0x8] sm:$0xff] %vm1108, %v1103
    %vm1110 = vcmask 435520
    %1111 = vst.msk [vmem:[#allocation3 + $0x28] sm:$0x3] %vm1110, %v1105
    %1112 = vrot.lane.b32.xlu0 %v1004, 26
    %v1113 = vpop.permute.xlu0 %1112
    %1114 = vrot.lane.b32.xlu0 %v1003, 26
    %v1115 = vpop.permute.xlu0 %1114
    %vm1118 = vcmask 556464
    %1119 = vst.msk [vmem:[#allocation3 + $0x8] sm:$0xff] %vm1118, %v1113
    %vm1120 = vcmask 550320
    %1121 = vst.msk [vmem:[#allocation3 + $0x28] sm:$0x3] %vm1120, %v1115
    %1122 = vrot.lane.b32.xlu0 %v1017, 40
    %v1123 = vpop.permute.xlu0 %1122
    %1124 = vrot.lane.b32.xlu0 %v1016, 40
    %v1125 = vpop.permute.xlu0 %1124
    %vm1128 = vcmask 671264
    %1129 = vst.msk [vmem:[#allocation3 + $0x8] sm:$0xff] %vm1128, %v1123
    %vm1130 = vcmask 665120
    %1131 = vst.msk [vmem:[#allocation3 + $0x28] sm:$0x3] %vm1130, %v1125
    %1132 = vrot.lane.b32.xlu0 %v966, 40
    %v1133 = vpop.permute.xlu0 %1132
    %1134 = vrot.lane.b32.xlu0 %v968, 40
    %v1135 = vpop.permute.xlu0 %1134
    %vm1138 = vcmask 786064
    %1139 = vst.msk [vmem:[#allocation3 + $0x8] sm:$0xff] %vm1138, %v1133
    %vm1140 = vcmask 779920
    %1141 = vst.msk [vmem:[#allocation3 + $0x28] sm:$0x3] %vm1140, %v1135
    %1142 = vrot.lane.b32.xlu0 %v978, 54
    %v1143 = vpop.permute.xlu0 %1142
    %1144 = vrot.lane.b32.xlu0 %v977, 54
    %v1145 = vpop.permute.xlu0 %1144
    %vm1148 = vcmask 900864
    %1149 = vst.msk [vmem:[#allocation3 + $0x8] sm:$0xff] %vm1148, %v1143
    %vm1150 = vcmask 894720
    %1151 = vst.msk [vmem:[#allocation3 + $0x28] sm:$0x3] %vm1150, %v1145
    %1152 = vrot.lane.b32.xlu0 %v991, 68
    %v1153 = vpop.permute.xlu0 %1152
    %1154 = vrot.lane.b32.xlu0 %v990, 68
    %v1155 = vpop.permute.xlu0 %1154
    %vm1158 = vcmask 1015664
    %1159 = vst.msk [vmem:[#allocation3 + $0x8] sm:$0xff] %vm1158, %v1153
    %vm1160 = vcmask 1009520
    %1161 = vst.msk [vmem:[#allocation3 + $0x28] sm:$0x3] %vm1160, %v1155
    %1162 = vrot.lane.b32.xlu0 %v1004, 82
    %v1163 = vpop.permute.xlu0 %1162
    %1164 = vrot.lane.b32.xlu0 %v1003, 82
    %v1165 = vpop.permute.xlu0 %1164
    %vm1168 = vcmask 1048544
    %1169 = vst.msk [vmem:[#allocation3 + $0x8] sm:$0xff] %vm1168, %v1163
    %vm1170 = vcmask 80896
    %1171 = vst.msk [vmem:[#allocation3 + $0x10] sm:$0xff] %vm1170, %v1163
    %vm1172 = vcmask 1042400
    %1173 = vst.msk [vmem:[#allocation3 + $0x28] sm:$0x3] %vm1172, %v1165
    %vm1174 = vcmask 74752
    %1175 = vst.msk [vmem:[#allocation3 + $0x30] sm:$0x3] %vm1174, %v1165
    %1176 = vrot.lane.b32.xlu0 %v1017, 96
    %v1177 = vpop.permute.xlu0 %1176
    %1178 = vrot.lane.b32.xlu0 %v1016, 96
    %v1179 = vpop.permute.xlu0 %1178
    %vm1182 = vcmask 195664
    %1183 = vst.msk [vmem:[#allocation3 + $0x10] sm:$0xff] %vm1182, %v1177
    %vm1184 = vcmask 189520
    %1185 = vst.msk [vmem:[#allocation3 + $0x30] sm:$0x3] %vm1184, %v1179
    %1186 = vrot.lane.b32.xlu0 %v966, 96
    %v1187 = vpop.permute.xlu0 %1186
    %1188 = vrot.lane.b32.xlu0 %v968, 96
    %v1189 = vpop.permute.xlu0 %1188
    %vm1192 = vcmask 310464
    %1193 = vst.msk [vmem:[#allocation3 + $0x10] sm:$0xff] %vm1192, %v1187
    %vm1194 = vcmask 304320
    %1195 = vst.msk [vmem:[#allocation3 + $0x30] sm:$0x3] %vm1194, %v1189
    %1196 = vrot.lane.b32.xlu0 %v978, 110
    %v1197 = vpop.permute.xlu0 %1196
    %1198 = vrot.lane.b32.xlu0 %v977, 110
    %v1199 = vpop.permute.xlu0 %1198
    %vm1202 = vcmask 425264
    %1203 = vst.msk [vmem:[#allocation3 + $0x10] sm:$0xff] %vm1202, %v1197
    %vm1204 = vcmask 419120
    %1205 = vst.msk [vmem:[#allocation3 + $0x30] sm:$0x3] %vm1204, %v1199
    %1206 = vrot.lane.b32.xlu0 %v991, 124
    %v1207 = vpop.permute.xlu0 %1206
    %1208 = vrot.lane.b32.xlu0 %v990, 124
    %v1209 = vpop.permute.xlu0 %1208
    %vm1212 = vcmask 540064
    %1213 = vst.msk [vmem:[#allocation3 + $0x10] sm:$0xff] %vm1212, %v1207
    %vm1214 = vcmask 533920
    %1215 = vst.msk [vmem:[#allocation3 + $0x30] sm:$0x3] %vm1214, %v1209
    %1216 = vrot.lane.b32.xlu0 %v1004, 10
    %v1217 = vpop.permute.xlu0 %1216
    %1218 = vrot.lane.b32.xlu0 %v1003, 10
    %v1219 = vpop.permute.xlu0 %1218
    %vm1222 = vcmask 654864
    %1223 = vst.msk [vmem:[#allocation3 + $0x10] sm:$0xff] %vm1222, %v1217
    %vm1224 = vcmask 648720
    %1225 = vst.msk [vmem:[#allocation3 + $0x30] sm:$0x3] %vm1224, %v1219
    %1226 = vrot.lane.b32.xlu0 %v1017, 24
    %v1227 = vpop.permute.xlu0 %1226
    %1228 = vrot.lane.b32.xlu0 %v1016, 24
    %v1229 = vpop.permute.xlu0 %1228
    %vm1232 = vcmask 769664
    %1233 = vst.msk [vmem:[#allocation3 + $0x10] sm:$0xff] %vm1232, %v1227
    %vm1234 = vcmask 763520
    %1235 = vst.msk [vmem:[#allocation3 + $0x30] sm:$0x3] %vm1234, %v1229
    %1236 = vrot.lane.b32.xlu0 %v966, 24
    %v1237 = vpop.permute.xlu0 %1236
    %1238 = vrot.lane.b32.xlu0 %v968, 24
    %v1239 = vpop.permute.xlu0 %1238
    %vm1242 = vcmask 884464
    %1243 = vst.msk [vmem:[#allocation3 + $0x10] sm:$0xff] %vm1242, %v1237
    %vm1244 = vcmask 878320
    %1245 = vst.msk [vmem:[#allocation3 + $0x30] sm:$0x3] %vm1244, %v1239
    %1246 = vrot.lane.b32.xlu0 %v978, 38
    %v1247 = vpop.permute.xlu0 %1246
    %1248 = vrot.lane.b32.xlu0 %v977, 38
    %v1249 = vpop.permute.xlu0 %1248
    %vm1252 = vcmask 999264
    %1253 = vst.msk [vmem:[#allocation3 + $0x10] sm:$0xff] %vm1252, %v1247
    %vm1254 = vcmask 993120
    %1255 = vst.msk [vmem:[#allocation3 + $0x30] sm:$0x3] %vm1254, %v1249
    %1256 = vrot.lane.b32.xlu0 %v991, 52
    %v1257 = vpop.permute.xlu0 %1256
    %1258 = vrot.lane.b32.xlu0 %v990, 52
    %v1259 = vpop.permute.xlu0 %1258
    %vm1262 = vcmask 1048528
    %1263 = vst.msk [vmem:[#allocation3 + $0x10] sm:$0xff] %vm1262, %v1257
    %vm1264 = vcmask 64512
    %1265 = vst.msk [vmem:[#allocation3 + $0x18] sm:$0xff] %vm1264, %v1257
    %vm1266 = vcmask 1042384
    %1267 = vst.msk [vmem:[#allocation3 + $0x30] sm:$0x3] %vm1266, %v1259
    %vm1268 = vcmask 58368
    %1269 = vst.msk [vmem:[#allocation3 + $0x38] sm:$0x3] %vm1268, %v1259
    %1270 = vrot.lane.b32.xlu0 %v1004, 66
    %v1271 = vpop.permute.xlu0 %1270
    %1272 = vrot.lane.b32.xlu0 %v1003, 66
    %v1273 = vpop.permute.xlu0 %1272
    %vm1276 = vcmask 179264
    %1277 = vst.msk [vmem:[#allocation3 + $0x18] sm:$0xff] %vm1276, %v1271
    %vm1278 = vcmask 173120
    %1279 = vst.msk [vmem:[#allocation3 + $0x38] sm:$0x3] %vm1278, %v1273
    %1280 = vrot.lane.b32.xlu0 %v1017, 80
    %v1281 = vpop.permute.xlu0 %1280
    %1282 = vrot.lane.b32.xlu0 %v1016, 80
    %v1283 = vpop.permute.xlu0 %1282
    %vm1286 = vcmask 294064
    %1287 = vst.msk [vmem:[#allocation3 + $0x18] sm:$0xff] %vm1286, %v1281
    %vm1288 = vcmask 287920
    %1289 = vst.msk [vmem:[#allocation3 + $0x38] sm:$0x3] %vm1288, %v1283
    %v1290 = vld [vmem:[#allocation3] sm:$0xff]
    %v1291 = vld [vmem:[#allocation3 + $0x8] sm:$0xff]
    %v1292 = vld [vmem:[#allocation3 + $0x10] sm:$0xff]
    %v1293 = vld [vmem:[#allocation3 + $0x18] sm:$0xff]
    %v1294 = vld [vmem:[#allocation3 + $0x20] sm:$0x3]
    %v1295 = vld [vmem:[#allocation3 + $0x28] sm:$0x3]
    %v1296 = vld [vmem:[#allocation3 + $0x30] sm:$0x3]
    %v1297 = vld [vmem:[#allocation3 + $0x38] sm:$0x3]
    %v1298 = vpack.c.bf16 %v1294, %v1290
    %v1299 = vpack.c.bf16 %v1295, %v1291
    %v1300 = vpack.c.bf16 %v1296, %v1292
    %v1301 = vpack.c.bf16 %v1297, %v1293
    %v1303 = vperm.slane %v385, 0
    %v1304 = vperm.slane %v385, 1
    %v1360 = vunpack.c.l.b16 %v332
    %v1361 = vunpack.c.h.b16 %v332
    %v1362 = vunpack.c.l.b16 %v333
    %v1363 = vunpack.c.h.b16 %v333
    %v1364 = vunpack.c.l.b16 %v334
    %v1365 = vunpack.c.h.b16 %v334
    %v1366 = vunpack.c.l.b16 %v335
    %v1367 = vunpack.c.h.b16 %v335
    %v1368 = vunpack.c.l.b16 %v336
    %v1369 = vunpack.c.h.b16 %v336
    %v1370 = vunpack.c.l.b16 %v337
    %v1371 = vunpack.c.h.b16 %v337
    %v1372 = vunpack.c.l.b16 %v338
    %v1373 = vunpack.c.h.b16 %v338
    %v1374 = vunpack.c.l.b16 %v339
    %v1375 = vunpack.c.h.b16 %v339
    %v1376 = vunpack.c.l.b16 %v340
    %v1377 = vunpack.c.h.b16 %v340
    %v1378 = vunpack.c.l.b16 %v341
    %v1379 = vunpack.c.h.b16 %v341
    %v1380 = vunpack.c.l.b16 %v342
    %v1381 = vunpack.c.h.b16 %v342
    %v1382 = vunpack.c.l.b16 %v343
    %v1383 = vunpack.c.h.b16 %v343
    %v1384 = vunpack.c.l.b16 %v344
    %v1385 = vunpack.c.h.b16 %v344
    %v1386 = vunpack.c.l.b16 %v345
    %v1387 = vunpack.c.h.b16 %v345
    %v1388 = vunpack.c.l.b16 %v346
    %v1389 = vunpack.c.h.b16 %v346
    %v1390 = vunpack.c.l.b16 %v347
    %v1391 = vunpack.c.h.b16 %v347
    %v1392 = vunpack.c.l.b16 %v348
    %v1393 = vunpack.c.h.b16 %v348
    %v1394 = vunpack.c.l.b16 %v349
    %v1395 = vunpack.c.h.b16 %v349
    %v1396 = vunpack.c.l.b16 %v350
    %v1397 = vunpack.c.h.b16 %v350
    %v1398 = vunpack.c.l.b16 %v351
    %v1399 = vunpack.c.h.b16 %v351
    %v1400 = vunpack.c.l.b16 %v352
    %v1401 = vunpack.c.h.b16 %v352
    %v1402 = vunpack.c.l.b16 %v353
    %v1403 = vunpack.c.h.b16 %v353
    %v1404 = vunpack.c.l.b16 %v354
    %v1405 = vunpack.c.h.b16 %v354
    %v1406 = vunpack.c.l.b16 %v355
    %v1407 = vunpack.c.h.b16 %v355
    %v1408 = vunpack.c.l.b16 %v356
    %v1409 = vunpack.c.h.b16 %v356
    %v1410 = vunpack.c.l.b16 %v357
    %v1411 = vunpack.c.h.b16 %v357
    %v1412 = vunpack.c.l.b16 %v358
    %v1413 = vunpack.c.h.b16 %v358
    %v1414 = vunpack.c.l.b16 %v359
    %v1415 = vunpack.c.h.b16 %v359
    %v1416 = vunpack.c.l.b16 %v360
    %v1417 = vunpack.c.h.b16 %v360
    %v1418 = vunpack.c.l.b16 %v361
    %v1419 = vunpack.c.h.b16 %v361
    %v1420 = vunpack.c.l.b16 %v362
    %v1421 = vunpack.c.h.b16 %v362
    %v1422 = vunpack.c.l.b16 %v363
    %v1423 = vunpack.c.h.b16 %v363
    %v1424 = vunpack.c.l.b16 %v364
    %v1425 = vunpack.c.h.b16 %v364
    %v1426 = vunpack.c.l.b16 %v365
    %v1427 = vunpack.c.h.b16 %v365
    %v1428 = vunpack.c.l.b16 %v366
    %v1429 = vunpack.c.h.b16 %v366
    %v1430 = vunpack.c.l.b16 %v367
    %v1431 = vunpack.c.h.b16 %v367
    %v1432 = vunpack.c.l.b16 %v368
    %v1433 = vunpack.c.h.b16 %v368
    %v1434 = vunpack.c.l.b16 %v369
    %v1435 = vunpack.c.h.b16 %v369
    %v1436 = vunpack.c.l.b16 %v370
    %v1437 = vunpack.c.h.b16 %v370
    %v1438 = vunpack.c.l.b16 %v371
    %v1439 = vunpack.c.h.b16 %v371
    %v1440 = vunpack.c.l.b16 %v372
    %v1441 = vunpack.c.h.b16 %v372
    %v1442 = vunpack.c.l.b16 %v373
    %v1443 = vunpack.c.h.b16 %v373
    %v1444 = vunpack.c.l.b16 %v374
    %v1445 = vunpack.c.h.b16 %v374
    %v1446 = vunpack.c.l.b16 %v375
    %v1447 = vunpack.c.h.b16 %v375
    %v1448 = vunpack.c.l.b16 %v376
    %v1449 = vunpack.c.h.b16 %v376
    %v1450 = vunpack.c.l.b16 %v377
    %v1451 = vunpack.c.h.b16 %v377
    %v1452 = vunpack.c.l.b16 %v378
    %v1453 = vunpack.c.h.b16 %v378
    %v1454 = vunpack.c.l.b16 %v379
    %v1455 = vunpack.c.h.b16 %v379
    %v1456 = vunpack.c.l.b16 %v380
    %v1457 = vunpack.c.h.b16 %v380
    %v1458 = vunpack.c.l.b16 %v381
    %v1459 = vunpack.c.h.b16 %v381
    %v1460 = vunpack.c.l.b16 %v382
    %v1461 = vunpack.c.h.b16 %v382
    %v1462 = vunpack.c.l.b16 %v383
    %v1463 = vunpack.c.h.b16 %v383
    %v1464 = vunpack.c.l.b16 %v384
    %v1465 = vunpack.c.h.b16 %v384
    %v1466 = vpack.c.b16 %v1362, %v1360
    %v1467 = vpack.c.b16 %v1363, %v1361
    %v1468 = vpack.c.b16 %v1366, %v1364
    %v1469 = vpack.c.b16 %v1367, %v1365
    %v1470 = vpack.c.b16 %v1370, %v1368
    %v1471 = vpack.c.b16 %v1371, %v1369
    %v1472 = vpack.c.b16 %v1374, %v1372
    %v1473 = vpack.c.b16 %v1375, %v1373
    %v1474 = vpack.c.b16 %v1378, %v1376
    %v1475 = vpack.c.b16 %v1379, %v1377
    %v1476 = vpack.c.b16 %v1382, %v1380
    %v1477 = vpack.c.b16 %v1383, %v1381
    %v1478 = vpack.c.b16 %v1386, %v1384
    %v1479 = vpack.c.b16 %v1387, %v1385
    %v1480 = vpack.c.b16 %v1390, %v1388
    %v1481 = vpack.c.b16 %v1391, %v1389
    %v1482 = vpack.c.b16 %v1394, %v1392
    %v1483 = vpack.c.b16 %v1395, %v1393
    %v1484 = vpack.c.b16 %v1398, %v1396
    %v1485 = vpack.c.b16 %v1399, %v1397
    %v1486 = vpack.c.b16 %v1402, %v1400
    %v1487 = vpack.c.b16 %v1403, %v1401
    %v1488 = vpack.c.b16 %v1406, %v1404
    %v1489 = vpack.c.b16 %v1407, %v1405
    %v1490 = vpack.c.b16 %v1410, %v1408
    %v1491 = vpack.c.b16 %v1411, %v1409
    %v1492 = vpack.c.b16 %v1414, %v1412
    %v1493 = vpack.c.b16 %v1415, %v1413
    %v1494 = vpack.c.b16 %v1418, %v1416
    %v1495 = vpack.c.b16 %v1419, %v1417
    %v1496 = vpack.c.b16 %v1422, %v1420
    %v1497 = vpack.c.b16 %v1423, %v1421
    %v1498 = vpack.c.b16 %v1426, %v1424
    %v1499 = vpack.c.b16 %v1427, %v1425
    %v1500 = vpack.c.b16 %v1430, %v1428
    %v1501 = vpack.c.b16 %v1431, %v1429
    %v1502 = vpack.c.b16 %v1434, %v1432
    %v1503 = vpack.c.b16 %v1435, %v1433
    %v1504 = vpack.c.b16 %v1438, %v1436
    %v1505 = vpack.c.b16 %v1439, %v1437
    %v1506 = vpack.c.b16 %v1442, %v1440
    %v1507 = vpack.c.b16 %v1443, %v1441
    %v1508 = vpack.c.b16 %v1446, %v1444
    %v1509 = vpack.c.b16 %v1447, %v1445
    %v1510 = vpack.c.b16 %v1450, %v1448
    %v1511 = vpack.c.b16 %v1451, %v1449
    %v1512 = vpack.c.b16 %v1454, %v1452
    %v1513 = vpack.c.b16 %v1455, %v1453
    %v1514 = vpack.c.b16 %v1458, %v1456
    %v1515 = vpack.c.b16 %v1459, %v1457
    %v1516 = vpack.c.b16 %v1462, %v1460
    %v1517 = vpack.c.b16 %v1463, %v1461
    %v1518 = vpack.c.b16 %v1464, %v1464
    %v1519 = vpack.c.b16 %v1465, %v1465
    %vm1572 = vcmask 293888
    %v1574 = vsel %vm1572, %v1301, 0
    %vm1576 = vcmask 1041408
    %v1578 = vsel %vm1576, %v1518, 0
    %v1581 = vsel %vm1576, %v1519, 0
    %1583 = vmatpush.bf16.msra.mxu0 %v1480
    %1584 = vmatpush.bf16.msra.mxu0 %v1478
    %1585 = vmatpush.bf16.msra.mxu0 %v1476
    %1586 = vmatpush.bf16.msra.mxu0 %v1474
    %1587 = vmatpush.bf16.msra.mxu0 %v1472
    %1588 = vmatpush.bf16.msra.mxu0 %v1470
    %1589 = vmatpush.bf16.msra.mxu0 %v1468
    %1590 = vmatpush.bf16.msra.mxu0 %v1466
    %1591 = vmatmul.bf16.gmra.mxu0 %v1298
    %v1592 = vpop.f32.mrf.mxu0
    %v1593 = vadd.f32 %v1303, %v1592
    %v1594 = vpop.f32.mrf.mxu0
    %v1595 = vadd.f32 %v1303, %v1594
    %1596 = vdwg.mxu0
    %1597 = vmatpush.bf16.msra.mxu0 %v1496
    %1598 = vmatpush.bf16.msra.mxu0 %v1494
    %1599 = vmatpush.bf16.msra.mxu0 %v1492
    %1600 = vmatpush.bf16.msra.mxu0 %v1490
    %1601 = vmatpush.bf16.msra.mxu0 %v1488
    %1602 = vmatpush.bf16.msra.mxu0 %v1486
    %1603 = vmatpush.bf16.msra.mxu0 %v1484
    %1604 = vmatpush.bf16.msra.mxu0 %v1482
    %1605 = vmatmul.bf16.gmra.mxu0 %v1299
    %v1606 = vpop.f32.mrf.mxu0
    %v1607 = vadd.f32 %v1593, %v1606
    %v1608 = vpop.f32.mrf.mxu0
    %v1609 = vadd.f32 %v1595, %v1608
    %1610 = vdwg.mxu0
    %1611 = vmatpush.bf16.msra.mxu0 %v1512
    %1612 = vmatpush.bf16.msra.mxu0 %v1510
    %1613 = vmatpush.bf16.msra.mxu0 %v1508
    %1614 = vmatpush.bf16.msra.mxu0 %v1506
    %1615 = vmatpush.bf16.msra.mxu0 %v1504
    %1616 = vmatpush.bf16.msra.mxu0 %v1502
    %1617 = vmatpush.bf16.msra.mxu0 %v1500
    %1618 = vmatpush.bf16.msra.mxu0 %v1498
    %1619 = vmatmul.bf16.gmra.mxu0 %v1300
    %v1620 = vpop.f32.mrf.mxu0
    %v1621 = vadd.f32 %v1607, %v1620
    %v1622 = vpop.f32.mrf.mxu0
    %v1623 = vadd.f32 %v1609, %v1622
    %1624 = vdwg.mxu0
    %1625 = vmatpush.bf16.msra.mxu0 0
    %1626 = vmatpush.bf16.msra.mxu0 0
    %1627 = vmatpush.bf16.msra.mxu0 0
    %1628 = vmatpush.bf16.msra.mxu0 0
    %1629 = vmatpush.bf16.msra.mxu0 0
    %1630 = vmatpush.bf16.msra.mxu0 %v1578
    %1631 = vmatpush.bf16.msra.mxu0 %v1516
    %1632 = vmatpush.bf16.msra.mxu0 %v1514
    %1633 = vmatmul.bf16.gmra.mxu0 %v1574
    %v1634 = vpop.f32.mrf.mxu0
    %v1635 = vadd.f32 %v1621, %v1634
    %v1636 = vpop.f32.mrf.mxu0
    %v1637 = vadd.f32 %v1623, %v1636
    %1638 = vdwg.mxu0
    %1639 = vmatpush.bf16.msra.mxu0 %v1481
    %1640 = vmatpush.bf16.msra.mxu0 %v1479
    %1641 = vmatpush.bf16.msra.mxu0 %v1477
    %1642 = vmatpush.bf16.msra.mxu0 %v1475
    %1643 = vmatpush.bf16.msra.mxu0 %v1473
    %1644 = vmatpush.bf16.msra.mxu0 %v1471
    %1645 = vmatpush.bf16.msra.mxu0 %v1469
    %1646 = vmatpush.bf16.msra.mxu0 %v1467
    %1647 = vmatmul.bf16.gmra.mxu0 %v1298
    %v1648 = vpop.f32.mrf.mxu0
    %v1649 = vadd.f32 %v1304, %v1648
    %v1650 = vpop.f32.mrf.mxu0
    %v1651 = vadd.f32 %v1304, %v1650
    %1652 = vdwg.mxu0
    %1653 = vmatpush.bf16.msra.mxu0 %v1497
    %1654 = vmatpush.bf16.msra.mxu0 %v1495
    %1655 = vmatpush.bf16.msra.mxu0 %v1493
    %1656 = vmatpush.bf16.msra.mxu0 %v1491
    %1657 = vmatpush.bf16.msra.mxu0 %v1489
    %1658 = vmatpush.bf16.msra.mxu0 %v1487
    %1659 = vmatpush.bf16.msra.mxu0 %v1485
    %1660 = vmatpush.bf16.msra.mxu0 %v1483
    %1661 = vmatmul.bf16.gmra.mxu0 %v1299
    %v1662 = vpop.f32.mrf.mxu0
    %v1663 = vadd.f32 %v1649, %v1662
    %v1664 = vpop.f32.mrf.mxu0
    %v1665 = vadd.f32 %v1651, %v1664
    %1666 = vdwg.mxu0
    %1667 = vmatpush.bf16.msra.mxu0 %v1513
    %1668 = vmatpush.bf16.msra.mxu0 %v1511
    %1669 = vmatpush.bf16.msra.mxu0 %v1509
    %1670 = vmatpush.bf16.msra.mxu0 %v1507
    %1671 = vmatpush.bf16.msra.mxu0 %v1505
    %1672 = vmatpush.bf16.msra.mxu0 %v1503
    %1673 = vmatpush.bf16.msra.mxu0 %v1501
    %1674 = vmatpush.bf16.msra.mxu0 %v1499
    %1675 = vmatmul.bf16.gmra.mxu0 %v1300
    %v1676 = vpop.f32.mrf.mxu0
    %v1677 = vadd.f32 %v1663, %v1676
    %v1678 = vpop.f32.mrf.mxu0
    %v1679 = vadd.f32 %v1665, %v1678
    %1680 = vdwg.mxu0
    %1681 = vmatpush.bf16.msra.mxu0 0
    %1682 = vmatpush.bf16.msra.mxu0 0
    %1683 = vmatpush.bf16.msra.mxu0 0
    %1684 = vmatpush.bf16.msra.mxu0 0
    %1685 = vmatpush.bf16.msra.mxu0 0
    %1686 = vmatpush.bf16.msra.mxu0 %v1581
    %1687 = vmatpush.bf16.msra.mxu0 %v1517
    %1688 = vmatpush.bf16.msra.mxu0 %v1515
    %1689 = vmatmul.bf16.gmra.mxu0 %v1574
    %v1690 = vpop.f32.mrf.mxu0
    %v1691 = vadd.f32 %v1677, %v1690
    %v1692 = vpop.f32.mrf.mxu0
    %v1693 = vadd.f32 %v1679, %v1692
    %1694 = vdwg.mxu0
    %v1695 = vmax.f32 %v1635, 0.0
    %v1696 = vmax.f32 %v1691, 0.0
    %v1697 = vmax.f32 %v1637, 0.0
    %v1698 = vmax.f32 %v1693, 0.0
    %v1699 = vmul.f32 %v1695, 16.0
    %v1700 = vmul.f32 %v1696, 16.0
    %v1701 = vmul.f32 %v1697, 16.0
    %v1702 = vmul.f32 %v1698, 16.0
    %v1703 = vfloor.f32 %v1699
    %v1704 = vfloor.f32 %v1700
    %v1705 = vfloor.f32 %v1701
    %v1706 = vfloor.f32 %v1702
    %v1707 = vmax.f32 %v1703, -128.0
    %v1708 = vmax.f32 %v1704, -128.0
    %v1709 = vmax.f32 %v1705, -128.0
    %v1710 = vmax.f32 %v1706, -128.0
    %v1711 = vmin.f32 %v1707, 127.0
    %v1712 = vmin.f32 %v1708, 127.0
    %v1713 = vmin.f32 %v1709, 127.0
    %v1714 = vmin.f32 %v1710, 127.0
    %1719 = vrot.lane.b32.xlu0 %v1711, 127
    %v1720 = vpop.permute.xlu0 %1719
    %1721 = vrot.lane.b32.xlu0 %v1712, 127
    %v1722 = vpop.permute.xlu0 %1721
    %1723 = vrot.lane.b32.xlu0 %v1713, 127
    %v1724 = vpop.permute.xlu0 %1723
    %1725 = vrot.lane.b32.xlu0 %v1714, 127
    %v1726 = vpop.permute.xlu0 %1725
    %v1727 = vsel %vm759, %v1720, %v1722
    %v1728 = vsel %vm759, %v1724, %v1726
    %v1733 = vmax.f32 %v1711, %v1727
    %v1734 = vmax.f32 %v1712, %v1722
    %v1735 = vmax.f32 %v1713, %v1728
    %v1736 = vmax.f32 %v1714, %v1726
    %v1741 = vrot.slane %v1733, 1
    %v1742 = vrot.slane %v1735, 1
    %v1743 = vsel %vm110, %v1741, %v1742
    %v1744 = vrot.slane %v1734, 1
    %v1745 = vrot.slane %v1736, 1
    %v1746 = vsel %vm110, %v1744, %v1745
    %v1751 = vmax.f32 %v1733, %v1743
    %v1752 = vmax.f32 %v1734, %v1746
    %v1753 = vmax.f32 %v1735, %v1742
    %v1754 = vmax.f32 %v1736, %v1745
    %v1755 = vpack.c.bf16 %v1753, %v1751
    %v1756 = vpack.c.bf16 %v1754, %v1752
    %vm1757 = vcmask 72704
    %v1759 = vsel %vm1757, %v386, 0
    %v1761 = vsel %vm257, 4294967295, 65535
    %v1762 = vsel %vm208, %v1761, 0
    %v1764 = vand.u32 %v1755, %v1762
    %v1767 = vand.u32 %v1756, %v1762
    %1769 = vmatpush.bf16.msra.mxu0 0
    %1770 = vmatpush.bf16.msra.mxu0 0
    %1771 = vmatpush.bf16.msra.mxu0 0
    %1772 = vmatpush.bf16.msra.mxu0 0
    %1773 = vmatpush.bf16.msra.mxu0 0
    %1774 = vmatpush.bf16.msra.mxu0 0
    %1775 = vmatpush.bf16.msra.mxu0 0
    %1776 = vmatpush.bf16.msra.mxu0 %v1764
    %1777 = vmatmul.bf16.gmra.mxu0 %v1759
    %v1778 = vpop.f32.mrf.mxu0
    %v1779 = vadd.f32 0.0, %v1778
    %v1780 = vpop.f32.mrf.mxu0
    %1781 = vdwg.mxu0
    %1782 = vmatpush.bf16.msra.mxu0 0
    %1783 = vmatpush.bf16.msra.mxu0 0
    %1784 = vmatpush.bf16.msra.mxu0 0
    %1785 = vmatpush.bf16.msra.mxu0 0
    %1786 = vmatpush.bf16.msra.mxu0 0
    %1787 = vmatpush.bf16.msra.mxu0 0
    %1788 = vmatpush.bf16.msra.mxu0 0
    %1789 = vmatpush.bf16.msra.mxu0 %v1767
    %1790 = vmatmul.bf16.gmra.mxu0 %v1759
    %v1791 = vpop.f32.mrf.mxu0
    %v1792 = vadd.f32 0.0, %v1791
    %v1793 = vpop.f32.mrf.mxu0
    %1794 = vdwg.mxu0
    %v1795 = vpack.c.bf16 %v1779, %v1779
    %v1796 = vpack.c.bf16 %v1792, %v1792
    %v1817 = vunpack.c.l.b16 %v387
    %v1818 = vunpack.c.l.b16 %v388
    %v1819 = vunpack.c.l.b16 %v389
    %v1820 = vunpack.c.l.b16 %v390
    %v1821 = vunpack.c.l.b16 %v391
    %v1822 = vunpack.c.l.b16 %v392
    %v1823 = vunpack.c.l.b16 %v393
    %v1824 = vunpack.c.l.b16 %v394
    %v1825 = vunpack.c.l.b16 %v395
    %v1826 = vunpack.c.l.b16 %v396
    %v1827 = vunpack.c.l.b16 %v397
    %v1828 = vunpack.c.l.b16 %v398
    %v1829 = vunpack.c.l.b16 %v399
    %v1830 = vunpack.c.l.b16 %v400
    %v1831 = vunpack.c.l.b16 %v401
    %v1832 = vunpack.c.l.b16 %v402
    %v1833 = vunpack.c.l.b16 %v403
    %v1834 = vunpack.c.l.b16 %v404
    %v1835 = vunpack.c.l.b16 %v405
    %v1836 = vunpack.c.l.b16 %v406
    %v1837 = vpack.c.b16 %v1818, %v1817
    %v1838 = vpack.c.b16 %v1820, %v1819
    %v1839 = vpack.c.b16 %v1822, %v1821
    %v1840 = vpack.c.b16 %v1824, %v1823
    %v1841 = vpack.c.b16 %v1826, %v1825
    %v1842 = vpack.c.b16 %v1828, %v1827
    %v1843 = vpack.c.b16 %v1830, %v1829
    %v1844 = vpack.c.b16 %v1832, %v1831
    %v1845 = vpack.c.b16 %v1834, %v1833
    %v1846 = vpack.c.b16 %v1836, %v1835
    %vm1856 = vcmask 252928
    %v1858 = vsel %vm1856, %v1796, 0
    %vm1860 = vcmask 1047552
    %v1861 = vsel %vm110, 4294967295, 65535
    %v1862 = vsel %vm1860, %v1861, 0
    %v1864 = vand.u32 %v1846, %v1862
    %1866 = vmatpush.bf16.msra.mxu0 %v1844
    %1867 = vmatpush.bf16.msra.mxu0 %v1843
    %1868 = vmatpush.bf16.msra.mxu0 %v1842
    %1869 = vmatpush.bf16.msra.mxu0 %v1841
    %1870 = vmatpush.bf16.msra.mxu0 %v1840
    %1871 = vmatpush.bf16.msra.mxu0 %v1839
    %1872 = vmatpush.bf16.msra.mxu0 %v1838
    %1873 = vmatpush.bf16.msra.mxu0 %v1837
    %1874 = vmatmul.bf16.gmra.mxu0 %v1795
    %v1875 = vpop.f32.mrf.mxu0
    %v1876 = vadd.f32 0.0, %v1875
    %v1877 = vpop.f32.mrf.mxu0
    %1878 = vdwg.mxu0
    %1879 = vmatpush.bf16.msra.mxu0 0
    %1880 = vmatpush.bf16.msra.mxu0 0
    %1881 = vmatpush.bf16.msra.mxu0 0
    %1882 = vmatpush.bf16.msra.mxu0 0
    %1883 = vmatpush.bf16.msra.mxu0 0
    %1884 = vmatpush.bf16.msra.mxu0 0
    %1885 = vmatpush.bf16.msra.mxu0 %v1864
    %1886 = vmatpush.bf16.msra.mxu0 %v1845
    %1887 = vmatmul.bf16.gmra.mxu0 %v1858
    %v1888 = vpop.f32.mrf.mxu0
    %v1889 = vadd.f32 %v1876, %v1888
    %v1890 = vpop.f32.mrf.mxu0
    %1891 = vdwg.mxu0
    %v1892 = vpack.c.bf16 %v1889, %v1889
    %v1894 = vshrl.u32 %v1892, 16
    %v1906 = vunpack.c.l.b16 %v418
    %v1907 = vunpack.c.l.b16 %v419
    %v1908 = vunpack.c.l.b16 %v420
    %v1909 = vunpack.c.l.b16 %v421
    %v1910 = vunpack.c.l.b16 %v422
    %v1911 = vunpack.c.l.b16 %v423
    %v1912 = vunpack.c.l.b16 %v424
    %v1913 = vunpack.c.l.b16 %v425
    %v1914 = vunpack.c.l.b16 %v426
    %v1915 = vunpack.c.l.b16 %v427
    %v1916 = vpack.c.b16 %v1907, %v1906
    %v1917 = vpack.c.b16 %v1909, %v1908
    %v1918 = vpack.c.b16 %v1911, %v1910
    %v1919 = vpack.c.b16 %v1913, %v1912
    %v1920 = vpack.c.b16 %v1915, %v1914
    %vm1926 = vcmask 654336
    %v1928 = vsel %vm1926, %v1894, 0
    %1930 = vmatpush.bf16.msra.mxu0 0
    %1931 = vmatpush.bf16.msra.mxu0 0
    %1932 = vmatpush.bf16.msra.mxu0 0
    %1933 = vmatpush.bf16.msra.mxu0 %v1920
    %1934 = vmatpush.bf16.msra.mxu0 %v1919
    %1935 = vmatpush.bf16.msra.mxu0 %v1918
    %1936 = vmatpush.bf16.msra.mxu0 %v1917
    %1937 = vmatpush.bf16.msra.mxu0 %v1916
    %1938 = vmatmul.bf16.gmra.mxu0 %v1928
    %v1939 = vpop.f32.mrf.mxu0
    %v1940 = vadd.f32 0.0, %v1939
    %v1941 = vpop.f32.mrf.mxu0
    %1942 = vdwg.mxu0
    %v1953 = vunpack.c.l.b16 %v407
    %v1954 = vunpack.c.l.b16 %v408
    %v1955 = vunpack.c.l.b16 %v409
    %v1956 = vunpack.c.l.b16 %v410
    %v1957 = vunpack.c.l.b16 %v411
    %v1958 = vunpack.c.l.b16 %v412
    %v1959 = vunpack.c.l.b16 %v413
    %v1960 = vunpack.c.l.b16 %v414
    %v1961 = vunpack.c.l.b16 %v415
    %v1962 = vunpack.c.l.b16 %v416
    %v1963 = vpack.c.b16 %v1954, %v1953
    %v1964 = vpack.c.b16 %v1956, %v1955
    %v1965 = vpack.c.b16 %v1958, %v1957
    %v1966 = vpack.c.b16 %v1960, %v1959
    %v1967 = vpack.c.b16 %v1962, %v1961
    %v1973 = vsel %vm1926, %v1892, 0
    %1975 = vmatpush.bf16.msra.mxu0 0
    %1976 = vmatpush.bf16.msra.mxu0 0
    %1977 = vmatpush.bf16.msra.mxu0 0
    %1978 = vmatpush.bf16.msra.mxu0 %v1967
    %1979 = vmatpush.bf16.msra.mxu0 %v1966
    %1980 = vmatpush.bf16.msra.mxu0 %v1965
    %1981 = vmatpush.bf16.msra.mxu0 %v1964
    %1982 = vmatpush.bf16.msra.mxu0 %v1963
    %1983 = vmatmul.bf16.gmra.mxu0 %v1973
    %v1984 = vpop.f32.mrf.mxu0
    %v1985 = vadd.f32 %v1940, %v1984
    %v1986 = vpop.f32.mrf.mxu0
    %1987 = vdwg.mxu0
    %v1989 = vrot.slane %v1892, 1
    %v2000 = vunpack.c.l.b16 %v429
    %v2001 = vunpack.c.l.b16 %v430
    %v2002 = vunpack.c.l.b16 %v431
    %v2003 = vunpack.c.l.b16 %v432
    %v2004 = vunpack.c.l.b16 %v433
    %v2005 = vunpack.c.l.b16 %v434
    %v2006 = vunpack.c.l.b16 %v435
    %v2007 = vunpack.c.l.b16 %v436
    %v2008 = vunpack.c.l.b16 %v437
    %v2009 = vunpack.c.l.b16 %v438
    %v2010 = vpack.c.b16 %v2001, %v2000
    %v2011 = vpack.c.b16 %v2003, %v2002
    %v2012 = vpack.c.b16 %v2005, %v2004
    %v2013 = vpack.c.b16 %v2007, %v2006
    %v2014 = vpack.c.b16 %v2009, %v2008
    %v2021 = vsel %vm1926, %v1989, 0
    %2023 = vmatpush.bf16.msra.mxu0 0
    %2024 = vmatpush.bf16.msra.mxu0 0
    %2025 = vmatpush.bf16.msra.mxu0 0
    %2026 = vmatpush.bf16.msra.mxu0 %v2014
    %2027 = vmatpush.bf16.msra.mxu0 %v2013
    %2028 = vmatpush.bf16.msra.mxu0 %v2012
    %2029 = vmatpush.bf16.msra.mxu0 %v2011
    %2030 = vmatpush.bf16.msra.mxu0 %v2010
    %2031 = vmatmul.bf16.gmra.mxu0 %v2021
    %v2032 = vpop.f32.mrf.mxu0
    %v2033 = vadd.f32 0.0, %v2032
    %v2034 = vpop.f32.mrf.mxu0
    %2035 = vdwg.mxu0
    %v2036 = vadd.f32 %v1985, %v2033
    %v2037 = vrot.slane %v1894, 1
    %v2048 = vunpack.c.l.b16 %v440
    %v2049 = vunpack.c.l.b16 %v441
    %v2050 = vunpack.c.l.b16 %v442
    %v2051 = vunpack.c.l.b16 %v443
    %v2052 = vunpack.c.l.b16 %v444
    %v2053 = vunpack.c.l.b16 %v445
    %v2054 = vunpack.c.l.b16 %v446
    %v2055 = vunpack.c.l.b16 %v447
    %v2056 = vunpack.c.l.b16 %v448
    %v2057 = vunpack.c.l.b16 %v449
    %v2058 = vpack.c.b16 %v2049, %v2048
    %v2059 = vpack.c.b16 %v2051, %v2050
    %v2060 = vpack.c.b16 %v2053, %v2052
    %v2061 = vpack.c.b16 %v2055, %v2054
    %v2062 = vpack.c.b16 %v2057, %v2056
    %v2069 = vsel %vm1926, %v2037, 0
    %2071 = vmatpush.bf16.msra.mxu0 0
    %2072 = vmatpush.bf16.msra.mxu0 0
    %2073 = vmatpush.bf16.msra.mxu0 0
    %2074 = vmatpush.bf16.msra.mxu0 %v2062
    %2075 = vmatpush.bf16.msra.mxu0 %v2061
    %2076 = vmatpush.bf16.msra.mxu0 %v2060
    %2077 = vmatpush.bf16.msra.mxu0 %v2059
    %2078 = vmatpush.bf16.msra.mxu0 %v2058
    %2079 = vmatmul.bf16.gmra.mxu0 %v2069
    %v2080 = vpop.f32.mrf.mxu0
    %v2081 = vadd.f32 0.0, %v2080
    %v2082 = vpop.f32.mrf.mxu0
    %2083 = vdwg.mxu0
    %v2084 = vadd.f32 %v2036, %v2081
    %v2085 = vrot.slane %v1892, 2
    %v2096 = vunpack.c.l.b16 %v451
    %v2097 = vunpack.c.l.b16 %v452
    %v2098 = vunpack.c.l.b16 %v453
    %v2099 = vunpack.c.l.b16 %v454
    %v2100 = vunpack.c.l.b16 %v455
    %v2101 = vunpack.c.l.b16 %v456
    %v2102 = vunpack.c.l.b16 %v457
    %v2103 = vunpack.c.l.b16 %v458
    %v2104 = vunpack.c.l.b16 %v459
    %v2105 = vunpack.c.l.b16 %v460
    %v2106 = vpack.c.b16 %v2097, %v2096
    %v2107 = vpack.c.b16 %v2099, %v2098
    %v2108 = vpack.c.b16 %v2101, %v2100
    %v2109 = vpack.c.b16 %v2103, %v2102
    %v2110 = vpack.c.b16 %v2105, %v2104
    %v2117 = vsel %vm1926, %v2085, 0
    %2119 = vmatpush.bf16.msra.mxu0 0
    %2120 = vmatpush.bf16.msra.mxu0 0
    %2121 = vmatpush.bf16.msra.mxu0 0
    %2122 = vmatpush.bf16.msra.mxu0 %v2110
    %2123 = vmatpush.bf16.msra.mxu0 %v2109
    %2124 = vmatpush.bf16.msra.mxu0 %v2108
    %2125 = vmatpush.bf16.msra.mxu0 %v2107
    %2126 = vmatpush.bf16.msra.mxu0 %v2106
    %2127 = vmatmul.bf16.gmra.mxu0 %v2117
    %v2128 = vpop.f32.mrf.mxu0
    %v2129 = vadd.f32 0.0, %v2128
    %v2130 = vpop.f32.mrf.mxu0
    %2131 = vdwg.mxu0
    %v2132 = vadd.f32 %v2084, %v2129
    %v2133 = vadd.f32 %v2132, %v461
    %v2134 = vmax.f32 %v2133, 0.0
    %v2135 = vmul.f32 %v2134, 32.0
    %v2136 = vfloor.f32 %v2135
    %v2137 = vmax.f32 %v2136, -128.0
    %v2138 = vmin.f32 %v2137, 127.0
    %v2139 = vpack.c.bf16 %v2138, %v2138
    %v2156 = vunpack.c.l.b16 %v462
    %v2157 = vunpack.c.l.b16 %v463
    %v2158 = vunpack.c.l.b16 %v464
    %v2159 = vunpack.c.l.b16 %v465
    %v2160 = vunpack.c.l.b16 %v466
    %v2161 = vunpack.c.l.b16 %v467
    %v2162 = vunpack.c.l.b16 %v468
    %v2163 = vunpack.c.l.b16 %v469
    %v2164 = vunpack.c.l.b16 %v470
    %v2165 = vunpack.c.l.b16 %v471
    %v2166 = vunpack.c.l.b16 %v472
    %v2167 = vunpack.c.l.b16 %v473
    %v2168 = vunpack.c.l.b16 %v474
    %v2169 = vunpack.c.l.b16 %v475
    %v2170 = vunpack.c.l.b16 %v476
    %v2171 = vunpack.c.l.b16 %v477
    %v2172 = vpack.c.b16 %v2157, %v2156
    %v2173 = vpack.c.b16 %v2159, %v2158
    %v2174 = vpack.c.b16 %v2161, %v2160
    %v2175 = vpack.c.b16 %v2163, %v2162
    %v2176 = vpack.c.b16 %v2165, %v2164
    %v2177 = vpack.c.b16 %v2167, %v2166
    %v2178 = vpack.c.b16 %v2169, %v2168
    %v2179 = vpack.c.b16 %v2171, %v2170
    %2188 = vmatpush.bf16.msra.mxu0 %v2179
    %2189 = vmatpush.bf16.msra.mxu0 %v2178
    %2190 = vmatpush.bf16.msra.mxu0 %v2177
    %2191 = vmatpush.bf16.msra.mxu0 %v2176
    %2192 = vmatpush.bf16.msra.mxu0 %v2175
    %2193 = vmatpush.bf16.msra.mxu0 %v2174
    %2194 = vmatpush.bf16.msra.mxu0 %v2173
    %2195 = vmatpush.bf16.msra.mxu0 %v2172
    %2196 = vmatmul.bf16.gmra.mxu0 %v2139
    %v2197 = vpop.f32.mrf.mxu0
    %v2198 = vadd.f32 %v478, %v2197
    %v2199 = vpop.f32.mrf.mxu0
    %2200 = vdwg.mxu0
    %v2201 = vmax.f32 %v2198, 0.0
    %v2202 = vmul.f32 %v2201, 76.8
    %v2203 = vfloor.f32 %v2202
    %v2204 = vmax.f32 %v2203, -128.0
    %v2205 = vmin.f32 %v2204, 127.0
    %v2206 = vpack.c.bf16 %v2205, %v2205
    %v2223 = vunpack.c.l.b16 %v479
    %v2224 = vunpack.c.l.b16 %v480
    %v2225 = vunpack.c.l.b16 %v481
    %v2226 = vunpack.c.l.b16 %v482
    %v2227 = vunpack.c.l.b16 %v483
    %v2228 = vunpack.c.l.b16 %v484
    %v2229 = vunpack.c.l.b16 %v485
    %v2230 = vunpack.c.l.b16 %v486
    %v2231 = vunpack.c.l.b16 %v487
    %v2232 = vunpack.c.l.b16 %v488
    %v2233 = vunpack.c.l.b16 %v489
    %v2234 = vunpack.c.l.b16 %v490
    %v2235 = vunpack.c.l.b16 %v491
    %v2236 = vunpack.c.l.b16 %v492
    %v2237 = vunpack.c.l.b16 %v493
    %v2238 = vunpack.c.l.b16 %v494
    %v2239 = vpack.c.b16 %v2224, %v2223
    %v2240 = vpack.c.b16 %v2226, %v2225
    %v2241 = vpack.c.b16 %v2228, %v2227
    %v2242 = vpack.c.b16 %v2230, %v2229
    %v2243 = vpack.c.b16 %v2232, %v2231
    %v2244 = vpack.c.b16 %v2234, %v2233
    %v2245 = vpack.c.b16 %v2236, %v2235
    %v2246 = vpack.c.b16 %v2238, %v2237
    %2255 = vmatpush.bf16.msra.mxu0 %v2246
    %2256 = vmatpush.bf16.msra.mxu0 %v2245
    %2257 = vmatpush.bf16.msra.mxu0 %v2244
    %2258 = vmatpush.bf16.msra.mxu0 %v2243
    %2259 = vmatpush.bf16.msra.mxu0 %v2242
    %2260 = vmatpush.bf16.msra.mxu0 %v2241
    %2261 = vmatpush.bf16.msra.mxu0 %v2240
    %2262 = vmatpush.bf16.msra.mxu0 %v2239
    %2263 = vmatmul.bf16.gmra.mxu0 %v2206
    %v2264 = vpop.f32.mrf.mxu0
    %v2265 = vadd.f32 %v495, %v2264
    %v2266 = vpop.f32.mrf.mxu0
    %2267 = vdwg.mxu0
    %v2268 = vmul.f32 %v2265, 20.0
    %v2269 = vfloor.f32 %v2268
    %v2270 = vmax.f32 %v2269, -128.0
    %v2271 = vmin.f32 %v2270, 127.0
    %2272 = vst [vmem:[#allocation4] sm:$0x1] %v2271
    %s2273 = scalar_lea.vmem [#allocation2], 64
    %v2274 = vld [vmem:[%s2273] sm:$0xff]
    %v2275 = vld [vmem:[%s2273 + $0x8] sm:$0xff]
    %v2276 = vld [vmem:[%s2273 + $0x10] sm:$0xff]
    %v2277 = vld [vmem:[%s2273 + $0x18] sm:$0xff]
    %v2278 = vld [vmem:[%s2273 + $0x20] sm:$0xff]
    %v2279 = vld [vmem:[%s2273 + $0x28] sm:$0xff]
    %v2280 = vld [vmem:[%s2273 + $0x30] sm:$0xf]
    %v2281 = vld [vmem:[%s2273 + $0x38] sm:$0xf]
    %v2282 = vpack.c.bf16 %v2276, %v2274
    %v2283 = vpack.c.bf16 %v2277, %v2275
    %v2284 = vpack.c.bf16 %v2280, %v2278
    %v2285 = vpack.c.bf16 %v2281, %v2279
    %v2287 = vsel %vm92, %v2283, 0
    %v2290 = vsel %vm92, %v2285, 0
    %2292 = vmatpush.bf16.msra.mxu0 %v587
    %2293 = vmatpush.bf16.msra.mxu0 %v585
    %2294 = vmatpush.bf16.msra.mxu0 %v583
    %2295 = vmatpush.bf16.msra.mxu0 %v581
    %2296 = vmatpush.bf16.msra.mxu0 %v579
    %2297 = vmatpush.bf16.msra.mxu0 %v577
    %2298 = vmatpush.bf16.msra.mxu0 %v575
    %2299 = vmatpush.bf16.msra.mxu0 %v573
    %2300 = vmatmul.bf16.gmra.mxu0 %v2282
    %v2301 = vpop.f32.mrf.mxu0
    %v2302 = vadd.f32 %v509, %v2301
    %v2303 = vpop.f32.mrf.mxu0
    %v2304 = vadd.f32 %v509, %v2303
    %2305 = vmatmul.bf16.gmra.mxu0 %v2284
    %v2306 = vpop.f32.mrf.mxu0
    %v2307 = vadd.f32 %v509, %v2306
    %v2308 = vpop.f32.mrf.mxu0
    %v2309 = vadd.f32 %v509, %v2308
    %2310 = vdwg.mxu0
    %2311 = vmatpush.bf16.msra.mxu0 0
    %2312 = vmatpush.bf16.msra.mxu0 0
    %2313 = vmatpush.bf16.msra.mxu0 0
    %2314 = vmatpush.bf16.msra.mxu0 0
    %2315 = vmatpush.bf16.msra.mxu0 0
    %2316 = vmatpush.bf16.msra.mxu0 0
    %2317 = vmatpush.bf16.msra.mxu0 %v591
    %2318 = vmatpush.bf16.msra.mxu0 %v589
    %2319 = vmatmul.bf16.gmra.mxu0 %v2287
    %v2320 = vpop.f32.mrf.mxu0
    %v2321 = vadd.f32 %v2302, %v2320
    %v2322 = vpop.f32.mrf.mxu0
    %v2323 = vadd.f32 %v2304, %v2322
    %2324 = vmatmul.bf16.gmra.mxu0 %v2290
    %v2325 = vpop.f32.mrf.mxu0
    %v2326 = vadd.f32 %v2307, %v2325
    %v2327 = vpop.f32.mrf.mxu0
    %v2328 = vadd.f32 %v2309, %v2327
    %2329 = vdwg.mxu0
    %2330 = vmatpush.bf16.msra.mxu0 %v588
    %2331 = vmatpush.bf16.msra.mxu0 %v586
    %2332 = vmatpush.bf16.msra.mxu0 %v584
    %2333 = vmatpush.bf16.msra.mxu0 %v582
    %2334 = vmatpush.bf16.msra.mxu0 %v580
    %2335 = vmatpush.bf16.msra.mxu0 %v578
    %2336 = vmatpush.bf16.msra.mxu0 %v576
    %2337 = vmatpush.bf16.msra.mxu0 %v574
    %2338 = vmatmul.bf16.gmra.mxu0 %v2282
    %v2339 = vpop.f32.mrf.mxu0
    %v2340 = vadd.f32 %v510, %v2339
    %v2341 = vpop.f32.mrf.mxu0
    %v2342 = vadd.f32 %v510, %v2341
    %2343 = vmatmul.bf16.gmra.mxu0 %v2284
    %v2344 = vpop.f32.mrf.mxu0
    %v2345 = vadd.f32 %v510, %v2344
    %v2346 = vpop.f32.mrf.mxu0
    %v2347 = vadd.f32 %v510, %v2346
    %2348 = vdwg.mxu0
    %2349 = vmatpush.bf16.msra.mxu0 0
    %2350 = vmatpush.bf16.msra.mxu0 0
    %2351 = vmatpush.bf16.msra.mxu0 0
    %2352 = vmatpush.bf16.msra.mxu0 0
    %2353 = vmatpush.bf16.msra.mxu0 0
    %2354 = vmatpush.bf16.msra.mxu0 0
    %2355 = vmatpush.bf16.msra.mxu0 %v592
    %2356 = vmatpush.bf16.msra.mxu0 %v590
    %2357 = vmatmul.bf16.gmra.mxu0 %v2287
    %v2358 = vpop.f32.mrf.mxu0
    %v2359 = vadd.f32 %v2340, %v2358
    %v2360 = vpop.f32.mrf.mxu0
    %v2361 = vadd.f32 %v2342, %v2360
    %2362 = vmatmul.bf16.gmra.mxu0 %v2290
    %v2363 = vpop.f32.mrf.mxu0
    %v2364 = vadd.f32 %v2345, %v2363
    %v2365 = vpop.f32.mrf.mxu0
    %v2366 = vadd.f32 %v2347, %v2365
    %2367 = vdwg.mxu0
    %v2368 = vmax.f32 %v2321, 0.0
    %v2369 = vmax.f32 %v2359, 0.0
    %v2370 = vmax.f32 %v2323, 0.0
    %v2371 = vmax.f32 %v2361, 0.0
    %v2372 = vmax.f32 %v2326, 0.0
    %v2373 = vmax.f32 %v2364, 0.0
    %v2374 = vmax.f32 %v2328, 0.0
    %v2375 = vmax.f32 %v2366, 0.0
    %v2376 = vmul.f32 %v2368, 2.6666718
    %v2377 = vmul.f32 %v2369, 2.6666718
    %v2378 = vmul.f32 %v2370, 2.6666718
    %v2379 = vmul.f32 %v2371, 2.6666718
    %v2380 = vmul.f32 %v2372, 2.6666718
    %v2381 = vmul.f32 %v2373, 2.6666718
    %v2382 = vmul.f32 %v2374, 2.6666718
    %v2383 = vmul.f32 %v2375, 2.6666718
    %v2384 = vfloor.f32 %v2376
    %v2385 = vfloor.f32 %v2377
    %v2386 = vfloor.f32 %v2378
    %v2387 = vfloor.f32 %v2379
    %v2388 = vfloor.f32 %v2380
    %v2389 = vfloor.f32 %v2381
    %v2390 = vfloor.f32 %v2382
    %v2391 = vfloor.f32 %v2383
    %v2392 = vmax.f32 %v2384, -128.0
    %v2393 = vmax.f32 %v2385, -128.0
    %v2394 = vmax.f32 %v2386, -128.0
    %v2395 = vmax.f32 %v2387, -128.0
    %v2396 = vmax.f32 %v2388, -128.0
    %v2397 = vmax.f32 %v2389, -128.0
    %v2398 = vmax.f32 %v2390, -128.0
    %v2399 = vmax.f32 %v2391, -128.0
    %v2400 = vmin.f32 %v2392, 127.0
    %v2401 = vmin.f32 %v2393, 127.0
    %v2402 = vmin.f32 %v2394, 127.0
    %v2403 = vmin.f32 %v2395, 127.0
    %v2404 = vmin.f32 %v2396, 127.0
    %v2405 = vmin.f32 %v2397, 127.0
    %v2406 = vmin.f32 %v2398, 127.0
    %v2407 = vmin.f32 %v2399, 127.0
    %2416 = vrot.lane.b32.xlu0 %v2400, 127
    %v2417 = vpop.permute.xlu0 %2416
    %2418 = vrot.lane.b32.xlu0 %v2401, 127
    %v2419 = vpop.permute.xlu0 %2418
    %2420 = vrot.lane.b32.xlu0 %v2402, 127
    %v2421 = vpop.permute.xlu0 %2420
    %2422 = vrot.lane.b32.xlu0 %v2403, 127
    %v2423 = vpop.permute.xlu0 %2422
    %2424 = vrot.lane.b32.xlu0 %v2404, 127
    %v2425 = vpop.permute.xlu0 %2424
    %2426 = vrot.lane.b32.xlu0 %v2405, 127
    %v2427 = vpop.permute.xlu0 %2426
    %2428 = vrot.lane.b32.xlu0 %v2406, 127
    %v2429 = vpop.permute.xlu0 %2428
    %2430 = vrot.lane.b32.xlu0 %v2407, 127
    %v2431 = vpop.permute.xlu0 %2430
    %v2432 = vsel %vm759, %v2417, %v2419
    %v2433 = vsel %vm759, %v2421, %v2423
    %v2434 = vsel %vm759, %v2425, %v2427
    %v2435 = vsel %vm759, %v2429, %v2431
    %v2444 = vmax.f32 %v2400, %v2432
    %v2445 = vmax.f32 %v2401, %v2419
    %v2446 = vmax.f32 %v2402, %v2433
    %v2447 = vmax.f32 %v2403, %v2423
    %v2448 = vmax.f32 %v2404, %v2434
    %v2449 = vmax.f32 %v2405, %v2427
    %v2450 = vmax.f32 %v2406, %v2435
    %v2451 = vmax.f32 %v2407, %v2431
    %v2460 = vrot.slane %v2444, 1
    %v2461 = vrot.slane %v2446, 1
    %v2462 = vsel %vm110, %v2460, %v2461
    %v2463 = vrot.slane %v2445, 1
    %v2464 = vrot.slane %v2447, 1
    %v2465 = vsel %vm110, %v2463, %v2464
    %v2466 = vrot.slane %v2448, 1
    %v2467 = vsel %vm110, %v2461, %v2466
    %v2468 = vrot.slane %v2449, 1
    %v2469 = vsel %vm110, %v2464, %v2468
    %v2470 = vrot.slane %v2450, 1
    %v2471 = vsel %vm110, %v2466, %v2470
    %v2472 = vrot.slane %v2451, 1
    %v2473 = vsel %vm110, %v2468, %v2472
    %v2482 = vmax.f32 %v2444, %v2462
    %v2483 = vmax.f32 %v2445, %v2465
    %v2484 = vmax.f32 %v2446, %v2467
    %v2485 = vmax.f32 %v2447, %v2469
    %v2486 = vmax.f32 %v2448, %v2471
    %v2487 = vmax.f32 %v2449, %v2473
    %v2488 = vmax.f32 %v2450, %v2470
    %v2489 = vmax.f32 %v2451, %v2472
    %v2490 = vpack.c.bf16 %v2484, %v2482
    %v2491 = vpack.c.bf16 %v2485, %v2483
    %v2492 = vpack.c.bf16 %v2488, %v2486
    %v2493 = vpack.c.bf16 %v2489, %v2487
    %v2495 = vand.u32 %v2492, %v832
    %v2498 = vand.u32 %v2493, %v832
    %2500 = vmatpush.bf16.msra.mxu0 0
    %2501 = vmatpush.bf16.msra.mxu0 0
    %2502 = vmatpush.bf16.msra.mxu0 0
    %2503 = vmatpush.bf16.msra.mxu0 0
    %2504 = vmatpush.bf16.msra.mxu0 0
    %2505 = vmatpush.bf16.msra.mxu0 0
    %2506 = vmatpush.bf16.msra.mxu0 %v2495
    %2507 = vmatpush.bf16.msra.mxu0 %v2490
    %2508 = vmatmul.bf16.gmra.mxu0 %v829
    %v2509 = vpop.f32.mrf.mxu0
    %v2510 = vadd.f32 0.0, %v2509
    %v2511 = vpop.f32.mrf.mxu0
    %v2512 = vadd.f32 0.0, %v2511
    %2513 = vdwg.mxu0
    %2514 = vmatpush.bf16.msra.mxu0 0
    %2515 = vmatpush.bf16.msra.mxu0 0
    %2516 = vmatpush.bf16.msra.mxu0 0
    %2517 = vmatpush.bf16.msra.mxu0 0
    %2518 = vmatpush.bf16.msra.mxu0 0
    %2519 = vmatpush.bf16.msra.mxu0 0
    %2520 = vmatpush.bf16.msra.mxu0 %v2498
    %2521 = vmatpush.bf16.msra.mxu0 %v2491
    %2522 = vmatmul.bf16.gmra.mxu0 %v829
    %v2523 = vpop.f32.mrf.mxu0
    %v2524 = vadd.f32 0.0, %v2523
    %v2525 = vpop.f32.mrf.mxu0
    %v2526 = vadd.f32 0.0, %v2525
    %2527 = vdwg.mxu0
    %v2528 = vpack.c.bf16 %v2512, %v2510
    %v2529 = vpack.c.bf16 %v2526, %v2524
    %v2531 = vsel %vm932, %v2529, 0
    %2533 = vmatpush.bf16.msra.mxu0 %v918
    %2534 = vmatpush.bf16.msra.mxu0 %v917
    %2535 = vmatpush.bf16.msra.mxu0 %v916
    %2536 = vmatpush.bf16.msra.mxu0 %v915
    %2537 = vmatpush.bf16.msra.mxu0 %v914
    %2538 = vmatpush.bf16.msra.mxu0 %v913
    %2539 = vmatpush.bf16.msra.mxu0 %v912
    %2540 = vmatpush.bf16.msra.mxu0 %v911
    %2541 = vmatmul.bf16.gmra.mxu0 %v2528
    %v2542 = vpop.f32.mrf.mxu0
    %v2543 = vadd.f32 0.0, %v2542
    %v2544 = vpop.f32.mrf.mxu0
    %v2545 = vadd.f32 0.0, %v2544
    %2546 = vdwg.mxu0
    %2547 = vmatpush.bf16.msra.mxu0 0
    %2548 = vmatpush.bf16.msra.mxu0 0
    %2549 = vmatpush.bf16.msra.mxu0 0
    %2550 = vmatpush.bf16.msra.mxu0 0
    %2551 = vmatpush.bf16.msra.mxu0 0
    %2552 = vmatpush.bf16.msra.mxu0 %v940
    %2553 = vmatpush.bf16.msra.mxu0 %v920
    %2554 = vmatpush.bf16.msra.mxu0 %v919
    %2555 = vmatmul.bf16.gmra.mxu0 %v2531
    %v2556 = vpop.f32.mrf.mxu0
    %v2557 = vadd.f32 %v2543, %v2556
    %v2558 = vpop.f32.mrf.mxu0
    %v2559 = vadd.f32 %v2545, %v2558
    %2560 = vdwg.mxu0
    %s2561 = scalar_lea.vmem [#allocation3], 64
    %2562 = vst.msk [vmem:[%s2561] sm:$0xff] %vm970, %v2557
    %2563 = vst.msk [vmem:[%s2561 + $0x20] sm:$0x3] %vm972, %v2559
    %v2566 = vrot.slane %v2557, 1
    %v2567 = vrot.slane %v2559, 1
    %v2568 = vsel %vm110, %v2566, %v2567
    %2569 = vrot.lane.b32.xlu0 %v2568, 14
    %v2570 = vpop.permute.xlu0 %2569
    %2571 = vrot.lane.b32.xlu0 %v2567, 14
    %v2572 = vpop.permute.xlu0 %2571
    %2575 = vst.msk [vmem:[%s2561] sm:$0xff] %vm985, %v2570
    %2576 = vst.msk [vmem:[%s2561 + $0x20] sm:$0x3] %vm987, %v2572
    %v2577 = vrot.slane %v2557, 2
    %v2578 = vrot.slane %v2559, 2
    %v2579 = vsel %vm159, %v2577, %v2578
    %2580 = vrot.lane.b32.xlu0 %v2579, 28
    %v2581 = vpop.permute.xlu0 %2580
    %2582 = vrot.lane.b32.xlu0 %v2578, 28
    %v2583 = vpop.permute.xlu0 %2582
    %2586 = vst.msk [vmem:[%s2561] sm:$0xff] %vm998, %v2581
    %2587 = vst.msk [vmem:[%s2561 + $0x20] sm:$0x3] %vm1000, %v2583
    %v2588 = vrot.slane %v2557, 3
    %v2589 = vrot.slane %v2559, 3
    %v2590 = vsel %vm208, %v2588, %v2589
    %2591 = vrot.lane.b32.xlu0 %v2590, 42
    %v2592 = vpop.permute.xlu0 %2591
    %2593 = vrot.lane.b32.xlu0 %v2589, 42
    %v2594 = vpop.permute.xlu0 %2593
    %2597 = vst.msk [vmem:[%s2561] sm:$0xff] %vm1011, %v2592
    %2598 = vst.msk [vmem:[%s2561 + $0x20] sm:$0x3] %vm1013, %v2594
    %v2599 = vrot.slane %v2557, 4
    %v2600 = vrot.slane %v2559, 4
    %v2601 = vsel %vm257, %v2599, %v2600
    %2602 = vrot.lane.b32.xlu0 %v2601, 56
    %v2603 = vpop.permute.xlu0 %2602
    %2604 = vrot.lane.b32.xlu0 %v2600, 56
    %v2605 = vpop.permute.xlu0 %2604
    %2608 = vst.msk [vmem:[%s2561] sm:$0xff] %vm1024, %v2603
    %2609 = vst.msk [vmem:[%s2561 + $0x20] sm:$0x3] %vm1026, %v2605
    %2610 = vrot.lane.b32.xlu0 %v2557, 56
    %v2611 = vpop.permute.xlu0 %2610
    %2612 = vrot.lane.b32.xlu0 %v2559, 56
    %v2613 = vpop.permute.xlu0 %2612
    %2616 = vst.msk [vmem:[%s2561] sm:$0xff] %vm1034, %v2611
    %2617 = vst.msk [vmem:[%s2561 + $0x20] sm:$0x3] %vm1036, %v2613
    %2618 = vrot.lane.b32.xlu0 %v2568, 70
    %v2619 = vpop.permute.xlu0 %2618
    %2620 = vrot.lane.b32.xlu0 %v2567, 70
    %v2621 = vpop.permute.xlu0 %2620
    %2624 = vst.msk [vmem:[%s2561] sm:$0xff] %vm1044, %v2619
    %2625 = vst.msk [vmem:[%s2561 + $0x20] sm:$0x3] %vm1046, %v2621
    %2626 = vrot.lane.b32.xlu0 %v2579, 84
    %v2627 = vpop.permute.xlu0 %2626
    %2628 = vrot.lane.b32.xlu0 %v2578, 84
    %v2629 = vpop.permute.xlu0 %2628
    %2632 = vst.msk [vmem:[%s2561] sm:$0xff] %vm1054, %v2627
    %2633 = vst.msk [vmem:[%s2561 + $0x20] sm:$0x3] %vm1056, %v2629
    %2634 = vrot.lane.b32.xlu0 %v2590, 98
    %v2635 = vpop.permute.xlu0 %2634
    %2636 = vrot.lane.b32.xlu0 %v2589, 98
    %v2637 = vpop.permute.xlu0 %2636
    %2640 = vst.msk [vmem:[%s2561] sm:$0xff] %vm1064, %v2635
    %2641 = vst.msk [vmem:[%s2561 + $0x20] sm:$0x3] %vm1066, %v2637
    %2642 = vrot.lane.b32.xlu0 %v2601, 112
    %v2643 = vpop.permute.xlu0 %2642
    %2644 = vrot.lane.b32.xlu0 %v2600, 112
    %v2645 = vpop.permute.xlu0 %2644
    %2648 = vst.msk [vmem:[%s2561] sm:$0xff] %vm1074, %v2643
    %2649 = vst.msk [vmem:[%s2561 + $0x8] sm:$0xff] %vm1076, %v2643
    %2650 = vst.msk [vmem:[%s2561 + $0x20] sm:$0x3] %vm1078, %v2645
    %2651 = vst.msk [vmem:[%s2561 + $0x28] sm:$0x3] %vm1080, %v2645
    %2652 = vrot.lane.b32.xlu0 %v2557, 112
    %v2653 = vpop.permute.xlu0 %2652
    %2654 = vrot.lane.b32.xlu0 %v2559, 112
    %v2655 = vpop.permute.xlu0 %2654
    %2658 = vst.msk [vmem:[%s2561 + $0x8] sm:$0xff] %vm1088, %v2653
    %2659 = vst.msk [vmem:[%s2561 + $0x28] sm:$0x3] %vm1090, %v2655
    %2660 = vrot.lane.b32.xlu0 %v2568, 126
    %v2661 = vpop.permute.xlu0 %2660
    %2662 = vrot.lane.b32.xlu0 %v2567, 126
    %v2663 = vpop.permute.xlu0 %2662
    %2666 = vst.msk [vmem:[%s2561 + $0x8] sm:$0xff] %vm1098, %v2661
    %2667 = vst.msk [vmem:[%s2561 + $0x28] sm:$0x3] %vm1100, %v2663
    %2668 = vrot.lane.b32.xlu0 %v2579, 12
    %v2669 = vpop.permute.xlu0 %2668
    %2670 = vrot.lane.b32.xlu0 %v2578, 12
    %v2671 = vpop.permute.xlu0 %2670
    %2674 = vst.msk [vmem:[%s2561 + $0x8] sm:$0xff] %vm1108, %v2669
    %2675 = vst.msk [vmem:[%s2561 + $0x28] sm:$0x3] %vm1110, %v2671
    %2676 = vrot.lane.b32.xlu0 %v2590, 26
    %v2677 = vpop.permute.xlu0 %2676
    %2678 = vrot.lane.b32.xlu0 %v2589, 26
    %v2679 = vpop.permute.xlu0 %2678
    %2682 = vst.msk [vmem:[%s2561 + $0x8] sm:$0xff] %vm1118, %v2677
    %2683 = vst.msk [vmem:[%s2561 + $0x28] sm:$0x3] %vm1120, %v2679
    %2684 = vrot.lane.b32.xlu0 %v2601, 40
    %v2685 = vpop.permute.xlu0 %2684
    %2686 = vrot.lane.b32.xlu0 %v2600, 40
    %v2687 = vpop.permute.xlu0 %2686
    %2690 = vst.msk [vmem:[%s2561 + $0x8] sm:$0xff] %vm1128, %v2685
    %2691 = vst.msk [vmem:[%s2561 + $0x28] sm:$0x3] %vm1130, %v2687
    %2692 = vrot.lane.b32.xlu0 %v2557, 40
    %v2693 = vpop.permute.xlu0 %2692
    %2694 = vrot.lane.b32.xlu0 %v2559, 40
    %v2695 = vpop.permute.xlu0 %2694
    %2698 = vst.msk [vmem:[%s2561 + $0x8] sm:$0xff] %vm1138, %v2693
    %2699 = vst.msk [vmem:[%s2561 + $0x28] sm:$0x3] %vm1140, %v2695
    %2700 = vrot.lane.b32.xlu0 %v2568, 54
    %v2701 = vpop.permute.xlu0 %2700
    %2702 = vrot.lane.b32.xlu0 %v2567, 54
    %v2703 = vpop.permute.xlu0 %2702
    %2706 = vst.msk [vmem:[%s2561 + $0x8] sm:$0xff] %vm1148, %v2701
    %2707 = vst.msk [vmem:[%s2561 + $0x28] sm:$0x3] %vm1150, %v2703
    %2708 = vrot.lane.b32.xlu0 %v2579, 68
    %v2709 = vpop.permute.xlu0 %2708
    %2710 = vrot.lane.b32.xlu0 %v2578, 68
    %v2711 = vpop.permute.xlu0 %2710
    %2714 = vst.msk [vmem:[%s2561 + $0x8] sm:$0xff] %vm1158, %v2709
    %2715 = vst.msk [vmem:[%s2561 + $0x28] sm:$0x3] %vm1160, %v2711
    %2716 = vrot.lane.b32.xlu0 %v2590, 82
    %v2717 = vpop.permute.xlu0 %2716
    %2718 = vrot.lane.b32.xlu0 %v2589, 82
    %v2719 = vpop.permute.xlu0 %2718
    %2722 = vst.msk [vmem:[%s2561 + $0x8] sm:$0xff] %vm1168, %v2717
    %2723 = vst.msk [vmem:[%s2561 + $0x10] sm:$0xff] %vm1170, %v2717
    %2724 = vst.msk [vmem:[%s2561 + $0x28] sm:$0x3] %vm1172, %v2719
    %2725 = vst.msk [vmem:[%s2561 + $0x30] sm:$0x3] %vm1174, %v2719
    %2726 = vrot.lane.b32.xlu0 %v2601, 96
    %v2727 = vpop.permute.xlu0 %2726
    %2728 = vrot.lane.b32.xlu0 %v2600, 96
    %v2729 = vpop.permute.xlu0 %2728
    %2732 = vst.msk [vmem:[%s2561 + $0x10] sm:$0xff] %vm1182, %v2727
    %2733 = vst.msk [vmem:[%s2561 + $0x30] sm:$0x3] %vm1184, %v2729
    %2734 = vrot.lane.b32.xlu0 %v2557, 96
    %v2735 = vpop.permute.xlu0 %2734
    %2736 = vrot.lane.b32.xlu0 %v2559, 96
    %v2737 = vpop.permute.xlu0 %2736
    %2740 = vst.msk [vmem:[%s2561 + $0x10] sm:$0xff] %vm1192, %v2735
    %2741 = vst.msk [vmem:[%s2561 + $0x30] sm:$0x3] %vm1194, %v2737
    %2742 = vrot.lane.b32.xlu0 %v2568, 110
    %v2743 = vpop.permute.xlu0 %2742
    %2744 = vrot.lane.b32.xlu0 %v2567, 110
    %v2745 = vpop.permute.xlu0 %2744
    %2748 = vst.msk [vmem:[%s2561 + $0x10] sm:$0xff] %vm1202, %v2743
    %2749 = vst.msk [vmem:[%s2561 + $0x30] sm:$0x3] %vm1204, %v2745
    %2750 = vrot.lane.b32.xlu0 %v2579, 124
    %v2751 = vpop.permute.xlu0 %2750
    %2752 = vrot.lane.b32.xlu0 %v2578, 124
    %v2753 = vpop.permute.xlu0 %2752
    %2756 = vst.msk [vmem:[%s2561 + $0x10] sm:$0xff] %vm1212, %v2751
    %2757 = vst.msk [vmem:[%s2561 + $0x30] sm:$0x3] %vm1214, %v2753
    %2758 = vrot.lane.b32.xlu0 %v2590, 10
    %v2759 = vpop.permute.xlu0 %2758
    %2760 = vrot.lane.b32.xlu0 %v2589, 10
    %v2761 = vpop.permute.xlu0 %2760
    %2764 = vst.msk [vmem:[%s2561 + $0x10] sm:$0xff] %vm1222, %v2759
    %2765 = vst.msk [vmem:[%s2561 + $0x30] sm:$0x3] %vm1224, %v2761
    %2766 = vrot.lane.b32.xlu0 %v2601, 24
    %v2767 = vpop.permute.xlu0 %2766
    %2768 = vrot.lane.b32.xlu0 %v2600, 24
    %v2769 = vpop.permute.xlu0 %2768
    %2772 = vst.msk [vmem:[%s2561 + $0x10] sm:$0xff] %vm1232, %v2767
    %2773 = vst.msk [vmem:[%s2561 + $0x30] sm:$0x3] %vm1234, %v2769
    %2774 = vrot.lane.b32.xlu0 %v2557, 24
    %v2775 = vpop.permute.xlu0 %2774
    %2776 = vrot.lane.b32.xlu0 %v2559, 24
    %v2777 = vpop.permute.xlu0 %2776
    %2780 = vst.msk [vmem:[%s2561 + $0x10] sm:$0xff] %vm1242, %v2775
    %2781 = vst.msk [vmem:[%s2561 + $0x30] sm:$0x3] %vm1244, %v2777
    %2782 = vrot.lane.b32.xlu0 %v2568, 38
    %v2783 = vpop.permute.xlu0 %2782
    %2784 = vrot.lane.b32.xlu0 %v2567, 38
    %v2785 = vpop.permute.xlu0 %2784
    %2788 = vst.msk [vmem:[%s2561 + $0x10] sm:$0xff] %vm1252, %v2783
    %2789 = vst.msk [vmem:[%s2561 + $0x30] sm:$0x3] %vm1254, %v2785
    %2790 = vrot.lane.b32.xlu0 %v2579, 52
    %v2791 = vpop.permute.xlu0 %2790
    %2792 = vrot.lane.b32.xlu0 %v2578, 52
    %v2793 = vpop.permute.xlu0 %2792
    %2796 = vst.msk [vmem:[%s2561 + $0x10] sm:$0xff] %vm1262, %v2791
    %2797 = vst.msk [vmem:[%s2561 + $0x18] sm:$0xff] %vm1264, %v2791
    %2798 = vst.msk [vmem:[%s2561 + $0x30] sm:$0x3] %vm1266, %v2793
    %2799 = vst.msk [vmem:[%s2561 + $0x38] sm:$0x3] %vm1268, %v2793
    %2800 = vrot.lane.b32.xlu0 %v2590, 66
    %v2801 = vpop.permute.xlu0 %2800
    %2802 = vrot.lane.b32.xlu0 %v2589, 66
    %v2803 = vpop.permute.xlu0 %2802
    %2806 = vst.msk [vmem:[%s2561 + $0x18] sm:$0xff] %vm1276, %v2801
    %2807 = vst.msk [vmem:[%s2561 + $0x38] sm:$0x3] %vm1278, %v2803
    %2808 = vrot.lane.b32.xlu0 %v2601, 80
    %v2809 = vpop.permute.xlu0 %2808
    %2810 = vrot.lane.b32.xlu0 %v2600, 80
    %v2811 = vpop.permute.xlu0 %2810
    %2814 = vst.msk [vmem:[%s2561 + $0x18] sm:$0xff] %vm1286, %v2809
    %2815 = vst.msk [vmem:[%s2561 + $0x38] sm:$0x3] %vm1288, %v2811
    %v2816 = vld [vmem:[%s2561] sm:$0xff]
    %v2817 = vld [vmem:[%s2561 + $0x8] sm:$0xff]
    %v2818 = vld [vmem:[%s2561 + $0x10] sm:$0xff]
    %v2819 = vld [vmem:[%s2561 + $0x18] sm:$0xff]
    %v2820 = vld [vmem:[%s2561 + $0x20] sm:$0x3]
    %v2821 = vld [vmem:[%s2561 + $0x28] sm:$0x3]
    %v2822 = vld [vmem:[%s2561 + $0x30] sm:$0x3]
    %v2823 = vld [vmem:[%s2561 + $0x38] sm:$0x3]
    %v2824 = vpack.c.bf16 %v2820, %v2816
    %v2825 = vpack.c.bf16 %v2821, %v2817
    %v2826 = vpack.c.bf16 %v2822, %v2818
    %v2827 = vpack.c.bf16 %v2823, %v2819
    %v2829 = vsel %vm1572, %v2827, 0
    %2831 = vmatpush.bf16.msra.mxu0 %v1480
    %2832 = vmatpush.bf16.msra.mxu0 %v1478
    %2833 = vmatpush.bf16.msra.mxu0 %v1476
    %2834 = vmatpush.bf16.msra.mxu0 %v1474
    %2835 = vmatpush.bf16.msra.mxu0 %v1472
    %2836 = vmatpush.bf16.msra.mxu0 %v1470
    %2837 = vmatpush.bf16.msra.mxu0 %v1468
    %2838 = vmatpush.bf16.msra.mxu0 %v1466
    %2839 = vmatmul.bf16.gmra.mxu0 %v2824
    %v2840 = vpop.f32.mrf.mxu0
    %v2841 = vadd.f32 %v1303, %v2840
    %v2842 = vpop.f32.mrf.mxu0
    %v2843 = vadd.f32 %v1303, %v2842
    %2844 = vdwg.mxu0
    %2845 = vmatpush.bf16.msra.mxu0 %v1496
    %2846 = vmatpush.bf16.msra.mxu0 %v1494
    %2847 = vmatpush.bf16.msra.mxu0 %v1492
    %2848 = vmatpush.bf16.msra.mxu0 %v1490
    %2849 = vmatpush.bf16.msra.mxu0 %v1488
    %2850 = vmatpush.bf16.msra.mxu0 %v1486
    %2851 = vmatpush.bf16.msra.mxu0 %v1484
    %2852 = vmatpush.bf16.msra.mxu0 %v1482
    %2853 = vmatmul.bf16.gmra.mxu0 %v2825
    %v2854 = vpop.f32.mrf.mxu0
    %v2855 = vadd.f32 %v2841, %v2854
    %v2856 = vpop.f32.mrf.mxu0
    %v2857 = vadd.f32 %v2843, %v2856
    %2858 = vdwg.mxu0
    %2859 = vmatpush.bf16.msra.mxu0 %v1512
    %2860 = vmatpush.bf16.msra.mxu0 %v1510
    %2861 = vmatpush.bf16.msra.mxu0 %v1508
    %2862 = vmatpush.bf16.msra.mxu0 %v1506
    %2863 = vmatpush.bf16.msra.mxu0 %v1504
    %2864 = vmatpush.bf16.msra.mxu0 %v1502
    %2865 = vmatpush.bf16.msra.mxu0 %v1500
    %2866 = vmatpush.bf16.msra.mxu0 %v1498
    %2867 = vmatmul.bf16.gmra.mxu0 %v2826
    %v2868 = vpop.f32.mrf.mxu0
    %v2869 = vadd.f32 %v2855, %v2868
    %v2870 = vpop.f32.mrf.mxu0
    %v2871 = vadd.f32 %v2857, %v2870
    %2872 = vdwg.mxu0
    %2873 = vmatpush.bf16.msra.mxu0 0
    %2874 = vmatpush.bf16.msra.mxu0 0
    %2875 = vmatpush.bf16.msra.mxu0 0
    %2876 = vmatpush.bf16.msra.mxu0 0
    %2877 = vmatpush.bf16.msra.mxu0 0
    %2878 = vmatpush.bf16.msra.mxu0 %v1578
    %2879 = vmatpush.bf16.msra.mxu0 %v1516
    %2880 = vmatpush.bf16.msra.mxu0 %v1514
    %2881 = vmatmul.bf16.gmra.mxu0 %v2829
    %v2882 = vpop.f32.mrf.mxu0
    %v2883 = vadd.f32 %v2869, %v2882
    %v2884 = vpop.f32.mrf.mxu0
    %v2885 = vadd.f32 %v2871, %v2884
    %2886 = vdwg.mxu0
    %2887 = vmatpush.bf16.msra.mxu0 %v1481
    %2888 = vmatpush.bf16.msra.mxu0 %v1479
    %2889 = vmatpush.bf16.msra.mxu0 %v1477
    %2890 = vmatpush.bf16.msra.mxu0 %v1475
    %2891 = vmatpush.bf16.msra.mxu0 %v1473
    %2892 = vmatpush.bf16.msra.mxu0 %v1471
    %2893 = vmatpush.bf16.msra.mxu0 %v1469
    %2894 = vmatpush.bf16.msra.mxu0 %v1467
    %2895 = vmatmul.bf16.gmra.mxu0 %v2824
    %v2896 = vpop.f32.mrf.mxu0
    %v2897 = vadd.f32 %v1304, %v2896
    %v2898 = vpop.f32.mrf.mxu0
    %v2899 = vadd.f32 %v1304, %v2898
    %2900 = vdwg.mxu0
    %2901 = vmatpush.bf16.msra.mxu0 %v1497
    %2902 = vmatpush.bf16.msra.mxu0 %v1495
    %2903 = vmatpush.bf16.msra.mxu0 %v1493
    %2904 = vmatpush.bf16.msra.mxu0 %v1491
    %2905 = vmatpush.bf16.msra.mxu0 %v1489
    %2906 = vmatpush.bf16.msra.mxu0 %v1487
    %2907 = vmatpush.bf16.msra.mxu0 %v1485
    %2908 = vmatpush.bf16.msra.mxu0 %v1483
    %2909 = vmatmul.bf16.gmra.mxu0 %v2825
    %v2910 = vpop.f32.mrf.mxu0
    %v2911 = vadd.f32 %v2897, %v2910
    %v2912 = vpop.f32.mrf.mxu0
    %v2913 = vadd.f32 %v2899, %v2912
    %2914 = vdwg.mxu0
    %2915 = vmatpush.bf16.msra.mxu0 %v1513
    %2916 = vmatpush.bf16.msra.mxu0 %v1511
    %2917 = vmatpush.bf16.msra.mxu0 %v1509
    %2918 = vmatpush.bf16.msra.mxu0 %v1507
    %2919 = vmatpush.bf16.msra.mxu0 %v1505
    %2920 = vmatpush.bf16.msra.mxu0 %v1503
    %2921 = vmatpush.bf16.msra.mxu0 %v1501
    %2922 = vmatpush.bf16.msra.mxu0 %v1499
    %2923 = vmatmul.bf16.gmra.mxu0 %v2826
    %v2924 = vpop.f32.mrf.mxu0
    %v2925 = vadd.f32 %v2911, %v2924
    %v2926 = vpop.f32.mrf.mxu0
    %v2927 = vadd.f32 %v2913, %v2926
    %2928 = vdwg.mxu0
    %2929 = vmatpush.bf16.msra.mxu0 0
    %2930 = vmatpush.bf16.msra.mxu0 0
    %2931 = vmatpush.bf16.msra.mxu0 0
    %2932 = vmatpush.bf16.msra.mxu0 0
    %2933 = vmatpush.bf16.msra.mxu0 0
    %2934 = vmatpush.bf16.msra.mxu0 %v1581
    %2935 = vmatpush.bf16.msra.mxu0 %v1517
    %2936 = vmatpush.bf16.msra.mxu0 %v1515
    %2937 = vmatmul.bf16.gmra.mxu0 %v2829
    %v2938 = vpop.f32.mrf.mxu0
    %v2939 = vadd.f32 %v2925, %v2938
    %v2940 = vpop.f32.mrf.mxu0
    %v2941 = vadd.f32 %v2927, %v2940
    %2942 = vdwg.mxu0
    %v2943 = vmax.f32 %v2883, 0.0
    %v2944 = vmax.f32 %v2939, 0.0
    %v2945 = vmax.f32 %v2885, 0.0
    %v2946 = vmax.f32 %v2941, 0.0
    %v2947 = vmul.f32 %v2943, 16.0
    %v2948 = vmul.f32 %v2944, 16.0
    %v2949 = vmul.f32 %v2945, 16.0
    %v2950 = vmul.f32 %v2946, 16.0
    %v2951 = vfloor.f32 %v2947
    %v2952 = vfloor.f32 %v2948
    %v2953 = vfloor.f32 %v2949
    %v2954 = vfloor.f32 %v2950
    %v2955 = vmax.f32 %v2951, -128.0
    %v2956 = vmax.f32 %v2952, -128.0
    %v2957 = vmax.f32 %v2953, -128.0
    %v2958 = vmax.f32 %v2954, -128.0
    %v2959 = vmin.f32 %v2955, 127.0
    %v2960 = vmin.f32 %v2956, 127.0
    %v2961 = vmin.f32 %v2957, 127.0
    %v2962 = vmin.f32 %v2958, 127.0
    %2967 = vrot.lane.b32.xlu0 %v2959, 127
    %v2968 = vpop.permute.xlu0 %2967
    %2969 = vrot.lane.b32.xlu0 %v2960, 127
    %v2970 = vpop.permute.xlu0 %2969
    %2971 = vrot.lane.b32.xlu0 %v2961, 127
    %v2972 = vpop.permute.xlu0 %2971
    %2973 = vrot.lane.b32.xlu0 %v2962, 127
    %v2974 = vpop.permute.xlu0 %2973
    %v2975 = vsel %vm759, %v2968, %v2970
    %v2976 = vsel %vm759, %v2972, %v2974
    %v2981 = vmax.f32 %v2959, %v2975
    %v2982 = vmax.f32 %v2960, %v2970
    %v2983 = vmax.f32 %v2961, %v2976
    %v2984 = vmax.f32 %v2962, %v2974
    %v2989 = vrot.slane %v2981, 1
    %v2990 = vrot.slane %v2983, 1
    %v2991 = vsel %vm110, %v2989, %v2990
    %v2992 = vrot.slane %v2982, 1
    %v2993 = vrot.slane %v2984, 1
    %v2994 = vsel %vm110, %v2992, %v2993
    %v2999 = vmax.f32 %v2981, %v2991
    %v3000 = vmax.f32 %v2982, %v2994
    %v3001 = vmax.f32 %v2983, %v2990
    %v3002 = vmax.f32 %v2984, %v2993
    %v3003 = vpack.c.bf16 %v3001, %v2999
    %v3004 = vpack.c.bf16 %v3002, %v3000
    %v3006 = vand.u32 %v3003, %v1762
    %v3009 = vand.u32 %v3004, %v1762
    %3011 = vmatpush.bf16.msra.mxu0 0
    %3012 = vmatpush.bf16.msra.mxu0 0
    %3013 = vmatpush.bf16.msra.mxu0 0
    %3014 = vmatpush.bf16.msra.mxu0 0
    %3015 = vmatpush.bf16.msra.mxu0 0
    %3016 = vmatpush.bf16.msra.mxu0 0
    %3017 = vmatpush.bf16.msra.mxu0 0
    %3018 = vmatpush.bf16.msra.mxu0 %v3006
    %3019 = vmatmul.bf16.gmra.mxu0 %v1759
    %v3020 = vpop.f32.mrf.mxu0
    %v3021 = vadd.f32 0.0, %v3020
    %v3022 = vpop.f32.mrf.mxu0
    %3023 = vdwg.mxu0
    %3024 = vmatpush.bf16.msra.mxu0 0
    %3025 = vmatpush.bf16.msra.mxu0 0
    %3026 = vmatpush.bf16.msra.mxu0 0
    %3027 = vmatpush.bf16.msra.mxu0 0
    %3028 = vmatpush.bf16.msra.mxu0 0
    %3029 = vmatpush.bf16.msra.mxu0 0
    %3030 = vmatpush.bf16.msra.mxu0 0
    %3031 = vmatpush.bf16.msra.mxu0 %v3009
    %3032 = vmatmul.bf16.gmra.mxu0 %v1759
    %v3033 = vpop.f32.mrf.mxu0
    %v3034 = vadd.f32 0.0, %v3033
    %v3035 = vpop.f32.mrf.mxu0
    %3036 = vdwg.mxu0
    %v3037 = vpack.c.bf16 %v3021, %v3021
    %v3038 = vpack.c.bf16 %v3034, %v3034
    %v3040 = vsel %vm1856, %v3038, 0
    %3042 = vmatpush.bf16.msra.mxu0 %v1844
    %3043 = vmatpush.bf16.msra.mxu0 %v1843
    %3044 = vmatpush.bf16.msra.mxu0 %v1842
    %3045 = vmatpush.bf16.msra.mxu0 %v1841
    %3046 = vmatpush.bf16.msra.mxu0 %v1840
    %3047 = vmatpush.bf16.msra.mxu0 %v1839
    %3048 = vmatpush.bf16.msra.mxu0 %v1838
    %3049 = vmatpush.bf16.msra.mxu0 %v1837
    %3050 = vmatmul.bf16.gmra.mxu0 %v3037
    %v3051 = vpop.f32.mrf.mxu0
    %v3052 = vadd.f32 0.0, %v3051
    %v3053 = vpop.f32.mrf.mxu0
    %3054 = vdwg.mxu0
    %3055 = vmatpush.bf16.msra.mxu0 0
    %3056 = vmatpush.bf16.msra.mxu0 0
    %3057 = vmatpush.bf16.msra.mxu0 0
    %3058 = vmatpush.bf16.msra.mxu0 0
    %3059 = vmatpush.bf16.msra.mxu0 0
    %3060 = vmatpush.bf16.msra.mxu0 0
    %3061 = vmatpush.bf16.msra.mxu0 %v1864
    %3062 = vmatpush.bf16.msra.mxu0 %v1845
    %3063 = vmatmul.bf16.gmra.mxu0 %v3040
    %v3064 = vpop.f32.mrf.mxu0
    %v3065 = vadd.f32 %v3052, %v3064
    %v3066 = vpop.f32.mrf.mxu0
    %3067 = vdwg.mxu0
    %v3068 = vpack.c.bf16 %v3065, %v3065
    %v3070 = vshrl.u32 %v3068, 16
    %v3073 = vsel %vm1926, %v3070, 0
    %3075 = vmatpush.bf16.msra.mxu0 0
    %3076 = vmatpush.bf16.msra.mxu0 0
    %3077 = vmatpush.bf16.msra.mxu0 0
    %3078 = vmatpush.bf16.msra.mxu0 %v1920
    %3079 = vmatpush.bf16.msra.mxu0 %v1919
    %3080 = vmatpush.bf16.msra.mxu0 %v1918
    %3081 = vmatpush.bf16.msra.mxu0 %v1917
    %3082 = vmatpush.bf16.msra.mxu0 %v1916
    %3083 = vmatmul.bf16.gmra.mxu0 %v3073
    %v3084 = vpop.f32.mrf.mxu0
    %v3085 = vadd.f32 0.0, %v3084
    %v3086 = vpop.f32.mrf.mxu0
    %3087 = vdwg.mxu0
    %v3088 = vsel %vm1926, %v3068, 0
    %3090 = vmatpush.bf16.msra.mxu0 0
    %3091 = vmatpush.bf16.msra.mxu0 0
    %3092 = vmatpush.bf16.msra.mxu0 0
    %3093 = vmatpush.bf16.msra.mxu0 %v1967
    %3094 = vmatpush.bf16.msra.mxu0 %v1966
    %3095 = vmatpush.bf16.msra.mxu0 %v1965
    %3096 = vmatpush.bf16.msra.mxu0 %v1964
    %3097 = vmatpush.bf16.msra.mxu0 %v1963
    %3098 = vmatmul.bf16.gmra.mxu0 %v3088
    %v3099 = vpop.f32.mrf.mxu0
    %v3100 = vadd.f32 %v3085, %v3099
    %v3101 = vpop.f32.mrf.mxu0
    %3102 = vdwg.mxu0
    %v3104 = vrot.slane %v3068, 1
    %v3106 = vsel %vm1926, %v3104, 0
    %3108 = vmatpush.bf16.msra.mxu0 0
    %3109 = vmatpush.bf16.msra.mxu0 0
    %3110 = vmatpush.bf16.msra.mxu0 0
    %3111 = vmatpush.bf16.msra.mxu0 %v2014
    %3112 = vmatpush.bf16.msra.mxu0 %v2013
    %3113 = vmatpush.bf16.msra.mxu0 %v2012
    %3114 = vmatpush.bf16.msra.mxu0 %v2011
    %3115 = vmatpush.bf16.msra.mxu0 %v2010
    %3116 = vmatmul.bf16.gmra.mxu0 %v3106
    %v3117 = vpop.f32.mrf.mxu0
    %v3118 = vadd.f32 0.0, %v3117
    %v3119 = vpop.f32.mrf.mxu0
    %3120 = vdwg.mxu0
    %v3121 = vadd.f32 %v3100, %v3118
    %v3122 = vrot.slane %v3070, 1
    %v3124 = vsel %vm1926, %v3122, 0
    %3126 = vmatpush.bf16.msra.mxu0 0
    %3127 = vmatpush.bf16.msra.mxu0 0
    %3128 = vmatpush.bf16.msra.mxu0 0
    %3129 = vmatpush.bf16.msra.mxu0 %v2062
    %3130 = vmatpush.bf16.msra.mxu0 %v2061
    %3131 = vmatpush.bf16.msra.mxu0 %v2060
    %3132 = vmatpush.bf16.msra.mxu0 %v2059
    %3133 = vmatpush.bf16.msra.mxu0 %v2058
    %3134 = vmatmul.bf16.gmra.mxu0 %v3124
    %v3135 = vpop.f32.mrf.mxu0
    %v3136 = vadd.f32 0.0, %v3135
    %v3137 = vpop.f32.mrf.mxu0
    %3138 = vdwg.mxu0
    %v3139 = vadd.f32 %v3121, %v3136
    %v3140 = vrot.slane %v3068, 2
    %v3142 = vsel %vm1926, %v3140, 0
    %3144 = vmatpush.bf16.msra.mxu0 0
    %3145 = vmatpush.bf16.msra.mxu0 0
    %3146 = vmatpush.bf16.msra.mxu0 0
    %3147 = vmatpush.bf16.msra.mxu0 %v2110
    %3148 = vmatpush.bf16.msra.mxu0 %v2109
    %3149 = vmatpush.bf16.msra.mxu0 %v2108
    %3150 = vmatpush.bf16.msra.mxu0 %v2107
    %3151 = vmatpush.bf16.msra.mxu0 %v2106
    %3152 = vmatmul.bf16.gmra.mxu0 %v3142
    %v3153 = vpop.f32.mrf.mxu0
    %v3154 = vadd.f32 0.0, %v3153
    %v3155 = vpop.f32.mrf.mxu0
    %3156 = vdwg.mxu0
    %v3157 = vadd.f32 %v3139, %v3154
    %v3158 = vadd.f32 %v3157, %v461
    %v3159 = vmax.f32 %v3158, 0.0
    %v3160 = vmul.f32 %v3159, 32.0
    %v3161 = vfloor.f32 %v3160
    %v3162 = vmax.f32 %v3161, -128.0
    %v3163 = vmin.f32 %v3162, 127.0
    %v3164 = vpack.c.bf16 %v3163, %v3163
    %3165 = vmatpush.bf16.msra.mxu0 %v2179
    %3166 = vmatpush.bf16.msra.mxu0 %v2178
    %3167 = vmatpush.bf16.msra.mxu0 %v2177
    %3168 = vmatpush.bf16.msra.mxu0 %v2176
    %3169 = vmatpush.bf16.msra.mxu0 %v2175
    %3170 = vmatpush.bf16.msra.mxu0 %v2174
    %3171 = vmatpush.bf16.msra.mxu0 %v2173
    %3172 = vmatpush.bf16.msra.mxu0 %v2172
    %3173 = vmatmul.bf16.gmra.mxu0 %v3164
    %v3174 = vpop.f32.mrf.mxu0
    %v3175 = vadd.f32 %v478, %v3174
    %v3176 = vpop.f32.mrf.mxu0
    %3177 = vdwg.mxu0
    %v3178 = vmax.f32 %v3175, 0.0
    %v3179 = vmul.f32 %v3178, 76.8
    %v3180 = vfloor.f32 %v3179
    %v3181 = vmax.f32 %v3180, -128.0
    %v3182 = vmin.f32 %v3181, 127.0
    %v3183 = vpack.c.bf16 %v3182, %v3182
    %3184 = vmatpush.bf16.msra.mxu0 %v2246
    %3185 = vmatpush.bf16.msra.mxu0 %v2245
    %3186 = vmatpush.bf16.msra.mxu0 %v2244
    %3187 = vmatpush.bf16.msra.mxu0 %v2243
    %3188 = vmatpush.bf16.msra.mxu0 %v2242
    %3189 = vmatpush.bf16.msra.mxu0 %v2241
    %3190 = vmatpush.bf16.msra.mxu0 %v2240
    %3191 = vmatpush.bf16.msra.mxu0 %v2239
    %3192 = vmatmul.bf16.gmra.mxu0 %v3183
    %v3193 = vpop.f32.mrf.mxu0
    %v3194 = vadd.f32 %v495, %v3193
    %v3195 = vpop.f32.mrf.mxu0
    %3196 = vdwg.mxu0
    %v3197 = vmul.f32 %v3194, 20.0
    %v3198 = vfloor.f32 %v3197
    %v3199 = vmax.f32 %v3198, -128.0
    %v3200 = vmin.f32 %v3199, 127.0
    %3201 = vst [vmem:[#allocation4 + $0x1] sm:$0x1] %v3200
    // Predicated region
    $region62: #{tpu_custom_call.1} parent=1 // pred_check
      _
    $region63: #{tpu_custom_call.1} parent=1 // pred_check_branch
      %3203 = sbr.rel (0) target = $region65
    $region64: #{tpu_custom_call.1} parent=1 // pred_region
      %3205 = vsyncadd [#allocation5], 0
      %s3207 = sshll.u32 [#allocation4], 4
      %s3208 = int_to_ptr.vmem [resolvable:$true] %s3207
      %s3209 = sshll.u32 %s15, 4
      %s3210 = int_to_ptr.hbm [resolvable:$true] %s3209
      %3212 = dma.vmem_to_hbm [thread:$0]  %s3208, 32, %s3210, [#allocation5]
    $region65: #{tpu_custom_call.1} parent=1 // pred_fallthru
      _
    // Predicated region
    $region66: #{tpu_custom_call.1} parent=1 // pred_check
      _
    $region67: #{tpu_custom_call.1} parent=1 // pred_check_branch
      %3214 = sbr.rel (0) target = $region69
    $region68: #{tpu_custom_call.1} parent=1 // pred_region
      %3216 = dma.done [#allocation5], 32
    $region69: #{tpu_custom_call.1} parent=1 // pred_fallthru
      _
    %3217 = vsyncpa [#allocation5], 1

</llo_original>
